<compile_context>
chip_gen: v7x
topology: tpu7x:2x2x1
jax: 0.10.0
libtpu: 0.0.40
codegen_flags: <defaults>
</compile_context>

<pallas_src>
import functools
import math

import jax
import jax.numpy as jnp
import numpy as np
from jax import lax
from jax.experimental import pallas as pl
from jax.experimental.pallas import tpu as pltpu


def _round_up(x, m):
    return ((x + m - 1) // m) * m


# ----------------------------- Fused kernel --------------------------------

def _fused_lstm_kernel(x_ref, w_in_ref, b_in_ref,
                       wih0_ref, whh0_ref, b0_ref,
                       wih1_ref, whh1_ref, b1_ref,
                       wout_ref, bout_ref,
                       o_ref,
                       g_buf, seq0_buf, seq1_buf,
                       *, t_len, bt, unroll):
    hp = whh0_ref.shape[0]        # lane-padded hidden size (multiple of 128)
    nxp = x_ref.shape[-1]
    nyp = o_ref.shape[-1]
    rows = t_len * bt             # bt is a multiple of 8 -> reshapes are free

    # ---- linearIn + ReLU over the whole sequence tile (one matmul) --------
    x2d = x_ref[...].reshape(rows, nxp)
    x0 = jnp.maximum(
        jnp.dot(x2d, w_in_ref[...], preferred_element_type=jnp.float32)
        + b_in_ref[...],
        0.0)                                                    # (rows, HP)

    def run_layer(x_seq_2d, wih_ref, whh_ref, b_ref, seq_ref):
        # Hoisted input projection (+ bias, added once) for ALL time steps.
        g_buf[...] = (jnp.dot(x_seq_2d, wih_ref[...],
                              preferred_element_type=jnp.float32)
                      + b_ref[...]).reshape(t_len, bt, 4 * hp)
        whh = whh_ref[...]        # loaded once per layer

        # Sequential recurrence: h/c are loop-carried (vreg-resident), only
        # the small (bt, hp) @ (hp, 4hp) matmul stays serial.  Every slice is
        # a whole (8,128)-tile (bt % 8 == 0, hp % 128 == 0).
        def step(t, carry):
            h, c = carry
            gates = g_buf[t] + jnp.dot(h, whh,
                                       preferred_element_type=jnp.float32)
            i_g = jax.nn.sigmoid(gates[:, 0 * hp:1 * hp])
            f_g = jax.nn.sigmoid(gates[:, 1 * hp:2 * hp])
            g_g = jnp.tanh(gates[:, 2 * hp:3 * hp])
            o_g = jax.nn.sigmoid(gates[:, 3 * hp:4 * hp])
            c_new = f_g * c + i_g * g_g
            h_new = o_g * jnp.tanh(c_new)
            seq_ref[t] = h_new
            return (h_new, c_new)

        zeros = jnp.zeros((bt, hp), jnp.float32)
        lax.fori_loop(0, t_len, step, (zeros, zeros), unroll=unroll)

    run_layer(x0, wih0_ref, whh0_ref, b0_ref, seq0_buf)
    # Layer 2 reads the layer-1 sequence ref directly; separate output buffer
    # avoids any value-snapshot / overwrite hazard.
    run_layer(seq0_buf[...].reshape(rows, hp),
              wih1_ref, whh1_ref, b1_ref, seq1_buf)

    # ---- linearOut over the whole sequence tile (lane-dense stores) -------
    h2 = seq1_buf[...].reshape(rows, hp)
    o_ref[...] = (jnp.dot(h2, wout_ref[...],
                          preferred_element_type=jnp.float32)
                  + bout_ref[...]).reshape(t_len, bt, nyp).astype(o_ref.dtype)


# --------------------------- Weight preparation -----------------------------

def _prep_lstm_weights(w_ih, w_hh, b_ih, b_hh, in_pad, hp):
    """torch-layout LSTM weights -> transposed, per-gate lane-padded.

    w_ih: (4H, H_in), w_hh: (4H, H), b_*: (4H,)  (torch gate order i,f,g,o)
    returns wi: (in_pad, 4*hp), wh: (hp, 4*hp), b: (1, 4*hp)
    """
    w_ih = w_ih.astype(jnp.float32)
    w_hh = w_hh.astype(jnp.float32)
    h4, h_in = w_ih.shape
    h = h4 // 4
    wi = w_ih.T.reshape(h_in, 4, h)
    wi = jnp.pad(wi, ((0, in_pad - h_in), (0, 0), (0, hp - h)))
    wi = wi.reshape(in_pad, 4 * hp)
    wh = w_hh.T.reshape(h, 4, h)
    wh = jnp.pad(wh, ((0, hp - h), (0, 0), (0, hp - h)))
    wh = wh.reshape(hp, 4 * hp)
    b = (b_ih + b_hh).astype(jnp.float32).reshape(4, h)
    b = jnp.pad(b, ((0, 0), (0, hp - h))).reshape(1, 4 * hp)
    return wi, wh, b


# ----------------------------- Model wrapper --------------------------------

def init_params(key, nx, ny, hidden):
    """Deterministic synthetic parameters matching PyTorch shapes."""
    ks = jax.random.split(key, 12)
    u = lambda k, shape, bound: jax.random.uniform(
        k, shape, jnp.float32, -bound, bound)

    k_in = 1.0 / math.sqrt(nx)
    k_h = 1.0 / math.sqrt(hidden)

    return {
        # linearIn: torch.nn.Linear(nx, hidden)
        "w_in": u(ks[0], (hidden, nx), k_in),
        "b_in": u(ks[1], (hidden,), k_in),
        # LSTM layer 0
        "w_ih0": u(ks[2], (4 * hidden, hidden), k_h),
        "w_hh0": u(ks[3], (4 * hidden, hidden), k_h),
        "b_ih0": u(ks[4], (4 * hidden,), k_h),
        "b_hh0": u(ks[5], (4 * hidden,), k_h),
        # LSTM layer 1
        "w_ih1": u(ks[6], (4 * hidden, hidden), k_h),
        "w_hh1": u(ks[7], (4 * hidden, hidden), k_h),
        "b_ih1": u(ks[8], (4 * hidden,), k_h),
        "b_hh1": u(ks[9], (4 * hidden,), k_h),
        # linearOut: torch.nn.Linear(hidden, ny)
        "w_out": u(ks[10], (ny, hidden), k_h),
        "b_out": u(ks[11], (ny,), k_h),
    }


def cudnn_lstm_model_forward(params, x, *, batch_tile_cap=64):
    """x: [T, B, nx] -> [T, B, ny] (eval-mode forward, one fused kernel)."""
    t_len, batch, nx = x.shape
    hidden = params["w_in"].shape[0]
    ny = params["w_out"].shape[0]

    hp = _round_up(hidden, 128)        # lane-padded hidden
    nyp = _round_up(ny, 128)           # lane-padded output
    nxp = _round_up(nx, 128)           # lane-padded input features

    # Batch: pad to sublane multiple, tile for VMEM fit / megacore sharding.
    bp = _round_up(batch, 8)
    bt = bp if bp <= batch_tile_cap else batch_tile_cap
    bp = _round_up(bp, bt)
    n_tiles = bp // bt

    # Host-side weight prep (transpose + zero-pad).  In real use, do this once
    # per model and reuse across calls.
    w_in = jnp.pad(params["w_in"].T.astype(jnp.float32),
                   ((0, nxp - nx), (0, hp - hidden)))               # (NXP, HP)
    b_in = jnp.pad(params["b_in"].astype(jnp.float32),
                   (0, hp - hidden))[None, :]                       # (1, HP)
    wih0, whh0, b0 = _prep_lstm_weights(
        params["w_ih0"], params["w_hh0"], params["b_ih0"], params["b_hh0"],
        in_pad=hp, hp=hp)
    wih1, whh1, b1 = _prep_lstm_weights(
        params["w_ih1"], params["w_hh1"], params["b_ih1"], params["b_hh1"],
        in_pad=hp, hp=hp)
    w_out = jnp.pad(params["w_out"].T.astype(jnp.float32),
                    ((0, hp - hidden), (0, nyp - ny)))              # (HP, NYP)
    b_out = jnp.pad(params["b_out"].astype(jnp.float32),
                    (0, nyp - ny))[None, :]                         # (1, NYP)

    x_p = jnp.pad(x.astype(jnp.float32),
                  ((0, 0), (0, bp - batch), (0, nxp - nx)))         # (T,BP,NXP)

    # Explicit scoped-VMEM sizing: scratch + (double-buffered) weights + I/O.
    f = 4
    scratch_bytes = (t_len * bt * 4 * hp + 2 * t_len * bt * hp) * f
    weight_bytes = (nxp * hp + 4 * hp * 4 * hp + hp * nyp
                    + 3 * 4 * hp + hp + nyp) * f
    io_bytes = 2 * t_len * bt * (nxp + nyp) * f
    vmem_limit = min(int(1.5 * (scratch_bytes + 2 * weight_bytes + io_bytes))
                     + (4 << 20),
                     128 * 1024 * 1024)

    unroll = True if t_len <= 16 else False

    def _full_spec(shape):
        return pl.BlockSpec(shape, lambda b: (0, 0))

    out_padded = pl.pallas_call(
        functools.partial(_fused_lstm_kernel, t_len=t_len, bt=bt,
                          unroll=unroll),
        grid=(n_tiles,),
        in_specs=[
            pl.BlockSpec((t_len, bt, nxp), lambda b: (0, b, 0)),
            _full_spec(w_in.shape), _full_spec(b_in.shape),
            _full_spec(wih0.shape), _full_spec(whh0.shape), _full_spec(b0.shape),
            _full_spec(wih1.shape), _full_spec(whh1.shape), _full_spec(b1.shape),
            _full_spec(w_out.shape), _full_spec(b_out.shape),
        ],
        out_specs=pl.BlockSpec((t_len, bt, nyp), lambda b: (0, b, 0)),
        out_shape=jax.ShapeDtypeStruct((t_len, bp, nyp), jnp.float32),
        scratch_shapes=[
            pltpu.VMEM((t_len, bt, 4 * hp), jnp.float32),   # hoisted gates
            pltpu.VMEM((t_len, bt, hp), jnp.float32),       # layer-1 sequence
            pltpu.VMEM((t_len, bt, hp), jnp.float32),       # layer-2 sequence
        ],
        compiler_params=pltpu.CompilerParams(
            dimension_semantics=("parallel",),
            vmem_limit_bytes=vmem_limit),
    )(x_p, w_in, b_in, wih0, whh0, b0, wih1, whh1, b1, w_out, b_out)

    return out_padded[:, :batch, :ny]


# ------------------------- Pure-JAX reference -------------------------------

def _reference_forward(params, x):
    t_len, b, nx = x.shape
    hidden = params["w_in"].shape[0]

    x0 = jax.nn.relu(jnp.einsum("tbi,hi->tbh", x, params["w_in"])
                     + params["b_in"])

    def run_layer(seq, w_ih, w_hh, b_ih, b_hh):
        def step(carry, x_t):
            h, c = carry
            gates = x_t @ w_ih.T + b_ih + h @ w_hh.T + b_hh
            i, f, g, o = jnp.split(gates, 4, axis=-1)
            c = jax.nn.sigmoid(f) * c + jax.nn.sigmoid(i) * jnp.tanh(g)
            h = jax.nn.sigmoid(o) * jnp.tanh(c)
            return (h, c), h
        init = (jnp.zeros((b, hidden), jnp.float32),
                jnp.zeros((b, hidden), jnp.float32))
        _, outs = jax.lax.scan(step, init, seq)
        return outs

    h1 = run_layer(x0, params["w_ih0"], params["w_hh0"],
                   params["b_ih0"], params["b_hh0"])
    h2 = run_layer(h1, params["w_ih1"], params["w_hh1"],
                   params["b_ih1"], params["b_hh1"])
    return jnp.einsum("tbh,oh->tbo", h2, params["w_out"]) + params["b_out"]


# --------------------------------- Main --------------------------------------

if __name__ == "__main__":
    T, B, NX, HIDDEN, NY = 8, 2, 4, 32, 3

    key = jax.random.PRNGKey(0)
    k_param, k_x = jax.random.split(key)
    params = init_params(k_param, NX, NY, HIDDEN)
    x = jax.random.normal(k_x, (T, B, NX), dtype=jnp.float32)

    out = jax.block_until_ready(cudnn_lstm_model_forward(params, x))
    ref = jax.block_until_ready(_reference_forward(params, x))

    # MXU f32 matmuls use bf16 passes at default precision -> not bit-exact
    # vs the fp32 reference; tolerance chosen accordingly.
    np.testing.assert_allclose(np.asarray(out), np.asarray(ref),
                               rtol=2e-2, atol=2e-3)

    assert out.shape == (T, B, NY)
    print("KERNEL_OK")
</pallas_src>

<mosaic_0001>
module attributes {stable_mosaic.version = 11 : i64} {
  func.func @_fused_lstm_kernel(%arg0: i32, %arg1: memref<8x8x128xf32, #tpu.memory_space<vmem>>, %arg2: memref<128x128xf32, #tpu.memory_space<vmem>>, %arg3: memref<1x128xf32, #tpu.memory_space<vmem>>, %arg4: memref<128x512xf32, #tpu.memory_space<vmem>>, %arg5: memref<128x512xf32, #tpu.memory_space<vmem>>, %arg6: memref<1x512xf32, #tpu.memory_space<vmem>>, %arg7: memref<128x512xf32, #tpu.memory_space<vmem>>, %arg8: memref<128x512xf32, #tpu.memory_space<vmem>>, %arg9: memref<1x512xf32, #tpu.memory_space<vmem>>, %arg10: memref<128x128xf32, #tpu.memory_space<vmem>>, %arg11: memref<1x128xf32, #tpu.memory_space<vmem>>, %arg12: memref<8x8x128xf32, #tpu.memory_space<vmem>>, %arg13: memref<8x8x512xf32, #tpu.memory_space<vmem>>, %arg14: memref<8x8x128xf32, #tpu.memory_space<vmem>>, %arg15: memref<8x8x128xf32, #tpu.memory_space<vmem>>) attributes {dimension_semantics = [#tpu.dimension_semantics<parallel>], iteration_bounds = array<i64: 1>, scalar_prefetch = 0 : i64, scratch_operands = 3 : i64, tpu.core_type = #tpu.core_type<tc>, window_params = [{transform_indices = @transform_0, window_bounds = array<i64: 8, 8, 128>}, {pipeline_mode = #tpu.pipeline_mode<synchronous>, transform_indices = @transform_1, window_bounds = array<i64: 128, 128>}, {pipeline_mode = #tpu.pipeline_mode<synchronous>, transform_indices = @transform_2, window_bounds = array<i64: 1, 128>}, {pipeline_mode = #tpu.pipeline_mode<synchronous>, transform_indices = @transform_3, window_bounds = array<i64: 128, 512>}, {pipeline_mode = #tpu.pipeline_mode<synchronous>, transform_indices = @transform_4, window_bounds = array<i64: 128, 512>}, {pipeline_mode = #tpu.pipeline_mode<synchronous>, transform_indices = @transform_5, window_bounds = array<i64: 1, 512>}, {pipeline_mode = #tpu.pipeline_mode<synchronous>, transform_indices = @transform_6, window_bounds = array<i64: 128, 512>}, {pipeline_mode = #tpu.pipeline_mode<synchronous>, transform_indices = @transform_7, window_bounds = array<i64: 128, 512>}, {pipeline_mode = #tpu.pipeline_mode<synchronous>, transform_indices = @transform_8, window_bounds = array<i64: 1, 512>}, {pipeline_mode = #tpu.pipeline_mode<synchronous>, transform_indices = @transform_9, window_bounds = array<i64: 128, 128>}, {pipeline_mode = #tpu.pipeline_mode<synchronous>, transform_indices = @transform_10, window_bounds = array<i64: 1, 128>}, {transform_indices = @transform_11, window_bounds = array<i64: 8, 8, 128>}]} {
    %c0 = arith.constant 0 : index
    %c0_0 = arith.constant 0 : index
    %c0_1 = arith.constant 0 : index
    %0 = vector.load %arg1[%c0, %c0_0, %c0_1] : memref<8x8x128xf32, #tpu.memory_space<vmem>>, vector<8x8x128xf32>
    %1 = vector.shape_cast %0 : vector<8x8x128xf32> to vector<64x128xf32>
    %c0_2 = arith.constant 0 : index
    %c0_3 = arith.constant 0 : index
    %2 = vector.load %arg2[%c0_2, %c0_3] : memref<128x128xf32, #tpu.memory_space<vmem>>, vector<128x128xf32>
    %cst = arith.constant dense<0.000000e+00> : vector<64x128xf32>
    %3 = tpu.matmul %1, %2, %cst {dimension_numbers = #tpu.dot_dimension_numbers<[1], [0], [0], [1], [0, 0, 1, 1], [], []>} : vector<64x128xf32>, vector<128x128xf32>, vector<64x128xf32> -> vector<64x128xf32>
    %c0_4 = arith.constant 0 : index
    %c0_5 = arith.constant 0 : index
    %4 = vector.load %arg3[%c0_4, %c0_5] : memref<1x128xf32, #tpu.memory_space<vmem>>, vector<1x128xf32>
    %5 = vector.broadcast %4 : vector<1x128xf32> to vector<64x128xf32>
    %6 = arith.addf %3, %5 : vector<64x128xf32>
    %cst_6 = arith.constant 0.000000e+00 : f32
    %7 = vector.broadcast %cst_6 : f32 to vector<64x128xf32>
    %8 = arith.maximumf %6, %7 : vector<64x128xf32>
    %c0_7 = arith.constant 0 : index
    %c0_8 = arith.constant 0 : index
    %9 = vector.load %arg4[%c0_7, %c0_8] : memref<128x512xf32, #tpu.memory_space<vmem>>, vector<128x512xf32>
    %cst_9 = arith.constant dense<0.000000e+00> : vector<64x512xf32>
    %10 = tpu.matmul %8, %9, %cst_9 {dimension_numbers = #tpu.dot_dimension_numbers<[1], [0], [0], [1], [0, 0, 1, 1], [], []>} : vector<64x128xf32>, vector<128x512xf32>, vector<64x512xf32> -> vector<64x512xf32>
    %c0_10 = arith.constant 0 : index
    %c0_11 = arith.constant 0 : index
    %11 = vector.load %arg6[%c0_10, %c0_11] : memref<1x512xf32, #tpu.memory_space<vmem>>, vector<1x512xf32>
    %12 = vector.broadcast %11 : vector<1x512xf32> to vector<64x512xf32>
    %13 = arith.addf %10, %12 : vector<64x512xf32>
    %14 = vector.shape_cast %13 : vector<64x512xf32> to vector<8x8x512xf32>
    %c0_12 = arith.constant 0 : index
    %c0_13 = arith.constant 0 : index
    %c0_14 = arith.constant 0 : index
    %15 = vector.load %arg13[%c0_12, %c0_13, %c0_14] : memref<8x8x512xf32, #tpu.memory_space<vmem>>, vector<8x8x512xf32>
    tpu.vector_store %arg13[%c0_12, %c0_13, %c0_14], %14 {strides = array<i32>} : memref<8x8x512xf32, #tpu.memory_space<vmem>>, vector<8x8x512xf32>,
    %c0_15 = arith.constant 0 : index
    %c0_16 = arith.constant 0 : index
    %16 = vector.load %arg5[%c0_15, %c0_16] : memref<128x512xf32, #tpu.memory_space<vmem>>, vector<128x512xf32>
    %cst_17 = arith.constant 0.000000e+00 : f32
    %17 = vector.broadcast %cst_17 : f32 to vector<8x128xf32>
    %c0_i32 = arith.constant 0 : i32
    %18 = arith.index_cast %c0_i32 : i32 to index
    %c0_18 = arith.constant 0 : index
    %c0_19 = arith.constant 0 : index
    %19 = vector.load %arg13[%18, %c0_18, %c0_19] : memref<8x8x512xf32, #tpu.memory_space<vmem>>, vector<1x8x512xf32>
    %20 = vector.shape_cast %19 : vector<1x8x512xf32> to vector<8x512xf32>
    %cst_20 = arith.constant dense<0.000000e+00> : vector<8x512xf32>
    %21 = tpu.matmul %17, %16, %cst_20 {dimension_numbers = #tpu.dot_dimension_numbers<[1], [0], [0], [1], [0, 0, 1, 1], [], []>} : vector<8x128xf32>, vector<128x512xf32>, vector<8x512xf32> -> vector<8x512xf32>
    %22 = arith.addf %20, %21 : vector<8x512xf32>
    %23 = vector.extract_strided_slice %22 {offsets = [0, 0], sizes = [8, 128], strides = [1, 1]} : vector<8x512xf32> to vector<8x128xf32>
    %24 = arith.negf %23 : vector<8x128xf32>
    %25 = math.exp %24 : vector<8x128xf32>
    %cst_21 = arith.constant 1.000000e+00 : f32
    %26 = vector.broadcast %cst_21 : f32 to vector<8x128xf32>
    %27 = arith.addf %26, %25 : vector<8x128xf32>
    %28 = arith.divf %26, %27 : vector<8x128xf32>
    %29 = vector.extract_strided_slice %22 {offsets = [0, 128], sizes = [8, 128], strides = [1, 1]} : vector<8x512xf32> to vector<8x128xf32>
    %30 = arith.negf %29 : vector<8x128xf32>
    %31 = math.exp %30 : vector<8x128xf32>
    %cst_22 = arith.constant 1.000000e+00 : f32
    %32 = vector.broadcast %cst_22 : f32 to vector<8x128xf32>
    %33 = arith.addf %32, %31 : vector<8x128xf32>
    %34 = arith.divf %32, %33 : vector<8x128xf32>
    %35 = vector.extract_strided_slice %22 {offsets = [0, 256], sizes = [8, 128], strides = [1, 1]} : vector<8x512xf32> to vector<8x128xf32>
    %36 = math.tanh %35 : vector<8x128xf32>
    %37 = vector.extract_strided_slice %22 {offsets = [0, 384], sizes = [8, 128], strides = [1, 1]} : vector<8x512xf32> to vector<8x128xf32>
    %38 = arith.negf %37 : vector<8x128xf32>
    %39 = math.exp %38 : vector<8x128xf32>
    %cst_23 = arith.constant 1.000000e+00 : f32
    %40 = vector.broadcast %cst_23 : f32 to vector<8x128xf32>
    %41 = arith.addf %40, %39 : vector<8x128xf32>
    %42 = arith.divf %40, %41 : vector<8x128xf32>
    %43 = arith.mulf %34, %17 : vector<8x128xf32>
    %44 = arith.mulf %28, %36 : vector<8x128xf32>
    %45 = arith.addf %43, %44 : vector<8x128xf32>
    %46 = math.tanh %45 : vector<8x128xf32>
    %47 = arith.mulf %42, %46 : vector<8x128xf32>
    %48 = arith.index_cast %c0_i32 : i32 to index
    %c0_24 = arith.constant 0 : index
    %c0_25 = arith.constant 0 : index
    %49 = vector.load %arg14[%48, %c0_24, %c0_25] : memref<8x8x128xf32, #tpu.memory_space<vmem>>, vector<1x8x128xf32>
    %50 = vector.shape_cast %49 : vector<1x8x128xf32> to vector<8x128xf32>
    %51 = vector.shape_cast %47 : vector<8x128xf32> to vector<1x8x128xf32>
    tpu.vector_store %arg14[%48, %c0_24, %c0_25], %51 {strides = array<i32>} : memref<8x8x128xf32, #tpu.memory_space<vmem>>, vector<1x8x128xf32>,
    %c1_i32 = arith.constant 1 : i32
    %52 = arith.index_cast %c1_i32 : i32 to index
    %c0_26 = arith.constant 0 : index
    %c0_27 = arith.constant 0 : index
    %53 = vector.load %arg13[%52, %c0_26, %c0_27] : memref<8x8x512xf32, #tpu.memory_space<vmem>>, vector<1x8x512xf32>
    %54 = vector.shape_cast %53 : vector<1x8x512xf32> to vector<8x512xf32>
    %cst_28 = arith.constant dense<0.000000e+00> : vector<8x512xf32>
    %55 = tpu.matmul %47, %16, %cst_28 {dimension_numbers = #tpu.dot_dimension_numbers<[1], [0], [0], [1], [0, 0, 1, 1], [], []>} : vector<8x128xf32>, vector<128x512xf32>, vector<8x512xf32> -> vector<8x512xf32>
    %56 = arith.addf %54, %55 : vector<8x512xf32>
    %57 = vector.extract_strided_slice %56 {offsets = [0, 0], sizes = [8, 128], strides = [1, 1]} : vector<8x512xf32> to vector<8x128xf32>
    %58 = arith.negf %57 : vector<8x128xf32>
    %59 = math.exp %58 : vector<8x128xf32>
    %cst_29 = arith.constant 1.000000e+00 : f32
    %60 = vector.broadcast %cst_29 : f32 to vector<8x128xf32>
    %61 = arith.addf %60, %59 : vector<8x128xf32>
    %62 = arith.divf %60, %61 : vector<8x128xf32>
    %63 = vector.extract_strided_slice %56 {offsets = [0, 128], sizes = [8, 128], strides = [1, 1]} : vector<8x512xf32> to vector<8x128xf32>
    %64 = arith.negf %63 : vector<8x128xf32>
    %65 = math.exp %64 : vector<8x128xf32>
    %cst_30 = arith.constant 1.000000e+00 : f32
    %66 = vector.broadcast %cst_30 : f32 to vector<8x128xf32>
    %67 = arith.addf %66, %65 : vector<8x128xf32>
    %68 = arith.divf %66, %67 : vector<8x128xf32>
    %69 = vector.extract_strided_slice %56 {offsets = [0, 256], sizes = [8, 128], strides = [1, 1]} : vector<8x512xf32> to vector<8x128xf32>
    %70 = math.tanh %69 : vector<8x128xf32>
    %71 = vector.extract_strided_slice %56 {offsets = [0, 384], sizes = [8, 128], strides = [1, 1]} : vector<8x512xf32> to vector<8x128xf32>
    %72 = arith.negf %71 : vector<8x128xf32>
    %73 = math.exp %72 : vector<8x128xf32>
    %cst_31 = arith.constant 1.000000e+00 : f32
    %74 = vector.broadcast %cst_31 : f32 to vector<8x128xf32>
    %75 = arith.addf %74, %73 : vector<8x128xf32>
    %76 = arith.divf %74, %75 : vector<8x128xf32>
    %77 = arith.mulf %68, %45 : vector<8x128xf32>
    %78 = arith.mulf %62, %70 : vector<8x128xf32>
    %79 = arith.addf %77, %78 : vector<8x128xf32>
    %80 = math.tanh %79 : vector<8x128xf32>
    %81 = arith.mulf %76, %80 : vector<8x128xf32>
    %82 = arith.index_cast %c1_i32 : i32 to index
    %c0_32 = arith.constant 0 : index
    %c0_33 = arith.constant 0 : index
    %83 = vector.load %arg14[%82, %c0_32, %c0_33] : memref<8x8x128xf32, #tpu.memory_space<vmem>>, vector<1x8x128xf32>
    %84 = vector.shape_cast %83 : vector<1x8x128xf32> to vector<8x128xf32>
    %85 = vector.shape_cast %81 : vector<8x128xf32> to vector<1x8x128xf32>
    tpu.vector_store %arg14[%82, %c0_32, %c0_33], %85 {strides = array<i32>} : memref<8x8x128xf32, #tpu.memory_space<vmem>>, vector<1x8x128xf32>,
    %c2_i32 = arith.constant 2 : i32
    %86 = arith.index_cast %c2_i32 : i32 to index
    %c0_34 = arith.constant 0 : index
    %c0_35 = arith.constant 0 : index
    %87 = vector.load %arg13[%86, %c0_34, %c0_35] : memref<8x8x512xf32, #tpu.memory_space<vmem>>, vector<1x8x512xf32>
    %88 = vector.shape_cast %87 : vector<1x8x512xf32> to vector<8x512xf32>
    %cst_36 = arith.constant dense<0.000000e+00> : vector<8x512xf32>
    %89 = tpu.matmul %81, %16, %cst_36 {dimension_numbers = #tpu.dot_dimension_numbers<[1], [0], [0], [1], [0, 0, 1, 1], [], []>} : vector<8x128xf32>, vector<128x512xf32>, vector<8x512xf32> -> vector<8x512xf32>
    %90 = arith.addf %88, %89 : vector<8x512xf32>
    %91 = vector.extract_strided_slice %90 {offsets = [0, 0], sizes = [8, 128], strides = [1, 1]} : vector<8x512xf32> to vector<8x128xf32>
    %92 = arith.negf %91 : vector<8x128xf32>
    %93 = math.exp %92 : vector<8x128xf32>
    %cst_37 = arith.constant 1.000000e+00 : f32
    %94 = vector.broadcast %cst_37 : f32 to vector<8x128xf32>
    %95 = arith.addf %94, %93 : vector<8x128xf32>
    %96 = arith.divf %94, %95 : vector<8x128xf32>
    %97 = vector.extract_strided_slice %90 {offsets = [0, 128], sizes = [8, 128], strides = [1, 1]} : vector<8x512xf32> to vector<8x128xf32>
    %98 = arith.negf %97 : vector<8x128xf32>
    %99 = math.exp %98 : vector<8x128xf32>
    %cst_38 = arith.constant 1.000000e+00 : f32
    %100 = vector.broadcast %cst_38 : f32 to vector<8x128xf32>
    %101 = arith.addf %100, %99 : vector<8x128xf32>
    %102 = arith.divf %100, %101 : vector<8x128xf32>
    %103 = vector.extract_strided_slice %90 {offsets = [0, 256], sizes = [8, 128], strides = [1, 1]} : vector<8x512xf32> to vector<8x128xf32>
    %104 = math.tanh %103 : vector<8x128xf32>
    %105 = vector.extract_strided_slice %90 {offsets = [0, 384], sizes = [8, 128], strides = [1, 1]} : vector<8x512xf32> to vector<8x128xf32>
    %106 = arith.negf %105 : vector<8x128xf32>
    %107 = math.exp %106 : vector<8x128xf32>
    %cst_39 = arith.constant 1.000000e+00 : f32
    %108 = vector.broadcast %cst_39 : f32 to vector<8x128xf32>
    %109 = arith.addf %108, %107 : vector<8x128xf32>
    %110 = arith.divf %108, %109 : vector<8x128xf32>
    %111 = arith.mulf %102, %79 : vector<8x128xf32>
    %112 = arith.mulf %96, %104 : vector<8x128xf32>
    %113 = arith.addf %111, %112 : vector<8x128xf32>
    %114 = math.tanh %113 : vector<8x128xf32>
    %115 = arith.mulf %110, %114 : vector<8x128xf32>
    %116 = arith.index_cast %c2_i32 : i32 to index
    %c0_40 = arith.constant 0 : index
    %c0_41 = arith.constant 0 : index
    %117 = vector.load %arg14[%116, %c0_40, %c0_41] : memref<8x8x128xf32, #tpu.memory_space<vmem>>, vector<1x8x128xf32>
    %118 = vector.shape_cast %117 : vector<1x8x128xf32> to vector<8x128xf32>
    %119 = vector.shape_cast %115 : vector<8x128xf32> to vector<1x8x128xf32>
    tpu.vector_store %arg14[%116, %c0_40, %c0_41], %119 {strides = array<i32>} : memref<8x8x128xf32, #tpu.memory_space<vmem>>, vector<1x8x128xf32>,
    %c3_i32 = arith.constant 3 : i32
    %120 = arith.index_cast %c3_i32 : i32 to index
    %c0_42 = arith.constant 0 : index
    %c0_43 = arith.constant 0 : index
    %121 = vector.load %arg13[%120, %c0_42, %c0_43] : memref<8x8x512xf32, #tpu.memory_space<vmem>>, vector<1x8x512xf32>
    %122 = vector.shape_cast %121 : vector<1x8x512xf32> to vector<8x512xf32>
    %cst_44 = arith.constant dense<0.000000e+00> : vector<8x512xf32>
    %123 = tpu.matmul %115, %16, %cst_44 {dimension_numbers = #tpu.dot_dimension_numbers<[1], [0], [0], [1], [0, 0, 1, 1], [], []>} : vector<8x128xf32>, vector<128x512xf32>, vector<8x512xf32> -> vector<8x512xf32>
    %124 = arith.addf %122, %123 : vector<8x512xf32>
    %125 = vector.extract_strided_slice %124 {offsets = [0, 0], sizes = [8, 128], strides = [1, 1]} : vector<8x512xf32> to vector<8x128xf32>
    %126 = arith.negf %125 : vector<8x128xf32>
    %127 = math.exp %126 : vector<8x128xf32>
    %cst_45 = arith.constant 1.000000e+00 : f32
    %128 = vector.broadcast %cst_45 : f32 to vector<8x128xf32>
    %129 = arith.addf %128, %127 : vector<8x128xf32>
    %130 = arith.divf %128, %129 : vector<8x128xf32>
    %131 = vector.extract_strided_slice %124 {offsets = [0, 128], sizes = [8, 128], strides = [1, 1]} : vector<8x512xf32> to vector<8x128xf32>
    %132 = arith.negf %131 : vector<8x128xf32>
    %133 = math.exp %132 : vector<8x128xf32>
    %cst_46 = arith.constant 1.000000e+00 : f32
    %134 = vector.broadcast %cst_46 : f32 to vector<8x128xf32>
    %135 = arith.addf %134, %133 : vector<8x128xf32>
    %136 = arith.divf %134, %135 : vector<8x128xf32>
    %137 = vector.extract_strided_slice %124 {offsets = [0, 256], sizes = [8, 128], strides = [1, 1]} : vector<8x512xf32> to vector<8x128xf32>
    %138 = math.tanh %137 : vector<8x128xf32>
    %139 = vector.extract_strided_slice %124 {offsets = [0, 384], sizes = [8, 128], strides = [1, 1]} : vector<8x512xf32> to vector<8x128xf32>
    %140 = arith.negf %139 : vector<8x128xf32>
    %141 = math.exp %140 : vector<8x128xf32>
    %cst_47 = arith.constant 1.000000e+00 : f32
    %142 = vector.broadcast %cst_47 : f32 to vector<8x128xf32>
    %143 = arith.addf %142, %141 : vector<8x128xf32>
    %144 = arith.divf %142, %143 : vector<8x128xf32>
    %145 = arith.mulf %136, %113 : vector<8x128xf32>
    %146 = arith.mulf %130, %138 : vector<8x128xf32>
    %147 = arith.addf %145, %146 : vector<8x128xf32>
    %148 = math.tanh %147 : vector<8x128xf32>
    %149 = arith.mulf %144, %148 : vector<8x128xf32>
    %150 = arith.index_cast %c3_i32 : i32 to index
    %c0_48 = arith.constant 0 : index
    %c0_49 = arith.constant 0 : index
    %151 = vector.load %arg14[%150, %c0_48, %c0_49] : memref<8x8x128xf32, #tpu.memory_space<vmem>>, vector<1x8x128xf32>
    %152 = vector.shape_cast %151 : vector<1x8x128xf32> to vector<8x128xf32>
    %153 = vector.shape_cast %149 : vector<8x128xf32> to vector<1x8x128xf32>
    tpu.vector_store %arg14[%150, %c0_48, %c0_49], %153 {strides = array<i32>} : memref<8x8x128xf32, #tpu.memory_space<vmem>>, vector<1x8x128xf32>,
    %c4_i32 = arith.constant 4 : i32
    %154 = arith.index_cast %c4_i32 : i32 to index
    %c0_50 = arith.constant 0 : index
    %c0_51 = arith.constant 0 : index
    %155 = vector.load %arg13[%154, %c0_50, %c0_51] : memref<8x8x512xf32, #tpu.memory_space<vmem>>, vector<1x8x512xf32>
    %156 = vector.shape_cast %155 : vector<1x8x512xf32> to vector<8x512xf32>
    %cst_52 = arith.constant dense<0.000000e+00> : vector<8x512xf32>
    %157 = tpu.matmul %149, %16, %cst_52 {dimension_numbers = #tpu.dot_dimension_numbers<[1], [0], [0], [1], [0, 0, 1, 1], [], []>} : vector<8x128xf32>, vector<128x512xf32>, vector<8x512xf32> -> vector<8x512xf32>
    %158 = arith.addf %156, %157 : vector<8x512xf32>
    %159 = vector.extract_strided_slice %158 {offsets = [0, 0], sizes = [8, 128], strides = [1, 1]} : vector<8x512xf32> to vector<8x128xf32>
    %160 = arith.negf %159 : vector<8x128xf32>
    %161 = math.exp %160 : vector<8x128xf32>
    %cst_53 = arith.constant 1.000000e+00 : f32
    %162 = vector.broadcast %cst_53 : f32 to vector<8x128xf32>
    %163 = arith.addf %162, %161 : vector<8x128xf32>
    %164 = arith.divf %162, %163 : vector<8x128xf32>
    %165 = vector.extract_strided_slice %158 {offsets = [0, 128], sizes = [8, 128], strides = [1, 1]} : vector<8x512xf32> to vector<8x128xf32>
    %166 = arith.negf %165 : vector<8x128xf32>
    %167 = math.exp %166 : vector<8x128xf32>
    %cst_54 = arith.constant 1.000000e+00 : f32
    %168 = vector.broadcast %cst_54 : f32 to vector<8x128xf32>
    %169 = arith.addf %168, %167 : vector<8x128xf32>
    %170 = arith.divf %168, %169 : vector<8x128xf32>
    %171 = vector.extract_strided_slice %158 {offsets = [0, 256], sizes = [8, 128], strides = [1, 1]} : vector<8x512xf32> to vector<8x128xf32>
    %172 = math.tanh %171 : vector<8x128xf32>
    %173 = vector.extract_strided_slice %158 {offsets = [0, 384], sizes = [8, 128], strides = [1, 1]} : vector<8x512xf32> to vector<8x128xf32>
    %174 = arith.negf %173 : vector<8x128xf32>
    %175 = math.exp %174 : vector<8x128xf32>
    %cst_55 = arith.constant 1.000000e+00 : f32
    %176 = vector.broadcast %cst_55 : f32 to vector<8x128xf32>
    %177 = arith.addf %176, %175 : vector<8x128xf32>
    %178 = arith.divf %176, %177 : vector<8x128xf32>
    %179 = arith.mulf %170, %147 : vector<8x128xf32>
    %180 = arith.mulf %164, %172 : vector<8x128xf32>
    %181 = arith.addf %179, %180 : vector<8x128xf32>
    %182 = math.tanh %181 : vector<8x128xf32>
    %183 = arith.mulf %178, %182 : vector<8x128xf32>
    %184 = arith.index_cast %c4_i32 : i32 to index
    %c0_56 = arith.constant 0 : index
    %c0_57 = arith.constant 0 : index
    %185 = vector.load %arg14[%184, %c0_56, %c0_57] : memref<8x8x128xf32, #tpu.memory_space<vmem>>, vector<1x8x128xf32>
    %186 = vector.shape_cast %185 : vector<1x8x128xf32> to vector<8x128xf32>
    %187 = vector.shape_cast %183 : vector<8x128xf32> to vector<1x8x128xf32>
    tpu.vector_store %arg14[%184, %c0_56, %c0_57], %187 {strides = array<i32>} : memref<8x8x128xf32, #tpu.memory_space<vmem>>, vector<1x8x128xf32>,
    %c5_i32 = arith.constant 5 : i32
    %188 = arith.index_cast %c5_i32 : i32 to index
    %c0_58 = arith.constant 0 : index
    %c0_59 = arith.constant 0 : index
    %189 = vector.load %arg13[%188, %c0_58, %c0_59] : memref<8x8x512xf32, #tpu.memory_space<vmem>>, vector<1x8x512xf32>
    %190 = vector.shape_cast %189 : vector<1x8x512xf32> to vector<8x512xf32>
    %cst_60 = arith.constant dense<0.000000e+00> : vector<8x512xf32>
    %191 = tpu.matmul %183, %16, %cst_60 {dimension_numbers = #tpu.dot_dimension_numbers<[1], [0], [0], [1], [0, 0, 1, 1], [], []>} : vector<8x128xf32>, vector<128x512xf32>, vector<8x512xf32> -> vector<8x512xf32>
    %192 = arith.addf %190, %191 : vector<8x512xf32>
    %193 = vector.extract_strided_slice %192 {offsets = [0, 0], sizes = [8, 128], strides = [1, 1]} : vector<8x512xf32> to vector<8x128xf32>
    %194 = arith.negf %193 : vector<8x128xf32>
    %195 = math.exp %194 : vector<8x128xf32>
    %cst_61 = arith.constant 1.000000e+00 : f32
    %196 = vector.broadcast %cst_61 : f32 to vector<8x128xf32>
    %197 = arith.addf %196, %195 : vector<8x128xf32>
    %198 = arith.divf %196, %197 : vector<8x128xf32>
    %199 = vector.extract_strided_slice %192 {offsets = [0, 128], sizes = [8, 128], strides = [1, 1]} : vector<8x512xf32> to vector<8x128xf32>
    %200 = arith.negf %199 : vector<8x128xf32>
    %201 = math.exp %200 : vector<8x128xf32>
    %cst_62 = arith.constant 1.000000e+00 : f32
    %202 = vector.broadcast %cst_62 : f32 to vector<8x128xf32>
    %203 = arith.addf %202, %201 : vector<8x128xf32>
    %204 = arith.divf %202, %203 : vector<8x128xf32>
    %205 = vector.extract_strided_slice %192 {offsets = [0, 256], sizes = [8, 128], strides = [1, 1]} : vector<8x512xf32> to vector<8x128xf32>
    %206 = math.tanh %205 : vector<8x128xf32>
    %207 = vector.extract_strided_slice %192 {offsets = [0, 384], sizes = [8, 128], strides = [1, 1]} : vector<8x512xf32> to vector<8x128xf32>
    %208 = arith.negf %207 : vector<8x128xf32>
    %209 = math.exp %208 : vector<8x128xf32>
    %cst_63 = arith.constant 1.000000e+00 : f32
    %210 = vector.broadcast %cst_63 : f32 to vector<8x128xf32>
    %211 = arith.addf %210, %209 : vector<8x128xf32>
    %212 = arith.divf %210, %211 : vector<8x128xf32>
    %213 = arith.mulf %204, %181 : vector<8x128xf32>
    %214 = arith.mulf %198, %206 : vector<8x128xf32>
    %215 = arith.addf %213, %214 : vector<8x128xf32>
    %216 = math.tanh %215 : vector<8x128xf32>
    %217 = arith.mulf %212, %216 : vector<8x128xf32>
    %218 = arith.index_cast %c5_i32 : i32 to index
    %c0_64 = arith.constant 0 : index
    %c0_65 = arith.constant 0 : index
    %219 = vector.load %arg14[%218, %c0_64, %c0_65] : memref<8x8x128xf32, #tpu.memory_space<vmem>>, vector<1x8x128xf32>
    %220 = vector.shape_cast %219 : vector<1x8x128xf32> to vector<8x128xf32>
    %221 = vector.shape_cast %217 : vector<8x128xf32> to vector<1x8x128xf32>
    tpu.vector_store %arg14[%218, %c0_64, %c0_65], %221 {strides = array<i32>} : memref<8x8x128xf32, #tpu.memory_space<vmem>>, vector<1x8x128xf32>,
    %c6_i32 = arith.constant 6 : i32
    %222 = arith.index_cast %c6_i32 : i32 to index
    %c0_66 = arith.constant 0 : index
    %c0_67 = arith.constant 0 : index
    %223 = vector.load %arg13[%222, %c0_66, %c0_67] : memref<8x8x512xf32, #tpu.memory_space<vmem>>, vector<1x8x512xf32>
    %224 = vector.shape_cast %223 : vector<1x8x512xf32> to vector<8x512xf32>
    %cst_68 = arith.constant dense<0.000000e+00> : vector<8x512xf32>
    %225 = tpu.matmul %217, %16, %cst_68 {dimension_numbers = #tpu.dot_dimension_numbers<[1], [0], [0], [1], [0, 0, 1, 1], [], []>} : vector<8x128xf32>, vector<128x512xf32>, vector<8x512xf32> -> vector<8x512xf32>
    %226 = arith.addf %224, %225 : vector<8x512xf32>
    %227 = vector.extract_strided_slice %226 {offsets = [0, 0], sizes = [8, 128], strides = [1, 1]} : vector<8x512xf32> to vector<8x128xf32>
    %228 = arith.negf %227 : vector<8x128xf32>
    %229 = math.exp %228 : vector<8x128xf32>
    %cst_69 = arith.constant 1.000000e+00 : f32
    %230 = vector.broadcast %cst_69 : f32 to vector<8x128xf32>
    %231 = arith.addf %230, %229 : vector<8x128xf32>
    %232 = arith.divf %230, %231 : vector<8x128xf32>
    %233 = vector.extract_strided_slice %226 {offsets = [0, 128], sizes = [8, 128], strides = [1, 1]} : vector<8x512xf32> to vector<8x128xf32>
    %234 = arith.negf %233 : vector<8x128xf32>
    %235 = math.exp %234 : vector<8x128xf32>
    %cst_70 = arith.constant 1.000000e+00 : f32
    %236 = vector.broadcast %cst_70 : f32 to vector<8x128xf32>
    %237 = arith.addf %236, %235 : vector<8x128xf32>
    %238 = arith.divf %236, %237 : vector<8x128xf32>
    %239 = vector.extract_strided_slice %226 {offsets = [0, 256], sizes = [8, 128], strides = [1, 1]} : vector<8x512xf32> to vector<8x128xf32>
    %240 = math.tanh %239 : vector<8x128xf32>
    %241 = vector.extract_strided_slice %226 {offsets = [0, 384], sizes = [8, 128], strides = [1, 1]} : vector<8x512xf32> to vector<8x128xf32>
    %242 = arith.negf %241 : vector<8x128xf32>
    %243 = math.exp %242 : vector<8x128xf32>
    %cst_71 = arith.constant 1.000000e+00 : f32
    %244 = vector.broadcast %cst_71 : f32 to vector<8x128xf32>
    %245 = arith.addf %244, %243 : vector<8x128xf32>
    %246 = arith.divf %244, %245 : vector<8x128xf32>
    %247 = arith.mulf %238, %215 : vector<8x128xf32>
    %248 = arith.mulf %232, %240 : vector<8x128xf32>
    %249 = arith.addf %247, %248 : vector<8x128xf32>
    %250 = math.tanh %249 : vector<8x128xf32>
    %251 = arith.mulf %246, %250 : vector<8x128xf32>
    %252 = arith.index_cast %c6_i32 : i32 to index
    %c0_72 = arith.constant 0 : index
    %c0_73 = arith.constant 0 : index
    %253 = vector.load %arg14[%252, %c0_72, %c0_73] : memref<8x8x128xf32, #tpu.memory_space<vmem>>, vector<1x8x128xf32>
    %254 = vector.shape_cast %253 : vector<1x8x128xf32> to vector<8x128xf32>
    %255 = vector.shape_cast %251 : vector<8x128xf32> to vector<1x8x128xf32>
    tpu.vector_store %arg14[%252, %c0_72, %c0_73], %255 {strides = array<i32>} : memref<8x8x128xf32, #tpu.memory_space<vmem>>, vector<1x8x128xf32>,
    %c7_i32 = arith.constant 7 : i32
    %256 = arith.index_cast %c7_i32 : i32 to index
    %c0_74 = arith.constant 0 : index
    %c0_75 = arith.constant 0 : index
    %257 = vector.load %arg13[%256, %c0_74, %c0_75] : memref<8x8x512xf32, #tpu.memory_space<vmem>>, vector<1x8x512xf32>
    %258 = vector.shape_cast %257 : vector<1x8x512xf32> to vector<8x512xf32>
    %cst_76 = arith.constant dense<0.000000e+00> : vector<8x512xf32>
    %259 = tpu.matmul %251, %16, %cst_76 {dimension_numbers = #tpu.dot_dimension_numbers<[1], [0], [0], [1], [0, 0, 1, 1], [], []>} : vector<8x128xf32>, vector<128x512xf32>, vector<8x512xf32> -> vector<8x512xf32>
    %260 = arith.addf %258, %259 : vector<8x512xf32>
    %261 = vector.extract_strided_slice %260 {offsets = [0, 0], sizes = [8, 128], strides = [1, 1]} : vector<8x512xf32> to vector<8x128xf32>
    %262 = arith.negf %261 : vector<8x128xf32>
    %263 = math.exp %262 : vector<8x128xf32>
    %cst_77 = arith.constant 1.000000e+00 : f32
    %264 = vector.broadcast %cst_77 : f32 to vector<8x128xf32>
    %265 = arith.addf %264, %263 : vector<8x128xf32>
    %266 = arith.divf %264, %265 : vector<8x128xf32>
    %267 = vector.extract_strided_slice %260 {offsets = [0, 128], sizes = [8, 128], strides = [1, 1]} : vector<8x512xf32> to vector<8x128xf32>
    %268 = arith.negf %267 : vector<8x128xf32>
    %269 = math.exp %268 : vector<8x128xf32>
    %cst_78 = arith.constant 1.000000e+00 : f32
    %270 = vector.broadcast %cst_78 : f32 to vector<8x128xf32>
    %271 = arith.addf %270, %269 : vector<8x128xf32>
    %272 = arith.divf %270, %271 : vector<8x128xf32>
    %273 = vector.extract_strided_slice %260 {offsets = [0, 256], sizes = [8, 128], strides = [1, 1]} : vector<8x512xf32> to vector<8x128xf32>
    %274 = math.tanh %273 : vector<8x128xf32>
    %275 = vector.extract_strided_slice %260 {offsets = [0, 384], sizes = [8, 128], strides = [1, 1]} : vector<8x512xf32> to vector<8x128xf32>
    %276 = arith.negf %275 : vector<8x128xf32>
    %277 = math.exp %276 : vector<8x128xf32>
    %cst_79 = arith.constant 1.000000e+00 : f32
    %278 = vector.broadcast %cst_79 : f32 to vector<8x128xf32>
    %279 = arith.addf %278, %277 : vector<8x128xf32>
    %280 = arith.divf %278, %279 : vector<8x128xf32>
    %281 = arith.mulf %272, %249 : vector<8x128xf32>
    %282 = arith.mulf %266, %274 : vector<8x128xf32>
    %283 = arith.addf %281, %282 : vector<8x128xf32>
    %284 = math.tanh %283 : vector<8x128xf32>
    %285 = arith.mulf %280, %284 : vector<8x128xf32>
    %286 = arith.index_cast %c7_i32 : i32 to index
    %c0_80 = arith.constant 0 : index
    %c0_81 = arith.constant 0 : index
    %287 = vector.load %arg14[%286, %c0_80, %c0_81] : memref<8x8x128xf32, #tpu.memory_space<vmem>>, vector<1x8x128xf32>
    %288 = vector.shape_cast %287 : vector<1x8x128xf32> to vector<8x128xf32>
    %289 = vector.shape_cast %285 : vector<8x128xf32> to vector<1x8x128xf32>
    tpu.vector_store %arg14[%286, %c0_80, %c0_81], %289 {strides = array<i32>} : memref<8x8x128xf32, #tpu.memory_space<vmem>>, vector<1x8x128xf32>,
    %c8_i32 = arith.constant 8 : i32
    %c0_82 = arith.constant 0 : index
    %c0_83 = arith.constant 0 : index
    %c0_84 = arith.constant 0 : index
    %290 = vector.load %arg14[%c0_82, %c0_83, %c0_84] : memref<8x8x128xf32, #tpu.memory_space<vmem>>, vector<8x8x128xf32>
    %291 = vector.shape_cast %290 : vector<8x8x128xf32> to vector<64x128xf32>
    %c0_85 = arith.constant 0 : index
    %c0_86 = arith.constant 0 : index
    %292 = vector.load %arg7[%c0_85, %c0_86] : memref<128x512xf32, #tpu.memory_space<vmem>>, vector<128x512xf32>
    %cst_87 = arith.constant dense<0.000000e+00> : vector<64x512xf32>
    %293 = tpu.matmul %291, %292, %cst_87 {dimension_numbers = #tpu.dot_dimension_numbers<[1], [0], [0], [1], [0, 0, 1, 1], [], []>} : vector<64x128xf32>, vector<128x512xf32>, vector<64x512xf32> -> vector<64x512xf32>
    %c0_88 = arith.constant 0 : index
    %c0_89 = arith.constant 0 : index
    %294 = vector.load %arg9[%c0_88, %c0_89] : memref<1x512xf32, #tpu.memory_space<vmem>>, vector<1x512xf32>
    %295 = vector.broadcast %294 : vector<1x512xf32> to vector<64x512xf32>
    %296 = arith.addf %293, %295 : vector<64x512xf32>
    %297 = vector.shape_cast %296 : vector<64x512xf32> to vector<8x8x512xf32>
    %c0_90 = arith.constant 0 : index
    %c0_91 = arith.constant 0 : index
    %c0_92 = arith.constant 0 : index
    %298 = vector.load %arg13[%c0_90, %c0_91, %c0_92] : memref<8x8x512xf32, #tpu.memory_space<vmem>>, vector<8x8x512xf32>
    tpu.vector_store %arg13[%c0_90, %c0_91, %c0_92], %297 {strides = array<i32>} : memref<8x8x512xf32, #tpu.memory_space<vmem>>, vector<8x8x512xf32>,
    %c0_93 = arith.constant 0 : index
    %c0_94 = arith.constant 0 : index
    %299 = vector.load %arg8[%c0_93, %c0_94] : memref<128x512xf32, #tpu.memory_space<vmem>>, vector<128x512xf32>
    %cst_95 = arith.constant 0.000000e+00 : f32
    %300 = vector.broadcast %cst_95 : f32 to vector<8x128xf32>
    %c0_i32_96 = arith.constant 0 : i32
    %301 = arith.index_cast %c0_i32_96 : i32 to index
    %c0_97 = arith.constant 0 : index
    %c0_98 = arith.constant 0 : index
    %302 = vector.load %arg13[%301, %c0_97, %c0_98] : memref<8x8x512xf32, #tpu.memory_space<vmem>>, vector<1x8x512xf32>
    %303 = vector.shape_cast %302 : vector<1x8x512xf32> to vector<8x512xf32>
    %cst_99 = arith.constant dense<0.000000e+00> : vector<8x512xf32>
    %304 = tpu.matmul %300, %299, %cst_99 {dimension_numbers = #tpu.dot_dimension_numbers<[1], [0], [0], [1], [0, 0, 1, 1], [], []>} : vector<8x128xf32>, vector<128x512xf32>, vector<8x512xf32> -> vector<8x512xf32>
    %305 = arith.addf %303, %304 : vector<8x512xf32>
    %306 = vector.extract_strided_slice %305 {offsets = [0, 0], sizes = [8, 128], strides = [1, 1]} : vector<8x512xf32> to vector<8x128xf32>
    %307 = arith.negf %306 : vector<8x128xf32>
    %308 = math.exp %307 : vector<8x128xf32>
    %cst_100 = arith.constant 1.000000e+00 : f32
    %309 = vector.broadcast %cst_100 : f32 to vector<8x128xf32>
    %310 = arith.addf %309, %308 : vector<8x128xf32>
    %311 = arith.divf %309, %310 : vector<8x128xf32>
    %312 = vector.extract_strided_slice %305 {offsets = [0, 128], sizes = [8, 128], strides = [1, 1]} : vector<8x512xf32> to vector<8x128xf32>
    %313 = arith.negf %312 : vector<8x128xf32>
    %314 = math.exp %313 : vector<8x128xf32>
    %cst_101 = arith.constant 1.000000e+00 : f32
    %315 = vector.broadcast %cst_101 : f32 to vector<8x128xf32>
    %316 = arith.addf %315, %314 : vector<8x128xf32>
    %317 = arith.divf %315, %316 : vector<8x128xf32>
    %318 = vector.extract_strided_slice %305 {offsets = [0, 256], sizes = [8, 128], strides = [1, 1]} : vector<8x512xf32> to vector<8x128xf32>
    %319 = math.tanh %318 : vector<8x128xf32>
    %320 = vector.extract_strided_slice %305 {offsets = [0, 384], sizes = [8, 128], strides = [1, 1]} : vector<8x512xf32> to vector<8x128xf32>
    %321 = arith.negf %320 : vector<8x128xf32>
    %322 = math.exp %321 : vector<8x128xf32>
    %cst_102 = arith.constant 1.000000e+00 : f32
    %323 = vector.broadcast %cst_102 : f32 to vector<8x128xf32>
    %324 = arith.addf %323, %322 : vector<8x128xf32>
    %325 = arith.divf %323, %324 : vector<8x128xf32>
    %326 = arith.mulf %317, %300 : vector<8x128xf32>
    %327 = arith.mulf %311, %319 : vector<8x128xf32>
    %328 = arith.addf %326, %327 : vector<8x128xf32>
    %329 = math.tanh %328 : vector<8x128xf32>
    %330 = arith.mulf %325, %329 : vector<8x128xf32>
    %331 = arith.index_cast %c0_i32_96 : i32 to index
    %c0_103 = arith.constant 0 : index
    %c0_104 = arith.constant 0 : index
    %332 = vector.load %arg15[%331, %c0_103, %c0_104] : memref<8x8x128xf32, #tpu.memory_space<vmem>>, vector<1x8x128xf32>
    %333 = vector.shape_cast %332 : vector<1x8x128xf32> to vector<8x128xf32>
    %334 = vector.shape_cast %330 : vector<8x128xf32> to vector<1x8x128xf32>
    tpu.vector_store %arg15[%331, %c0_103, %c0_104], %334 {strides = array<i32>} : memref<8x8x128xf32, #tpu.memory_space<vmem>>, vector<1x8x128xf32>,
    %c1_i32_105 = arith.constant 1 : i32
    %335 = arith.index_cast %c1_i32_105 : i32 to index
    %c0_106 = arith.constant 0 : index
    %c0_107 = arith.constant 0 : index
    %336 = vector.load %arg13[%335, %c0_106, %c0_107] : memref<8x8x512xf32, #tpu.memory_space<vmem>>, vector<1x8x512xf32>
    %337 = vector.shape_cast %336 : vector<1x8x512xf32> to vector<8x512xf32>
    %cst_108 = arith.constant dense<0.000000e+00> : vector<8x512xf32>
    %338 = tpu.matmul %330, %299, %cst_108 {dimension_numbers = #tpu.dot_dimension_numbers<[1], [0], [0], [1], [0, 0, 1, 1], [], []>} : vector<8x128xf32>, vector<128x512xf32>, vector<8x512xf32> -> vector<8x512xf32>
    %339 = arith.addf %337, %338 : vector<8x512xf32>
    %340 = vector.extract_strided_slice %339 {offsets = [0, 0], sizes = [8, 128], strides = [1, 1]} : vector<8x512xf32> to vector<8x128xf32>
    %341 = arith.negf %340 : vector<8x128xf32>
    %342 = math.exp %341 : vector<8x128xf32>
    %cst_109 = arith.constant 1.000000e+00 : f32
    %343 = vector.broadcast %cst_109 : f32 to vector<8x128xf32>
    %344 = arith.addf %343, %342 : vector<8x128xf32>
    %345 = arith.divf %343, %344 : vector<8x128xf32>
    %346 = vector.extract_strided_slice %339 {offsets = [0, 128], sizes = [8, 128], strides = [1, 1]} : vector<8x512xf32> to vector<8x128xf32>
    %347 = arith.negf %346 : vector<8x128xf32>
    %348 = math.exp %347 : vector<8x128xf32>
    %cst_110 = arith.constant 1.000000e+00 : f32
    %349 = vector.broadcast %cst_110 : f32 to vector<8x128xf32>
    %350 = arith.addf %349, %348 : vector<8x128xf32>
    %351 = arith.divf %349, %350 : vector<8x128xf32>
    %352 = vector.extract_strided_slice %339 {offsets = [0, 256], sizes = [8, 128], strides = [1, 1]} : vector<8x512xf32> to vector<8x128xf32>
    %353 = math.tanh %352 : vector<8x128xf32>
    %354 = vector.extract_strided_slice %339 {offsets = [0, 384], sizes = [8, 128], strides = [1, 1]} : vector<8x512xf32> to vector<8x128xf32>
    %355 = arith.negf %354 : vector<8x128xf32>
    %356 = math.exp %355 : vector<8x128xf32>
    %cst_111 = arith.constant 1.000000e+00 : f32
    %357 = vector.broadcast %cst_111 : f32 to vector<8x128xf32>
    %358 = arith.addf %357, %356 : vector<8x128xf32>
    %359 = arith.divf %357, %358 : vector<8x128xf32>
    %360 = arith.mulf %351, %328 : vector<8x128xf32>
    %361 = arith.mulf %345, %353 : vector<8x128xf32>
    %362 = arith.addf %360, %361 : vector<8x128xf32>
    %363 = math.tanh %362 : vector<8x128xf32>
    %364 = arith.mulf %359, %363 : vector<8x128xf32>
    %365 = arith.index_cast %c1_i32_105 : i32 to index
    %c0_112 = arith.constant 0 : index
    %c0_113 = arith.constant 0 : index
    %366 = vector.load %arg15[%365, %c0_112, %c0_113] : memref<8x8x128xf32, #tpu.memory_space<vmem>>, vector<1x8x128xf32>
    %367 = vector.shape_cast %366 : vector<1x8x128xf32> to vector<8x128xf32>
    %368 = vector.shape_cast %364 : vector<8x128xf32> to vector<1x8x128xf32>
    tpu.vector_store %arg15[%365, %c0_112, %c0_113], %368 {strides = array<i32>} : memref<8x8x128xf32, #tpu.memory_space<vmem>>, vector<1x8x128xf32>,
    %c2_i32_114 = arith.constant 2 : i32
    %369 = arith.index_cast %c2_i32_114 : i32 to index
    %c0_115 = arith.constant 0 : index
    %c0_116 = arith.constant 0 : index
    %370 = vector.load %arg13[%369, %c0_115, %c0_116] : memref<8x8x512xf32, #tpu.memory_space<vmem>>, vector<1x8x512xf32>
    %371 = vector.shape_cast %370 : vector<1x8x512xf32> to vector<8x512xf32>
    %cst_117 = arith.constant dense<0.000000e+00> : vector<8x512xf32>
    %372 = tpu.matmul %364, %299, %cst_117 {dimension_numbers = #tpu.dot_dimension_numbers<[1], [0], [0], [1], [0, 0, 1, 1], [], []>} : vector<8x128xf32>, vector<128x512xf32>, vector<8x512xf32> -> vector<8x512xf32>
    %373 = arith.addf %371, %372 : vector<8x512xf32>
    %374 = vector.extract_strided_slice %373 {offsets = [0, 0], sizes = [8, 128], strides = [1, 1]} : vector<8x512xf32> to vector<8x128xf32>
    %375 = arith.negf %374 : vector<8x128xf32>
    %376 = math.exp %375 : vector<8x128xf32>
    %cst_118 = arith.constant 1.000000e+00 : f32
    %377 = vector.broadcast %cst_118 : f32 to vector<8x128xf32>
    %378 = arith.addf %377, %376 : vector<8x128xf32>
    %379 = arith.divf %377, %378 : vector<8x128xf32>
    %380 = vector.extract_strided_slice %373 {offsets = [0, 128], sizes = [8, 128], strides = [1, 1]} : vector<8x512xf32> to vector<8x128xf32>
    %381 = arith.negf %380 : vector<8x128xf32>
    %382 = math.exp %381 : vector<8x128xf32>
    %cst_119 = arith.constant 1.000000e+00 : f32
    %383 = vector.broadcast %cst_119 : f32 to vector<8x128xf32>
    %384 = arith.addf %383, %382 : vector<8x128xf32>
    %385 = arith.divf %383, %384 : vector<8x128xf32>
    %386 = vector.extract_strided_slice %373 {offsets = [0, 256], sizes = [8, 128], strides = [1, 1]} : vector<8x512xf32> to vector<8x128xf32>
    %387 = math.tanh %386 : vector<8x128xf32>
    %388 = vector.extract_strided_slice %373 {offsets = [0, 384], sizes = [8, 128], strides = [1, 1]} : vector<8x512xf32> to vector<8x128xf32>
    %389 = arith.negf %388 : vector<8x128xf32>
    %390 = math.exp %389 : vector<8x128xf32>
    %cst_120 = arith.constant 1.000000e+00 : f32
    %391 = vector.broadcast %cst_120 : f32 to vector<8x128xf32>
    %392 = arith.addf %391, %390 : vector<8x128xf32>
    %393 = arith.divf %391, %392 : vector<8x128xf32>
    %394 = arith.mulf %385, %362 : vector<8x128xf32>
    %395 = arith.mulf %379, %387 : vector<8x128xf32>
    %396 = arith.addf %394, %395 : vector<8x128xf32>
    %397 = math.tanh %396 : vector<8x128xf32>
    %398 = arith.mulf %393, %397 : vector<8x128xf32>
    %399 = arith.index_cast %c2_i32_114 : i32 to index
    %c0_121 = arith.constant 0 : index
    %c0_122 = arith.constant 0 : index
    %400 = vector.load %arg15[%399, %c0_121, %c0_122] : memref<8x8x128xf32, #tpu.memory_space<vmem>>, vector<1x8x128xf32>
    %401 = vector.shape_cast %400 : vector<1x8x128xf32> to vector<8x128xf32>
    %402 = vector.shape_cast %398 : vector<8x128xf32> to vector<1x8x128xf32>
    tpu.vector_store %arg15[%399, %c0_121, %c0_122], %402 {strides = array<i32>} : memref<8x8x128xf32, #tpu.memory_space<vmem>>, vector<1x8x128xf32>,
    %c3_i32_123 = arith.constant 3 : i32
    %403 = arith.index_cast %c3_i32_123 : i32 to index
    %c0_124 = arith.constant 0 : index
    %c0_125 = arith.constant 0 : index
    %404 = vector.load %arg13[%403, %c0_124, %c0_125] : memref<8x8x512xf32, #tpu.memory_space<vmem>>, vector<1x8x512xf32>
    %405 = vector.shape_cast %404 : vector<1x8x512xf32> to vector<8x512xf32>
    %cst_126 = arith.constant dense<0.000000e+00> : vector<8x512xf32>
    %406 = tpu.matmul %398, %299, %cst_126 {dimension_numbers = #tpu.dot_dimension_numbers<[1], [0], [0], [1], [0, 0, 1, 1], [], []>} : vector<8x128xf32>, vector<128x512xf32>, vector<8x512xf32> -> vector<8x512xf32>
    %407 = arith.addf %405, %406 : vector<8x512xf32>
    %408 = vector.extract_strided_slice %407 {offsets = [0, 0], sizes = [8, 128], strides = [1, 1]} : vector<8x512xf32> to vector<8x128xf32>
    %409 = arith.negf %408 : vector<8x128xf32>
    %410 = math.exp %409 : vector<8x128xf32>
    %cst_127 = arith.constant 1.000000e+00 : f32
    %411 = vector.broadcast %cst_127 : f32 to vector<8x128xf32>
    %412 = arith.addf %411, %410 : vector<8x128xf32>
    %413 = arith.divf %411, %412 : vector<8x128xf32>
    %414 = vector.extract_strided_slice %407 {offsets = [0, 128], sizes = [8, 128], strides = [1, 1]} : vector<8x512xf32> to vector<8x128xf32>
    %415 = arith.negf %414 : vector<8x128xf32>
    %416 = math.exp %415 : vector<8x128xf32>
    %cst_128 = arith.constant 1.000000e+00 : f32
    %417 = vector.broadcast %cst_128 : f32 to vector<8x128xf32>
    %418 = arith.addf %417, %416 : vector<8x128xf32>
    %419 = arith.divf %417, %418 : vector<8x128xf32>
    %420 = vector.extract_strided_slice %407 {offsets = [0, 256], sizes = [8, 128], strides = [1, 1]} : vector<8x512xf32> to vector<8x128xf32>
    %421 = math.tanh %420 : vector<8x128xf32>
    %422 = vector.extract_strided_slice %407 {offsets = [0, 384], sizes = [8, 128], strides = [1, 1]} : vector<8x512xf32> to vector<8x128xf32>
    %423 = arith.negf %422 : vector<8x128xf32>
    %424 = math.exp %423 : vector<8x128xf32>
    %cst_129 = arith.constant 1.000000e+00 : f32
    %425 = vector.broadcast %cst_129 : f32 to vector<8x128xf32>
    %426 = arith.addf %425, %424 : vector<8x128xf32>
    %427 = arith.divf %425, %426 : vector<8x128xf32>
    %428 = arith.mulf %419, %396 : vector<8x128xf32>
    %429 = arith.mulf %413, %421 : vector<8x128xf32>
    %430 = arith.addf %428, %429 : vector<8x128xf32>
    %431 = math.tanh %430 : vector<8x128xf32>
    %432 = arith.mulf %427, %431 : vector<8x128xf32>
    %433 = arith.index_cast %c3_i32_123 : i32 to index
    %c0_130 = arith.constant 0 : index
    %c0_131 = arith.constant 0 : index
    %434 = vector.load %arg15[%433, %c0_130, %c0_131] : memref<8x8x128xf32, #tpu.memory_space<vmem>>, vector<1x8x128xf32>
    %435 = vector.shape_cast %434 : vector<1x8x128xf32> to vector<8x128xf32>
    %436 = vector.shape_cast %432 : vector<8x128xf32> to vector<1x8x128xf32>
    tpu.vector_store %arg15[%433, %c0_130, %c0_131], %436 {strides = array<i32>} : memref<8x8x128xf32, #tpu.memory_space<vmem>>, vector<1x8x128xf32>,
    %c4_i32_132 = arith.constant 4 : i32
    %437 = arith.index_cast %c4_i32_132 : i32 to index
    %c0_133 = arith.constant 0 : index
    %c0_134 = arith.constant 0 : index
    %438 = vector.load %arg13[%437, %c0_133, %c0_134] : memref<8x8x512xf32, #tpu.memory_space<vmem>>, vector<1x8x512xf32>
    %439 = vector.shape_cast %438 : vector<1x8x512xf32> to vector<8x512xf32>
    %cst_135 = arith.constant dense<0.000000e+00> : vector<8x512xf32>
    %440 = tpu.matmul %432, %299, %cst_135 {dimension_numbers = #tpu.dot_dimension_numbers<[1], [0], [0], [1], [0, 0, 1, 1], [], []>} : vector<8x128xf32>, vector<128x512xf32>, vector<8x512xf32> -> vector<8x512xf32>
    %441 = arith.addf %439, %440 : vector<8x512xf32>
    %442 = vector.extract_strided_slice %441 {offsets = [0, 0], sizes = [8, 128], strides = [1, 1]} : vector<8x512xf32> to vector<8x128xf32>
    %443 = arith.negf %442 : vector<8x128xf32>
    %444 = math.exp %443 : vector<8x128xf32>
    %cst_136 = arith.constant 1.000000e+00 : f32
    %445 = vector.broadcast %cst_136 : f32 to vector<8x128xf32>
    %446 = arith.addf %445, %444 : vector<8x128xf32>
    %447 = arith.divf %445, %446 : vector<8x128xf32>
    %448 = vector.extract_strided_slice %441 {offsets = [0, 128], sizes = [8, 128], strides = [1, 1]} : vector<8x512xf32> to vector<8x128xf32>
    %449 = arith.negf %448 : vector<8x128xf32>
    %450 = math.exp %449 : vector<8x128xf32>
    %cst_137 = arith.constant 1.000000e+00 : f32
    %451 = vector.broadcast %cst_137 : f32 to vector<8x128xf32>
    %452 = arith.addf %451, %450 : vector<8x128xf32>
    %453 = arith.divf %451, %452 : vector<8x128xf32>
    %454 = vector.extract_strided_slice %441 {offsets = [0, 256], sizes = [8, 128], strides = [1, 1]} : vector<8x512xf32> to vector<8x128xf32>
    %455 = math.tanh %454 : vector<8x128xf32>
    %456 = vector.extract_strided_slice %441 {offsets = [0, 384], sizes = [8, 128], strides = [1, 1]} : vector<8x512xf32> to vector<8x128xf32>
    %457 = arith.negf %456 : vector<8x128xf32>
    %458 = math.exp %457 : vector<8x128xf32>
    %cst_138 = arith.constant 1.000000e+00 : f32
    %459 = vector.broadcast %cst_138 : f32 to vector<8x128xf32>
    %460 = arith.addf %459, %458 : vector<8x128xf32>
    %461 = arith.divf %459, %460 : vector<8x128xf32>
    %462 = arith.mulf %453, %430 : vector<8x128xf32>
    %463 = arith.mulf %447, %455 : vector<8x128xf32>
    %464 = arith.addf %462, %463 : vector<8x128xf32>
    %465 = math.tanh %464 : vector<8x128xf32>
    %466 = arith.mulf %461, %465 : vector<8x128xf32>
    %467 = arith.index_cast %c4_i32_132 : i32 to index
    %c0_139 = arith.constant 0 : index
    %c0_140 = arith.constant 0 : index
    %468 = vector.load %arg15[%467, %c0_139, %c0_140] : memref<8x8x128xf32, #tpu.memory_space<vmem>>, vector<1x8x128xf32>
    %469 = vector.shape_cast %468 : vector<1x8x128xf32> to vector<8x128xf32>
    %470 = vector.shape_cast %466 : vector<8x128xf32> to vector<1x8x128xf32>
    tpu.vector_store %arg15[%467, %c0_139, %c0_140], %470 {strides = array<i32>} : memref<8x8x128xf32, #tpu.memory_space<vmem>>, vector<1x8x128xf32>,
    %c5_i32_141 = arith.constant 5 : i32
    %471 = arith.index_cast %c5_i32_141 : i32 to index
    %c0_142 = arith.constant 0 : index
    %c0_143 = arith.constant 0 : index
    %472 = vector.load %arg13[%471, %c0_142, %c0_143] : memref<8x8x512xf32, #tpu.memory_space<vmem>>, vector<1x8x512xf32>
    %473 = vector.shape_cast %472 : vector<1x8x512xf32> to vector<8x512xf32>
    %cst_144 = arith.constant dense<0.000000e+00> : vector<8x512xf32>
    %474 = tpu.matmul %466, %299, %cst_144 {dimension_numbers = #tpu.dot_dimension_numbers<[1], [0], [0], [1], [0, 0, 1, 1], [], []>} : vector<8x128xf32>, vector<128x512xf32>, vector<8x512xf32> -> vector<8x512xf32>
    %475 = arith.addf %473, %474 : vector<8x512xf32>
    %476 = vector.extract_strided_slice %475 {offsets = [0, 0], sizes = [8, 128], strides = [1, 1]} : vector<8x512xf32> to vector<8x128xf32>
    %477 = arith.negf %476 : vector<8x128xf32>
    %478 = math.exp %477 : vector<8x128xf32>
    %cst_145 = arith.constant 1.000000e+00 : f32
    %479 = vector.broadcast %cst_145 : f32 to vector<8x128xf32>
    %480 = arith.addf %479, %478 : vector<8x128xf32>
    %481 = arith.divf %479, %480 : vector<8x128xf32>
    %482 = vector.extract_strided_slice %475 {offsets = [0, 128], sizes = [8, 128], strides = [1, 1]} : vector<8x512xf32> to vector<8x128xf32>
    %483 = arith.negf %482 : vector<8x128xf32>
    %484 = math.exp %483 : vector<8x128xf32>
    %cst_146 = arith.constant 1.000000e+00 : f32
    %485 = vector.broadcast %cst_146 : f32 to vector<8x128xf32>
    %486 = arith.addf %485, %484 : vector<8x128xf32>
    %487 = arith.divf %485, %486 : vector<8x128xf32>
    %488 = vector.extract_strided_slice %475 {offsets = [0, 256], sizes = [8, 128], strides = [1, 1]} : vector<8x512xf32> to vector<8x128xf32>
    %489 = math.tanh %488 : vector<8x128xf32>
    %490 = vector.extract_strided_slice %475 {offsets = [0, 384], sizes = [8, 128], strides = [1, 1]} : vector<8x512xf32> to vector<8x128xf32>
    %491 = arith.negf %490 : vector<8x128xf32>
    %492 = math.exp %491 : vector<8x128xf32>
    %cst_147 = arith.constant 1.000000e+00 : f32
    %493 = vector.broadcast %cst_147 : f32 to vector<8x128xf32>
    %494 = arith.addf %493, %492 : vector<8x128xf32>
    %495 = arith.divf %493, %494 : vector<8x128xf32>
    %496 = arith.mulf %487, %464 : vector<8x128xf32>
    %497 = arith.mulf %481, %489 : vector<8x128xf32>
    %498 = arith.addf %496, %497 : vector<8x128xf32>
    %499 = math.tanh %498 : vector<8x128xf32>
    %500 = arith.mulf %495, %499 : vector<8x128xf32>
    %501 = arith.index_cast %c5_i32_141 : i32 to index
    %c0_148 = arith.constant 0 : index
    %c0_149 = arith.constant 0 : index
    %502 = vector.load %arg15[%501, %c0_148, %c0_149] : memref<8x8x128xf32, #tpu.memory_space<vmem>>, vector<1x8x128xf32>
    %503 = vector.shape_cast %502 : vector<1x8x128xf32> to vector<8x128xf32>
    %504 = vector.shape_cast %500 : vector<8x128xf32> to vector<1x8x128xf32>
    tpu.vector_store %arg15[%501, %c0_148, %c0_149], %504 {strides = array<i32>} : memref<8x8x128xf32, #tpu.memory_space<vmem>>, vector<1x8x128xf32>,
    %c6_i32_150 = arith.constant 6 : i32
    %505 = arith.index_cast %c6_i32_150 : i32 to index
    %c0_151 = arith.constant 0 : index
    %c0_152 = arith.constant 0 : index
    %506 = vector.load %arg13[%505, %c0_151, %c0_152] : memref<8x8x512xf32, #tpu.memory_space<vmem>>, vector<1x8x512xf32>
    %507 = vector.shape_cast %506 : vector<1x8x512xf32> to vector<8x512xf32>
    %cst_153 = arith.constant dense<0.000000e+00> : vector<8x512xf32>
    %508 = tpu.matmul %500, %299, %cst_153 {dimension_numbers = #tpu.dot_dimension_numbers<[1], [0], [0], [1], [0, 0, 1, 1], [], []>} : vector<8x128xf32>, vector<128x512xf32>, vector<8x512xf32> -> vector<8x512xf32>
    %509 = arith.addf %507, %508 : vector<8x512xf32>
    %510 = vector.extract_strided_slice %509 {offsets = [0, 0], sizes = [8, 128], strides = [1, 1]} : vector<8x512xf32> to vector<8x128xf32>
    %511 = arith.negf %510 : vector<8x128xf32>
    %512 = math.exp %511 : vector<8x128xf32>
    %cst_154 = arith.constant 1.000000e+00 : f32
    %513 = vector.broadcast %cst_154 : f32 to vector<8x128xf32>
    %514 = arith.addf %513, %512 : vector<8x128xf32>
    %515 = arith.divf %513, %514 : vector<8x128xf32>
    %516 = vector.extract_strided_slice %509 {offsets = [0, 128], sizes = [8, 128], strides = [1, 1]} : vector<8x512xf32> to vector<8x128xf32>
    %517 = arith.negf %516 : vector<8x128xf32>
    %518 = math.exp %517 : vector<8x128xf32>
    %cst_155 = arith.constant 1.000000e+00 : f32
    %519 = vector.broadcast %cst_155 : f32 to vector<8x128xf32>
    %520 = arith.addf %519, %518 : vector<8x128xf32>
    %521 = arith.divf %519, %520 : vector<8x128xf32>
    %522 = vector.extract_strided_slice %509 {offsets = [0, 256], sizes = [8, 128], strides = [1, 1]} : vector<8x512xf32> to vector<8x128xf32>
    %523 = math.tanh %522 : vector<8x128xf32>
    %524 = vector.extract_strided_slice %509 {offsets = [0, 384], sizes = [8, 128], strides = [1, 1]} : vector<8x512xf32> to vector<8x128xf32>
    %525 = arith.negf %524 : vector<8x128xf32>
    %526 = math.exp %525 : vector<8x128xf32>
    %cst_156 = arith.constant 1.000000e+00 : f32
    %527 = vector.broadcast %cst_156 : f32 to vector<8x128xf32>
    %528 = arith.addf %527, %526 : vector<8x128xf32>
    %529 = arith.divf %527, %528 : vector<8x128xf32>
    %530 = arith.mulf %521, %498 : vector<8x128xf32>
    %531 = arith.mulf %515, %523 : vector<8x128xf32>
    %532 = arith.addf %530, %531 : vector<8x128xf32>
    %533 = math.tanh %532 : vector<8x128xf32>
    %534 = arith.mulf %529, %533 : vector<8x128xf32>
    %535 = arith.index_cast %c6_i32_150 : i32 to index
    %c0_157 = arith.constant 0 : index
    %c0_158 = arith.constant 0 : index
    %536 = vector.load %arg15[%535, %c0_157, %c0_158] : memref<8x8x128xf32, #tpu.memory_space<vmem>>, vector<1x8x128xf32>
    %537 = vector.shape_cast %536 : vector<1x8x128xf32> to vector<8x128xf32>
    %538 = vector.shape_cast %534 : vector<8x128xf32> to vector<1x8x128xf32>
    tpu.vector_store %arg15[%535, %c0_157, %c0_158], %538 {strides = array<i32>} : memref<8x8x128xf32, #tpu.memory_space<vmem>>, vector<1x8x128xf32>,
    %c7_i32_159 = arith.constant 7 : i32
    %539 = arith.index_cast %c7_i32_159 : i32 to index
    %c0_160 = arith.constant 0 : index
    %c0_161 = arith.constant 0 : index
    %540 = vector.load %arg13[%539, %c0_160, %c0_161] : memref<8x8x512xf32, #tpu.memory_space<vmem>>, vector<1x8x512xf32>
    %541 = vector.shape_cast %540 : vector<1x8x512xf32> to vector<8x512xf32>
    %cst_162 = arith.constant dense<0.000000e+00> : vector<8x512xf32>
    %542 = tpu.matmul %534, %299, %cst_162 {dimension_numbers = #tpu.dot_dimension_numbers<[1], [0], [0], [1], [0, 0, 1, 1], [], []>} : vector<8x128xf32>, vector<128x512xf32>, vector<8x512xf32> -> vector<8x512xf32>
    %543 = arith.addf %541, %542 : vector<8x512xf32>
    %544 = vector.extract_strided_slice %543 {offsets = [0, 0], sizes = [8, 128], strides = [1, 1]} : vector<8x512xf32> to vector<8x128xf32>
    %545 = arith.negf %544 : vector<8x128xf32>
    %546 = math.exp %545 : vector<8x128xf32>
    %cst_163 = arith.constant 1.000000e+00 : f32
    %547 = vector.broadcast %cst_163 : f32 to vector<8x128xf32>
    %548 = arith.addf %547, %546 : vector<8x128xf32>
    %549 = arith.divf %547, %548 : vector<8x128xf32>
    %550 = vector.extract_strided_slice %543 {offsets = [0, 128], sizes = [8, 128], strides = [1, 1]} : vector<8x512xf32> to vector<8x128xf32>
    %551 = arith.negf %550 : vector<8x128xf32>
    %552 = math.exp %551 : vector<8x128xf32>
    %cst_164 = arith.constant 1.000000e+00 : f32
    %553 = vector.broadcast %cst_164 : f32 to vector<8x128xf32>
    %554 = arith.addf %553, %552 : vector<8x128xf32>
    %555 = arith.divf %553, %554 : vector<8x128xf32>
    %556 = vector.extract_strided_slice %543 {offsets = [0, 256], sizes = [8, 128], strides = [1, 1]} : vector<8x512xf32> to vector<8x128xf32>
    %557 = math.tanh %556 : vector<8x128xf32>
    %558 = vector.extract_strided_slice %543 {offsets = [0, 384], sizes = [8, 128], strides = [1, 1]} : vector<8x512xf32> to vector<8x128xf32>
    %559 = arith.negf %558 : vector<8x128xf32>
    %560 = math.exp %559 : vector<8x128xf32>
    %cst_165 = arith.constant 1.000000e+00 : f32
    %561 = vector.broadcast %cst_165 : f32 to vector<8x128xf32>
    %562 = arith.addf %561, %560 : vector<8x128xf32>
    %563 = arith.divf %561, %562 : vector<8x128xf32>
    %564 = arith.mulf %555, %532 : vector<8x128xf32>
    %565 = arith.mulf %549, %557 : vector<8x128xf32>
    %566 = arith.addf %564, %565 : vector<8x128xf32>
    %567 = math.tanh %566 : vector<8x128xf32>
    %568 = arith.mulf %563, %567 : vector<8x128xf32>
    %569 = arith.index_cast %c7_i32_159 : i32 to index
    %c0_166 = arith.constant 0 : index
    %c0_167 = arith.constant 0 : index
    %570 = vector.load %arg15[%569, %c0_166, %c0_167] : memref<8x8x128xf32, #tpu.memory_space<vmem>>, vector<1x8x128xf32>
    %571 = vector.shape_cast %570 : vector<1x8x128xf32> to vector<8x128xf32>
    %572 = vector.shape_cast %568 : vector<8x128xf32> to vector<1x8x128xf32>
    tpu.vector_store %arg15[%569, %c0_166, %c0_167], %572 {strides = array<i32>} : memref<8x8x128xf32, #tpu.memory_space<vmem>>, vector<1x8x128xf32>,
    %c8_i32_168 = arith.constant 8 : i32
    %c0_169 = arith.constant 0 : index
    %c0_170 = arith.constant 0 : index
    %c0_171 = arith.constant 0 : index
    %573 = vector.load %arg15[%c0_169, %c0_170, %c0_171] : memref<8x8x128xf32, #tpu.memory_space<vmem>>, vector<8x8x128xf32>
    %574 = vector.shape_cast %573 : vector<8x8x128xf32> to vector<64x128xf32>
    %c0_172 = arith.constant 0 : index
    %c0_173 = arith.constant 0 : index
    %575 = vector.load %arg10[%c0_172, %c0_173] : memref<128x128xf32, #tpu.memory_space<vmem>>, vector<128x128xf32>
    %cst_174 = arith.constant dense<0.000000e+00> : vector<64x128xf32>
    %576 = tpu.matmul %574, %575, %cst_174 {dimension_numbers = #tpu.dot_dimension_numbers<[1], [0], [0], [1], [0, 0, 1, 1], [], []>} : vector<64x128xf32>, vector<128x128xf32>, vector<64x128xf32> -> vector<64x128xf32>
    %c0_175 = arith.constant 0 : index
    %c0_176 = arith.constant 0 : index
    %577 = vector.load %arg11[%c0_175, %c0_176] : memref<1x128xf32, #tpu.memory_space<vmem>>, vector<1x128xf32>
    %578 = vector.broadcast %577 : vector<1x128xf32> to vector<64x128xf32>
    %579 = arith.addf %576, %578 : vector<64x128xf32>
    %580 = vector.shape_cast %579 : vector<64x128xf32> to vector<8x8x128xf32>
    %c0_177 = arith.constant 0 : index
    %c0_178 = arith.constant 0 : index
    %c0_179 = arith.constant 0 : index
    %581 = vector.load %arg12[%c0_177, %c0_178, %c0_179] : memref<8x8x128xf32, #tpu.memory_space<vmem>>, vector<8x8x128xf32>
    tpu.vector_store %arg12[%c0_177, %c0_178, %c0_179], %580 {strides = array<i32>} : memref<8x8x128xf32, #tpu.memory_space<vmem>>, vector<8x8x128xf32>,
    return
  }
  func.func @transform_0(%arg0: i32) -> (i32, i32, i32) {
    %c0_i32 = arith.constant 0 : i32
    %c0_i32_0 = arith.constant 0 : i32
    %c0_i32_1 = arith.constant 0 : i32
    return %c0_i32, %arg0, %c0_i32_0 : i32, i32, i32
  }
  func.func @transform_1(%arg0: i32) -> (i32, i32) {
    %c0_i32 = arith.constant 0 : i32
    %c0_i32_0 = arith.constant 0 : i32
    %c0_i32_1 = arith.constant 0 : i32
    return %c0_i32, %c0_i32_0 : i32, i32
  }
  func.func @transform_2(%arg0: i32) -> (i32, i32) {
    %c0_i32 = arith.constant 0 : i32
    %c0_i32_0 = arith.constant 0 : i32
    %c0_i32_1 = arith.constant 0 : i32
    return %c0_i32, %c0_i32_0 : i32, i32
  }
  func.func @transform_3(%arg0: i32) -> (i32, i32) {
    %c0_i32 = arith.constant 0 : i32
    %c0_i32_0 = arith.constant 0 : i32
    %c0_i32_1 = arith.constant 0 : i32
    return %c0_i32, %c0_i32_0 : i32, i32
  }
  func.func @transform_4(%arg0: i32) -> (i32, i32) {
    %c0_i32 = arith.constant 0 : i32
    %c0_i32_0 = arith.constant 0 : i32
    %c0_i32_1 = arith.constant 0 : i32
    return %c0_i32, %c0_i32_0 : i32, i32
  }
  func.func @transform_5(%arg0: i32) -> (i32, i32) {
    %c0_i32 = arith.constant 0 : i32
    %c0_i32_0 = arith.constant 0 : i32
    %c0_i32_1 = arith.constant 0 : i32
    return %c0_i32, %c0_i32_0 : i32, i32
  }
  func.func @transform_6(%arg0: i32) -> (i32, i32) {
    %c0_i32 = arith.constant 0 : i32
    %c0_i32_0 = arith.constant 0 : i32
    %c0_i32_1 = arith.constant 0 : i32
    return %c0_i32, %c0_i32_0 : i32, i32
  }
  func.func @transform_7(%arg0: i32) -> (i32, i32) {
    %c0_i32 = arith.constant 0 : i32
    %c0_i32_0 = arith.constant 0 : i32
    %c0_i32_1 = arith.constant 0 : i32
    return %c0_i32, %c0_i32_0 : i32, i32
  }
  func.func @transform_8(%arg0: i32) -> (i32, i32) {
    %c0_i32 = arith.constant 0 : i32
    %c0_i32_0 = arith.constant 0 : i32
    %c0_i32_1 = arith.constant 0 : i32
    return %c0_i32, %c0_i32_0 : i32, i32
  }
  func.func @transform_9(%arg0: i32) -> (i32, i32) {
    %c0_i32 = arith.constant 0 : i32
    %c0_i32_0 = arith.constant 0 : i32
    %c0_i32_1 = arith.constant 0 : i32
    return %c0_i32, %c0_i32_0 : i32, i32
  }
  func.func @transform_10(%arg0: i32) -> (i32, i32) {
    %c0_i32 = arith.constant 0 : i32
    %c0_i32_0 = arith.constant 0 : i32
    %c0_i32_1 = arith.constant 0 : i32
    return %c0_i32, %c0_i32_0 : i32, i32
  }
  func.func @transform_11(%arg0: i32) -> (i32, i32, i32) {
    %c0_i32 = arith.constant 0 : i32
    %c0_i32_0 = arith.constant 0 : i32
    %c0_i32_1 = arith.constant 0 : i32
    return %c0_i32, %arg0, %c0_i32_0 : i32, i32, i32
  }
}

</mosaic_0001>

<llo_original>
// kernel: tpu_custom_call.1
$region0: #{tpu_custom_call.1}
  #allocation0 [shape = 'u32[]', space=smem, size = 0x4, offset = 0x4, fixed_abs, tag = 'smem constant byte address 0x4 - core index']
  #allocation1 [shape = 'u32[144,128]{1,0:T(1,128)}', space=vmem, size = 0x12000, scoped, tag = 'internal scratch']
  #allocation2 [shape = 'f32[8,8,512]{2,1,0:T(8,128)}', space=vmem, size = 0x20000, scoped, tag = 'scratch operand']
  #allocation3 [shape = 'f32[8,8,128]{2,1,0:T(8,128)}', space=vmem, size = 0x8000, scoped, tag = 'scratch operand']
  #allocation4 [shape = 'f32[8,8,128]{2,1,0:T(8,128)}', space=vmem, size = 0x8000, scoped, tag = 'scratch operand']
  %s0 = inlined_call_operand.hbm [shape: f32[8,8,128], index: 0, kind: input, shape index: {}]
  %s1 = inlined_call_operand.hbm [shape: f32[128,128], index: 1, kind: input, shape index: {}]
  %s2 = inlined_call_operand.vmem [shape: f32[1,128], index: 2, kind: input, shape index: {}]
  %s3 = inlined_call_operand.hbm [shape: f32[128,512], index: 3, kind: input, shape index: {}]
  %s4 = inlined_call_operand.hbm [shape: f32[128,512], index: 4, kind: input, shape index: {}]
  %s5 = inlined_call_operand.vmem [shape: f32[1,512], index: 5, kind: input, shape index: {}]
  %s6 = inlined_call_operand.hbm [shape: f32[128,512], index: 6, kind: input, shape index: {}]
  %s7 = inlined_call_operand.hbm [shape: f32[128,512], index: 7, kind: input, shape index: {}]
  %s8 = inlined_call_operand.vmem [shape: f32[1,512], index: 8, kind: input, shape index: {}]
  %s9 = inlined_call_operand.hbm [shape: f32[128,128], index: 9, kind: input, shape index: {}]
  %s10 = inlined_call_operand.vmem [shape: f32[1,128], index: 10, kind: input, shape index: {}]
  %s11 = inlined_call_operand.hbm [shape: f32[8,8,128], index: 11, kind: output, shape index: {}]
  %s12 = sld [smem:[#allocation0]]
  $region82: #{tpu_custom_call.1} parent=0
    _
  %s14 = ssub.s32 1, %s12
  %s15 = scalar_select 0, %s14, %s12
  $region1: #{tpu_custom_call.1} parent=0
    #allocation5 [shape = 'u8[32768]{0}', space=vmem, size = 0x8000, scoped, tag = 'input window, operand 0, single buffered']
    #allocation6 [shape = 's32[1]{0}', space=sflag, size = 0x4, scoped, tag = 'scoped memory for tpu_custom_call.1']
    #allocation7 [shape = 's32[1]{0}', space=sflag, size = 0x4, scoped, tag = 'scoped memory for tpu_custom_call.1']
    #allocation8 [shape = 'u8[65536]{0}', space=vmem, size = 0x10000, scoped, tag = 'input window, operand 1, single buffered']
    #allocation9 [shape = 's32[1]{0}', space=sflag, size = 0x4, scoped, tag = 'scoped memory for tpu_custom_call.1']
    #allocation10 [shape = 'u8[262144]{0}', space=vmem, size = 0x40000, scoped, tag = 'input window, operand 3, single buffered']
    #allocation11 [shape = 'u8[262144]{0}', space=vmem, size = 0x40000, scoped, tag = 'input window, operand 4, single buffered']
    #allocation12 [shape = 's32[1]{0}', space=sflag, size = 0x4, scoped, tag = 'scoped memory for tpu_custom_call.1']
    #allocation13 [shape = 'u8[262144]{0}', space=vmem, size = 0x40000, scoped, tag = 'input window, operand 6, single buffered']
    #allocation14 [shape = 'u8[262144]{0}', space=vmem, size = 0x40000, scoped, tag = 'input window, operand 7, single buffered']
    #allocation15 [shape = 's32[1]{0}', space=sflag, size = 0x4, scoped, tag = 'scoped memory for tpu_custom_call.1']
    #allocation16 [shape = 'u8[65536]{0}', space=vmem, size = 0x10000, scoped, tag = 'input window, operand 9, single buffered']
    #allocation17 [shape = 'u8[32768]{0}', space=vmem, size = 0x8000, scoped, tag = 'output window, operand 0, single buffered']
    %16 = vsyncpa [#allocation6], 0
    %17 = vsyncpa [#allocation9], 0
    %18 = vsyncpa [#allocation12], 0
    %19 = vsyncpa [#allocation15], 0
    %20 = vsyncpa [#allocation7], 0
    // Predicated region
    $region2: #{tpu_custom_call.1} parent=1 // pred_check
      _
    $region3: #{tpu_custom_call.1} parent=1 // pred_check_branch
      %22 = sbr.rel (0) target = $region5
    $region4: #{tpu_custom_call.1} parent=1 // pred_region
      %s24 = ssub.s32 1024, 1024
      %25 = vsyncadd [#allocation6], %s24
      %s26 = sshll.u32 [#allocation5], 4
      %s27 = int_to_ptr.vmem [resolvable:$true] %s26
      %32 = dma.hbm_to_vmem [thread:$0]  %s0, 1024, %s27, [#allocation6], 128, 128, 8
    $region5: #{tpu_custom_call.1} parent=1 // pred_fallthru
      _
    // Predicated region
    $region6: #{tpu_custom_call.1} parent=1 // pred_check
      _
    $region7: #{tpu_custom_call.1} parent=1 // pred_check_branch
      %34 = sbr.rel (0) target = $region9
    $region8: #{tpu_custom_call.1} parent=1 // pred_region
      %s36 = ssub.s32 2048, 2048
      %37 = vsyncadd [#allocation9], %s36
      %s38 = sshll.u32 [#allocation8], 4
      %s39 = int_to_ptr.vmem [resolvable:$true] %s38
      %44 = dma.hbm_to_vmem [thread:$0]  %s1, 2048, %s39, [#allocation9], 128, 128, 8
    $region9: #{tpu_custom_call.1} parent=1 // pred_fallthru
      _
    // Predicated region
    $region10: #{tpu_custom_call.1} parent=1 // pred_check
      _
    $region11: #{tpu_custom_call.1} parent=1 // pred_check_branch
      %46 = sbr.rel (0) target = $region13
    $region12: #{tpu_custom_call.1} parent=1 // pred_region
      _
    $region13: #{tpu_custom_call.1} parent=1 // pred_fallthru
      _
    // Predicated region
    $region14: #{tpu_custom_call.1} parent=1 // pred_check
      _
    $region15: #{tpu_custom_call.1} parent=1 // pred_check_branch
      %48 = sbr.rel (0) target = $region17
    $region16: #{tpu_custom_call.1} parent=1 // pred_region
      %s50 = ssub.s32 8192, 8192
      %51 = vsyncadd [#allocation9], %s50
      %s52 = sshll.u32 [#allocation10], 4
      %s53 = int_to_ptr.vmem [resolvable:$true] %s52
      %58 = dma.hbm_to_vmem [thread:$0]  %s3, 8192, %s53, [#allocation9], 512, 512, 32
    $region17: #{tpu_custom_call.1} parent=1 // pred_fallthru
      _
    // Predicated region
    $region18: #{tpu_custom_call.1} parent=1 // pred_check
      _
    $region19: #{tpu_custom_call.1} parent=1 // pred_check_branch
      %60 = sbr.rel (0) target = $region21
    $region20: #{tpu_custom_call.1} parent=1 // pred_region
      %s62 = ssub.s32 8192, 8192
      %63 = vsyncadd [#allocation12], %s62
      %s64 = sshll.u32 [#allocation11], 4
      %s65 = int_to_ptr.vmem [resolvable:$true] %s64
      %70 = dma.hbm_to_vmem [thread:$0]  %s4, 8192, %s65, [#allocation12], 512, 512, 32
    $region21: #{tpu_custom_call.1} parent=1 // pred_fallthru
      _
    // Predicated region
    $region22: #{tpu_custom_call.1} parent=1 // pred_check
      _
    $region23: #{tpu_custom_call.1} parent=1 // pred_check_branch
      %72 = sbr.rel (0) target = $region25
    $region24: #{tpu_custom_call.1} parent=1 // pred_region
      _
    $region25: #{tpu_custom_call.1} parent=1 // pred_fallthru
      _
    // Predicated region
    $region26: #{tpu_custom_call.1} parent=1 // pred_check
      _
    $region27: #{tpu_custom_call.1} parent=1 // pred_check_branch
      %74 = sbr.rel (0) target = $region29
    $region28: #{tpu_custom_call.1} parent=1 // pred_region
      %s76 = ssub.s32 8192, 8192
      %77 = vsyncadd [#allocation12], %s76
      %s78 = sshll.u32 [#allocation13], 4
      %s79 = int_to_ptr.vmem [resolvable:$true] %s78
      %84 = dma.hbm_to_vmem [thread:$0]  %s6, 8192, %s79, [#allocation12], 512, 512, 32
    $region29: #{tpu_custom_call.1} parent=1 // pred_fallthru
      _
    // Predicated region
    $region30: #{tpu_custom_call.1} parent=1 // pred_check
      _
    $region31: #{tpu_custom_call.1} parent=1 // pred_check_branch
      %86 = sbr.rel (0) target = $region33
    $region32: #{tpu_custom_call.1} parent=1 // pred_region
      %s88 = ssub.s32 8192, 8192
      %89 = vsyncadd [#allocation15], %s88
      %s90 = sshll.u32 [#allocation14], 4
      %s91 = int_to_ptr.vmem [resolvable:$true] %s90
      %96 = dma.hbm_to_vmem [thread:$0]  %s7, 8192, %s91, [#allocation15], 512, 512, 32
    $region33: #{tpu_custom_call.1} parent=1 // pred_fallthru
      _
    // Predicated region
    $region34: #{tpu_custom_call.1} parent=1 // pred_check
      _
    $region35: #{tpu_custom_call.1} parent=1 // pred_check_branch
      %98 = sbr.rel (0) target = $region37
    $region36: #{tpu_custom_call.1} parent=1 // pred_region
      _
    $region37: #{tpu_custom_call.1} parent=1 // pred_fallthru
      _
    // Predicated region
    $region38: #{tpu_custom_call.1} parent=1 // pred_check
      _
    $region39: #{tpu_custom_call.1} parent=1 // pred_check_branch
      %100 = sbr.rel (0) target = $region41
    $region40: #{tpu_custom_call.1} parent=1 // pred_region
      %s102 = ssub.s32 2048, 2048
      %103 = vsyncadd [#allocation15], %s102
      %s104 = sshll.u32 [#allocation16], 4
      %s105 = int_to_ptr.vmem [resolvable:$true] %s104
      %110 = dma.hbm_to_vmem [thread:$0]  %s9, 2048, %s105, [#allocation15], 128, 128, 8
    $region41: #{tpu_custom_call.1} parent=1 // pred_fallthru
      _
    // Predicated region
    $region42: #{tpu_custom_call.1} parent=1 // pred_check
      _
    $region43: #{tpu_custom_call.1} parent=1 // pred_check_branch
      %112 = sbr.rel (0) target = $region45
    $region44: #{tpu_custom_call.1} parent=1 // pred_region
      _
    $region45: #{tpu_custom_call.1} parent=1 // pred_fallthru
      _
    // Predicated region
    $region46: #{tpu_custom_call.1} parent=1 // pred_check
      _
    $region47: #{tpu_custom_call.1} parent=1 // pred_check_branch
      %114 = sbr.rel (0) target = $region49
    $region48: #{tpu_custom_call.1} parent=1 // pred_region
      %115 = dma.done [#allocation6], 1024
    $region49: #{tpu_custom_call.1} parent=1 // pred_fallthru
      _
    // Predicated region
    $region50: #{tpu_custom_call.1} parent=1 // pred_check
      _
    $region51: #{tpu_custom_call.1} parent=1 // pred_check_branch
      %117 = sbr.rel (0) target = $region53
    $region52: #{tpu_custom_call.1} parent=1 // pred_region
      %118 = dma.done [#allocation9], 2048
    $region53: #{tpu_custom_call.1} parent=1 // pred_fallthru
      _
    // Predicated region
    $region54: #{tpu_custom_call.1} parent=1 // pred_check
      _
    $region55: #{tpu_custom_call.1} parent=1 // pred_check_branch
      %120 = sbr.rel (0) target = $region57
    $region56: #{tpu_custom_call.1} parent=1 // pred_region
      %121 = dma.done [#allocation9], 8192
    $region57: #{tpu_custom_call.1} parent=1 // pred_fallthru
      _
    // Predicated region
    $region58: #{tpu_custom_call.1} parent=1 // pred_check
      _
    $region59: #{tpu_custom_call.1} parent=1 // pred_check_branch
      %123 = sbr.rel (0) target = $region61
    $region60: #{tpu_custom_call.1} parent=1 // pred_region
      %124 = dma.done [#allocation12], 8192
    $region61: #{tpu_custom_call.1} parent=1 // pred_fallthru
      _
    // Predicated region
    $region62: #{tpu_custom_call.1} parent=1 // pred_check
      _
    $region63: #{tpu_custom_call.1} parent=1 // pred_check_branch
      %126 = sbr.rel (0) target = $region65
    $region64: #{tpu_custom_call.1} parent=1 // pred_region
      %127 = dma.done [#allocation12], 8192
    $region65: #{tpu_custom_call.1} parent=1 // pred_fallthru
      _
    // Predicated region
    $region66: #{tpu_custom_call.1} parent=1 // pred_check
      _
    $region67: #{tpu_custom_call.1} parent=1 // pred_check_branch
      %129 = sbr.rel (0) target = $region69
    $region68: #{tpu_custom_call.1} parent=1 // pred_region
      %130 = dma.done [#allocation15], 8192
    $region69: #{tpu_custom_call.1} parent=1 // pred_fallthru
      _
    // Predicated region
    $region70: #{tpu_custom_call.1} parent=1 // pred_check
      _
    $region71: #{tpu_custom_call.1} parent=1 // pred_check_branch
      %132 = sbr.rel (0) target = $region73
    $region72: #{tpu_custom_call.1} parent=1 // pred_region
      %133 = dma.done [#allocation15], 2048
    $region73: #{tpu_custom_call.1} parent=1 // pred_fallthru
      _
    %v134 = vld [vmem:[#allocation5] sm:$0xff]
    %v135 = vld [vmem:[#allocation5 + $0x8] sm:$0xff]
    %v136 = vld [vmem:[#allocation5 + $0x10] sm:$0xff]
    %v137 = vld [vmem:[#allocation5 + $0x18] sm:$0xff]
    %v138 = vld [vmem:[#allocation5 + $0x20] sm:$0xff]
    %v139 = vld [vmem:[#allocation5 + $0x28] sm:$0xff]
    %v140 = vld [vmem:[#allocation5 + $0x30] sm:$0xff]
    %v141 = vld [vmem:[#allocation5 + $0x38] sm:$0xff]
    %v142 = vld [vmem:[#allocation8] sm:$0xff]
    %v143 = vld [vmem:[#allocation8 + $0x8] sm:$0xff]
    %v144 = vld [vmem:[#allocation8 + $0x10] sm:$0xff]
    %v145 = vld [vmem:[#allocation8 + $0x18] sm:$0xff]
    %v146 = vld [vmem:[#allocation8 + $0x20] sm:$0xff]
    %v147 = vld [vmem:[#allocation8 + $0x28] sm:$0xff]
    %v148 = vld [vmem:[#allocation8 + $0x30] sm:$0xff]
    %v149 = vld [vmem:[#allocation8 + $0x38] sm:$0xff]
    %v150 = vld [vmem:[#allocation8 + $0x40] sm:$0xff]
    %v151 = vld [vmem:[#allocation8 + $0x48] sm:$0xff]
    %v152 = vld [vmem:[#allocation8 + $0x50] sm:$0xff]
    %v153 = vld [vmem:[#allocation8 + $0x58] sm:$0xff]
    %v154 = vld [vmem:[#allocation8 + $0x60] sm:$0xff]
    %v155 = vld [vmem:[#allocation8 + $0x68] sm:$0xff]
    %v156 = vld [vmem:[#allocation8 + $0x70] sm:$0xff]
    %v157 = vld [vmem:[#allocation8 + $0x78] sm:$0xff]
    %v158 = vld [vmem:[%s2] sm:$0x1]
    %v160 = vlaneseq
    %v161 = vshrl.u32 %v160, 7
    %v162 = vsub.s32 0, %v161
    %v163 = vrot.slane %v158, %v162
    %165 = vmatprep.subr.mxu0 0.0
    %166 = vmatpush1.msra.mxu0 %v142
    %167 = vmatprep.subr.mxu0 0.0
    %168 = vmatpush1.msra.mxu0 %v143
    %169 = vmatprep.subr.mxu0 0.0
    %170 = vmatpush1.msra.mxu0 %v144
    %171 = vmatprep.subr.mxu0 0.0
    %172 = vmatpush1.msra.mxu0 %v145
    %173 = vmatprep.subr.mxu0 0.0
    %174 = vmatpush1.msra.mxu0 %v146
    %175 = vmatprep.subr.mxu0 0.0
    %176 = vmatpush1.msra.mxu0 %v147
    %177 = vmatprep.subr.mxu0 0.0
    %178 = vmatpush1.msra.mxu0 %v148
    %179 = vmatprep.subr.mxu0 0.0
    %180 = vmatpush1.msra.mxu0 %v149
    %181 = vmatprep.subr.mxu0 0.0
    %182 = vmatpush1.msra.mxu0 %v150
    %183 = vmatprep.subr.mxu0 0.0
    %184 = vmatpush1.msra.mxu0 %v151
    %185 = vmatprep.subr.mxu0 0.0
    %186 = vmatpush1.msra.mxu0 %v152
    %187 = vmatprep.subr.mxu0 0.0
    %188 = vmatpush1.msra.mxu0 %v153
    %189 = vmatprep.subr.mxu0 0.0
    %190 = vmatpush1.msra.mxu0 %v154
    %191 = vmatprep.subr.mxu0 0.0
    %192 = vmatpush1.msra.mxu0 %v155
    %193 = vmatprep.subr.mxu0 0.0
    %194 = vmatpush1.msra.mxu0 %v156
    %195 = vmatprep.subr.mxu0 0.0
    %196 = vmatpush1.msra.mxu0 %v157
    %197 = vmatprep.subr.mxu0 0.0
    %198 = vmatpush1.msra.mxu0 0.0
    %199 = vmatprep.subr.mxu0 0.0
    %200 = vmatpush1.msra.mxu0 0.0
    %201 = vmatprep.subr.mxu0 0.0
    %202 = vmatpush1.msra.mxu0 0.0
    %203 = vmatprep.subr.mxu0 0.0
    %204 = vmatpush1.msra.mxu0 0.0
    %205 = vmatprep.subr.mxu0 0.0
    %206 = vmatpush1.msra.mxu0 0.0
    %207 = vmatprep.subr.mxu0 0.0
    %208 = vmatpush1.msra.mxu0 0.0
    %209 = vmatprep.subr.mxu0 0.0
    %210 = vmatpush1.msra.mxu0 0.0
    %211 = vmatprep.subr.mxu0 0.0
    %212 = vmatpush1.msra.mxu0 0.0
    %213 = vmatprep.subr.mxu0 0.0
    %214 = vmatpush1.msra.mxu0 0.0
    %215 = vmatprep.subr.mxu0 0.0
    %216 = vmatpush1.msra.mxu0 0.0
    %217 = vmatprep.subr.mxu0 0.0
    %218 = vmatpush1.msra.mxu0 0.0
    %219 = vmatprep.subr.mxu0 0.0
    %220 = vmatpush1.msra.mxu0 0.0
    %221 = vmatprep.subr.mxu0 0.0
    %222 = vmatpush1.msra.mxu0 0.0
    %223 = vmatprep.subr.mxu0 0.0
    %224 = vmatpush1.msra.mxu0 0.0
    %225 = vmatprep.subr.mxu0 0.0
    %226 = vmatpush1.msra.mxu0 0.0
    %227 = vmatprep.subr.mxu0 0.0
    %228 = vmatpush1.msra.mxu0 0.0
    %229 = vmatprep.mubr.f32.mxu0 0.0
    %230 = vmatmul.mubr.f32.gmra.mrb[0].mxu0 %v134
    %v231 = vpop.f32.mrb[0].mxu0
    %v232 = vadd.f32 %v163, %v231
    %v233 = vpop.f32.mrb[0].mxu0
    %234 = vmatprep.mubr.f32.mxu0 0.0
    %235 = vmatmul.mubr.f32.gmra.mrb[0].mxu0 %v135
    %v236 = vpop.f32.mrb[0].mxu0
    %v237 = vadd.f32 %v163, %v236
    %v238 = vpop.f32.mrb[0].mxu0
    %239 = vmatprep.mubr.f32.mxu0 0.0
    %240 = vmatmul.mubr.f32.gmra.mrb[0].mxu0 %v136
    %v241 = vpop.f32.mrb[0].mxu0
    %v242 = vadd.f32 %v163, %v241
    %v243 = vpop.f32.mrb[0].mxu0
    %244 = vmatprep.mubr.f32.mxu0 0.0
    %245 = vmatmul.mubr.f32.gmra.mrb[0].mxu0 %v137
    %v246 = vpop.f32.mrb[0].mxu0
    %v247 = vadd.f32 %v163, %v246
    %v248 = vpop.f32.mrb[0].mxu0
    %249 = vmatprep.mubr.f32.mxu0 0.0
    %250 = vmatmul.mubr.f32.gmra.mrb[0].mxu0 %v138
    %v251 = vpop.f32.mrb[0].mxu0
    %v252 = vadd.f32 %v163, %v251
    %v253 = vpop.f32.mrb[0].mxu0
    %254 = vmatprep.mubr.f32.mxu0 0.0
    %255 = vmatmul.mubr.f32.gmra.mrb[0].mxu0 %v139
    %v256 = vpop.f32.mrb[0].mxu0
    %v257 = vadd.f32 %v163, %v256
    %v258 = vpop.f32.mrb[0].mxu0
    %259 = vmatprep.mubr.f32.mxu0 0.0
    %260 = vmatmul.mubr.f32.gmra.mrb[0].mxu0 %v140
    %v261 = vpop.f32.mrb[0].mxu0
    %v262 = vadd.f32 %v163, %v261
    %v263 = vpop.f32.mrb[0].mxu0
    %264 = vmatprep.mubr.f32.mxu0 0.0
    %265 = vmatmul.mubr.f32.gmra.mrb[0].mxu0 %v141
    %v266 = vpop.f32.mrb[0].mxu0
    %v267 = vadd.f32 %v163, %v266
    %v268 = vpop.f32.mrb[0].mxu0
    %269 = vdwg.mxu0
    %v270 = vmax.f32 %v232, 0.0
    %v271 = vmax.f32 %v237, 0.0
    %v272 = vmax.f32 %v242, 0.0
    %v273 = vmax.f32 %v247, 0.0
    %v274 = vmax.f32 %v252, 0.0
    %v275 = vmax.f32 %v257, 0.0
    %v276 = vmax.f32 %v262, 0.0
    %v277 = vmax.f32 %v267, 0.0
    %v278 = vld [vmem:[#allocation10] sm:$0xff]
    %v279 = vld [vmem:[#allocation10 + $0x8] sm:$0xff]
    %v280 = vld [vmem:[#allocation10 + $0x10] sm:$0xff]
    %v281 = vld [vmem:[#allocation10 + $0x18] sm:$0xff]
    %v282 = vld [vmem:[#allocation10 + $0x20] sm:$0xff]
    %v283 = vld [vmem:[#allocation10 + $0x28] sm:$0xff]
    %v284 = vld [vmem:[#allocation10 + $0x30] sm:$0xff]
    %v285 = vld [vmem:[#allocation10 + $0x38] sm:$0xff]
    %v286 = vld [vmem:[#allocation10 + $0x40] sm:$0xff]
    %v287 = vld [vmem:[#allocation10 + $0x48] sm:$0xff]
    %v288 = vld [vmem:[#allocation10 + $0x50] sm:$0xff]
    %v289 = vld [vmem:[#allocation10 + $0x58] sm:$0xff]
    %v290 = vld [vmem:[#allocation10 + $0x60] sm:$0xff]
    %v291 = vld [vmem:[#allocation10 + $0x68] sm:$0xff]
    %v292 = vld [vmem:[#allocation10 + $0x70] sm:$0xff]
    %v293 = vld [vmem:[#allocation10 + $0x78] sm:$0xff]
    %v294 = vld [vmem:[#allocation10 + $0x80] sm:$0xff]
    %v295 = vld [vmem:[#allocation10 + $0x88] sm:$0xff]
    %v296 = vld [vmem:[#allocation10 + $0x90] sm:$0xff]
    %v297 = vld [vmem:[#allocation10 + $0x98] sm:$0xff]
    %v298 = vld [vmem:[#allocation10 + $0xa0] sm:$0xff]
    %v299 = vld [vmem:[#allocation10 + $0xa8] sm:$0xff]
    %v300 = vld [vmem:[#allocation10 + $0xb0] sm:$0xff]
    %v301 = vld [vmem:[#allocation10 + $0xb8] sm:$0xff]
    %v302 = vld [vmem:[#allocation10 + $0xc0] sm:$0xff]
    %v303 = vld [vmem:[#allocation10 + $0xc8] sm:$0xff]
    %v304 = vld [vmem:[#allocation10 + $0xd0] sm:$0xff]
    %v305 = vld [vmem:[#allocation10 + $0xd8] sm:$0xff]
    %v306 = vld [vmem:[#allocation10 + $0xe0] sm:$0xff]
    %v307 = vld [vmem:[#allocation10 + $0xe8] sm:$0xff]
    %v308 = vld [vmem:[#allocation10 + $0xf0] sm:$0xff]
    %v309 = vld [vmem:[#allocation10 + $0xf8] sm:$0xff]
    %v310 = vld [vmem:[#allocation10 + $0x100] sm:$0xff]
    %v311 = vld [vmem:[#allocation10 + $0x108] sm:$0xff]
    %v312 = vld [vmem:[#allocation10 + $0x110] sm:$0xff]
    %v313 = vld [vmem:[#allocation10 + $0x118] sm:$0xff]
    %v314 = vld [vmem:[#allocation10 + $0x120] sm:$0xff]
    %v315 = vld [vmem:[#allocation10 + $0x128] sm:$0xff]
    %v316 = vld [vmem:[#allocation10 + $0x130] sm:$0xff]
    %v317 = vld [vmem:[#allocation10 + $0x138] sm:$0xff]
    %v318 = vld [vmem:[#allocation10 + $0x140] sm:$0xff]
    %v319 = vld [vmem:[#allocation10 + $0x148] sm:$0xff]
    %v320 = vld [vmem:[#allocation10 + $0x150] sm:$0xff]
    %v321 = vld [vmem:[#allocation10 + $0x158] sm:$0xff]
    %v322 = vld [vmem:[#allocation10 + $0x160] sm:$0xff]
    %v323 = vld [vmem:[#allocation10 + $0x168] sm:$0xff]
    %v324 = vld [vmem:[#allocation10 + $0x170] sm:$0xff]
    %v325 = vld [vmem:[#allocation10 + $0x178] sm:$0xff]
    %v326 = vld [vmem:[#allocation10 + $0x180] sm:$0xff]
    %v327 = vld [vmem:[#allocation10 + $0x188] sm:$0xff]
    %v328 = vld [vmem:[#allocation10 + $0x190] sm:$0xff]
    %v329 = vld [vmem:[#allocation10 + $0x198] sm:$0xff]
    %v330 = vld [vmem:[#allocation10 + $0x1a0] sm:$0xff]
    %v331 = vld [vmem:[#allocation10 + $0x1a8] sm:$0xff]
    %v332 = vld [vmem:[#allocation10 + $0x1b0] sm:$0xff]
    %v333 = vld [vmem:[#allocation10 + $0x1b8] sm:$0xff]
    %v334 = vld [vmem:[#allocation10 + $0x1c0] sm:$0xff]
    %v335 = vld [vmem:[#allocation10 + $0x1c8] sm:$0xff]
    %v336 = vld [vmem:[#allocation10 + $0x1d0] sm:$0xff]
    %v337 = vld [vmem:[#allocation10 + $0x1d8] sm:$0xff]
    %v338 = vld [vmem:[#allocation10 + $0x1e0] sm:$0xff]
    %v339 = vld [vmem:[#allocation10 + $0x1e8] sm:$0xff]
    %v340 = vld [vmem:[#allocation10 + $0x1f0] sm:$0xff]
    %v341 = vld [vmem:[#allocation10 + $0x1f8] sm:$0xff]
    %v342 = vld [vmem:[%s5] sm:$0xf]
    %v344 = vlaneseq
    %v345 = vshrl.u32 %v344, 7
    %v346 = vsub.s32 0, %v345
    %v347 = vrot.slane %v342, %v346
    %v348 = vlaneseq
    %v349 = vshrl.u32 %v348, 7
    %v350 = vsub.s32 1, %v349
    %v351 = vrot.slane %v342, %v350
    %v352 = vlaneseq
    %v353 = vshrl.u32 %v352, 7
    %v354 = vsub.s32 2, %v353
    %v355 = vrot.slane %v342, %v354
    %v356 = vlaneseq
    %v357 = vshrl.u32 %v356, 7
    %v358 = vsub.s32 3, %v357
    %v359 = vrot.slane %v342, %v358
    %364 = vmatprep.subr.mxu0 %v279
    %365 = vmatpush1.msra.mxu0 %v278
    %366 = vmatprep.subr.mxu0 %v283
    %367 = vmatpush1.msra.mxu0 %v282
    %368 = vmatprep.subr.mxu0 %v287
    %369 = vmatpush1.msra.mxu0 %v286
    %370 = vmatprep.subr.mxu0 %v291
    %371 = vmatpush1.msra.mxu0 %v290
    %372 = vmatprep.subr.mxu0 %v295
    %373 = vmatpush1.msra.mxu0 %v294
    %374 = vmatprep.subr.mxu0 %v299
    %375 = vmatpush1.msra.mxu0 %v298
    %376 = vmatprep.subr.mxu0 %v303
    %377 = vmatpush1.msra.mxu0 %v302
    %378 = vmatprep.subr.mxu0 %v307
    %379 = vmatpush1.msra.mxu0 %v306
    %380 = vmatprep.subr.mxu0 %v311
    %381 = vmatpush1.msra.mxu0 %v310
    %382 = vmatprep.subr.mxu0 %v315
    %383 = vmatpush1.msra.mxu0 %v314
    %384 = vmatprep.subr.mxu0 %v319
    %385 = vmatpush1.msra.mxu0 %v318
    %386 = vmatprep.subr.mxu0 %v323
    %387 = vmatpush1.msra.mxu0 %v322
    %388 = vmatprep.subr.mxu0 %v327
    %389 = vmatpush1.msra.mxu0 %v326
    %390 = vmatprep.subr.mxu0 %v331
    %391 = vmatpush1.msra.mxu0 %v330
    %392 = vmatprep.subr.mxu0 %v335
    %393 = vmatpush1.msra.mxu0 %v334
    %394 = vmatprep.subr.mxu0 %v339
    %395 = vmatpush1.msra.mxu0 %v338
    %396 = vmatprep.subr.mxu0 0.0
    %397 = vmatpush1.msra.mxu0 0.0
    %398 = vmatprep.subr.mxu0 0.0
    %399 = vmatpush1.msra.mxu0 0.0
    %400 = vmatprep.subr.mxu0 0.0
    %401 = vmatpush1.msra.mxu0 0.0
    %402 = vmatprep.subr.mxu0 0.0
    %403 = vmatpush1.msra.mxu0 0.0
    %404 = vmatprep.subr.mxu0 0.0
    %405 = vmatpush1.msra.mxu0 0.0
    %406 = vmatprep.subr.mxu0 0.0
    %407 = vmatpush1.msra.mxu0 0.0
    %408 = vmatprep.subr.mxu0 0.0
    %409 = vmatpush1.msra.mxu0 0.0
    %410 = vmatprep.subr.mxu0 0.0
    %411 = vmatpush1.msra.mxu0 0.0
    %412 = vmatprep.subr.mxu0 0.0
    %413 = vmatpush1.msra.mxu0 0.0
    %414 = vmatprep.subr.mxu0 0.0
    %415 = vmatpush1.msra.mxu0 0.0
    %416 = vmatprep.subr.mxu0 0.0
    %417 = vmatpush1.msra.mxu0 0.0
    %418 = vmatprep.subr.mxu0 0.0
    %419 = vmatpush1.msra.mxu0 0.0
    %420 = vmatprep.subr.mxu0 0.0
    %421 = vmatpush1.msra.mxu0 0.0
    %422 = vmatprep.subr.mxu0 0.0
    %423 = vmatpush1.msra.mxu0 0.0
    %424 = vmatprep.subr.mxu0 0.0
    %425 = vmatpush1.msra.mxu0 0.0
    %426 = vmatprep.subr.mxu0 0.0
    %427 = vmatpush1.msra.mxu0 0.0
    %428 = vmatprep.mubr.f32.mxu0 0.0
    %429 = vmatmul.mubr.f32.gmra.mrb[0].mxu0 %v270
    %v430 = vpop.f32.mrb[0].mxu0
    %v431 = vadd.f32 %v347, %v430
    %v432 = vpop.f32.mrb[0].mxu0
    %v433 = vadd.f32 %v351, %v432
    %434 = vmatprep.mubr.f32.mxu0 0.0
    %435 = vmatmul.mubr.f32.gmra.mrb[0].mxu0 %v271
    %v436 = vpop.f32.mrb[0].mxu0
    %v437 = vadd.f32 %v347, %v436
    %v438 = vpop.f32.mrb[0].mxu0
    %v439 = vadd.f32 %v351, %v438
    %440 = vmatprep.mubr.f32.mxu0 0.0
    %441 = vmatmul.mubr.f32.gmra.mrb[0].mxu0 %v272
    %v442 = vpop.f32.mrb[0].mxu0
    %v443 = vadd.f32 %v347, %v442
    %v444 = vpop.f32.mrb[0].mxu0
    %v445 = vadd.f32 %v351, %v444
    %446 = vmatprep.mubr.f32.mxu0 0.0
    %447 = vmatmul.mubr.f32.gmra.mrb[0].mxu0 %v273
    %v448 = vpop.f32.mrb[0].mxu0
    %v449 = vadd.f32 %v347, %v448
    %v450 = vpop.f32.mrb[0].mxu0
    %v451 = vadd.f32 %v351, %v450
    %452 = vmatprep.mubr.f32.mxu0 0.0
    %453 = vmatmul.mubr.f32.gmra.mrb[0].mxu0 %v274
    %v454 = vpop.f32.mrb[0].mxu0
    %v455 = vadd.f32 %v347, %v454
    %v456 = vpop.f32.mrb[0].mxu0
    %v457 = vadd.f32 %v351, %v456
    %458 = vmatprep.mubr.f32.mxu0 0.0
    %459 = vmatmul.mubr.f32.gmra.mrb[0].mxu0 %v275
    %v460 = vpop.f32.mrb[0].mxu0
    %v461 = vadd.f32 %v347, %v460
    %v462 = vpop.f32.mrb[0].mxu0
    %v463 = vadd.f32 %v351, %v462
    %464 = vmatprep.mubr.f32.mxu0 0.0
    %465 = vmatmul.mubr.f32.gmra.mrb[0].mxu0 %v276
    %v466 = vpop.f32.mrb[0].mxu0
    %v467 = vadd.f32 %v347, %v466
    %v468 = vpop.f32.mrb[0].mxu0
    %v469 = vadd.f32 %v351, %v468
    %470 = vmatprep.mubr.f32.mxu0 0.0
    %471 = vmatmul.mubr.f32.gmra.mrb[0].mxu0 %v277
    %v472 = vpop.f32.mrb[0].mxu0
    %v473 = vadd.f32 %v347, %v472
    %v474 = vpop.f32.mrb[0].mxu0
    %v475 = vadd.f32 %v351, %v474
    %476 = vdwg.mxu0
    %477 = vmatprep.subr.mxu0 %v281
    %478 = vmatpush1.msra.mxu0 %v280
    %479 = vmatprep.subr.mxu0 %v285
    %480 = vmatpush1.msra.mxu0 %v284
    %481 = vmatprep.subr.mxu0 %v289
    %482 = vmatpush1.msra.mxu0 %v288
    %483 = vmatprep.subr.mxu0 %v293
    %484 = vmatpush1.msra.mxu0 %v292
    %485 = vmatprep.subr.mxu0 %v297
    %486 = vmatpush1.msra.mxu0 %v296
    %487 = vmatprep.subr.mxu0 %v301
    %488 = vmatpush1.msra.mxu0 %v300
    %489 = vmatprep.subr.mxu0 %v305
    %490 = vmatpush1.msra.mxu0 %v304
    %491 = vmatprep.subr.mxu0 %v309
    %492 = vmatpush1.msra.mxu0 %v308
    %493 = vmatprep.subr.mxu0 %v313
    %494 = vmatpush1.msra.mxu0 %v312
    %495 = vmatprep.subr.mxu0 %v317
    %496 = vmatpush1.msra.mxu0 %v316
    %497 = vmatprep.subr.mxu0 %v321
    %498 = vmatpush1.msra.mxu0 %v320
    %499 = vmatprep.subr.mxu0 %v325
    %500 = vmatpush1.msra.mxu0 %v324
    %501 = vmatprep.subr.mxu0 %v329
    %502 = vmatpush1.msra.mxu0 %v328
    %503 = vmatprep.subr.mxu0 %v333
    %504 = vmatpush1.msra.mxu0 %v332
    %505 = vmatprep.subr.mxu0 %v337
    %506 = vmatpush1.msra.mxu0 %v336
    %507 = vmatprep.subr.mxu0 %v341
    %508 = vmatpush1.msra.mxu0 %v340
    %509 = vmatprep.subr.mxu0 0.0
    %510 = vmatpush1.msra.mxu0 0.0
    %511 = vmatprep.subr.mxu0 0.0
    %512 = vmatpush1.msra.mxu0 0.0
    %513 = vmatprep.subr.mxu0 0.0
    %514 = vmatpush1.msra.mxu0 0.0
    %515 = vmatprep.subr.mxu0 0.0
    %516 = vmatpush1.msra.mxu0 0.0
    %517 = vmatprep.subr.mxu0 0.0
    %518 = vmatpush1.msra.mxu0 0.0
    %519 = vmatprep.subr.mxu0 0.0
    %520 = vmatpush1.msra.mxu0 0.0
    %521 = vmatprep.subr.mxu0 0.0
    %522 = vmatpush1.msra.mxu0 0.0
    %523 = vmatprep.subr.mxu0 0.0
    %524 = vmatpush1.msra.mxu0 0.0
    %525 = vmatprep.subr.mxu0 0.0
    %526 = vmatpush1.msra.mxu0 0.0
    %527 = vmatprep.subr.mxu0 0.0
    %528 = vmatpush1.msra.mxu0 0.0
    %529 = vmatprep.subr.mxu0 0.0
    %530 = vmatpush1.msra.mxu0 0.0
    %531 = vmatprep.subr.mxu0 0.0
    %532 = vmatpush1.msra.mxu0 0.0
    %533 = vmatprep.subr.mxu0 0.0
    %534 = vmatpush1.msra.mxu0 0.0
    %535 = vmatprep.subr.mxu0 0.0
    %536 = vmatpush1.msra.mxu0 0.0
    %537 = vmatprep.subr.mxu0 0.0
    %538 = vmatpush1.msra.mxu0 0.0
    %539 = vmatprep.subr.mxu0 0.0
    %540 = vmatpush1.msra.mxu0 0.0
    %541 = vmatprep.mubr.f32.mxu0 0.0
    %542 = vmatmul.mubr.f32.gmra.mrb[0].mxu0 %v270
    %v543 = vpop.f32.mrb[0].mxu0
    %v544 = vadd.f32 %v355, %v543
    %v545 = vpop.f32.mrb[0].mxu0
    %v546 = vadd.f32 %v359, %v545
    %547 = vmatprep.mubr.f32.mxu0 0.0
    %548 = vmatmul.mubr.f32.gmra.mrb[0].mxu0 %v271
    %v549 = vpop.f32.mrb[0].mxu0
    %v550 = vadd.f32 %v355, %v549
    %v551 = vpop.f32.mrb[0].mxu0
    %v552 = vadd.f32 %v359, %v551
    %553 = vmatprep.mubr.f32.mxu0 0.0
    %554 = vmatmul.mubr.f32.gmra.mrb[0].mxu0 %v272
    %v555 = vpop.f32.mrb[0].mxu0
    %v556 = vadd.f32 %v355, %v555
    %v557 = vpop.f32.mrb[0].mxu0
    %v558 = vadd.f32 %v359, %v557
    %559 = vmatprep.mubr.f32.mxu0 0.0
    %560 = vmatmul.mubr.f32.gmra.mrb[0].mxu0 %v273
    %v561 = vpop.f32.mrb[0].mxu0
    %v562 = vadd.f32 %v355, %v561
    %v563 = vpop.f32.mrb[0].mxu0
    %v564 = vadd.f32 %v359, %v563
    %565 = vmatprep.mubr.f32.mxu0 0.0
    %566 = vmatmul.mubr.f32.gmra.mrb[0].mxu0 %v274
    %v567 = vpop.f32.mrb[0].mxu0
    %v568 = vadd.f32 %v355, %v567
    %v569 = vpop.f32.mrb[0].mxu0
    %v570 = vadd.f32 %v359, %v569
    %571 = vmatprep.mubr.f32.mxu0 0.0
    %572 = vmatmul.mubr.f32.gmra.mrb[0].mxu0 %v275
    %v573 = vpop.f32.mrb[0].mxu0
    %v574 = vadd.f32 %v355, %v573
    %v575 = vpop.f32.mrb[0].mxu0
    %v576 = vadd.f32 %v359, %v575
    %577 = vmatprep.mubr.f32.mxu0 0.0
    %578 = vmatmul.mubr.f32.gmra.mrb[0].mxu0 %v276
    %v579 = vpop.f32.mrb[0].mxu0
    %v580 = vadd.f32 %v355, %v579
    %v581 = vpop.f32.mrb[0].mxu0
    %v582 = vadd.f32 %v359, %v581
    %583 = vmatprep.mubr.f32.mxu0 0.0
    %584 = vmatmul.mubr.f32.gmra.mrb[0].mxu0 %v277
    %v585 = vpop.f32.mrb[0].mxu0
    %v586 = vadd.f32 %v355, %v585
    %v587 = vpop.f32.mrb[0].mxu0
    %v588 = vadd.f32 %v359, %v587
    %589 = vdwg.mxu0
    %590 = vst [vmem:[#allocation2] sm:$0xff] %v431
    %591 = vst [vmem:[#allocation2 + $0x8] sm:$0xff] %v433
    %592 = vst [vmem:[#allocation2 + $0x10] sm:$0xff] %v544
    %593 = vst [vmem:[#allocation2 + $0x18] sm:$0xff] %v546
    %594 = vst [vmem:[#allocation2 + $0x20] sm:$0xff] %v437
    %595 = vst [vmem:[#allocation2 + $0x28] sm:$0xff] %v439
    %596 = vst [vmem:[#allocation2 + $0x30] sm:$0xff] %v550
    %597 = vst [vmem:[#allocation2 + $0x38] sm:$0xff] %v552
    %598 = vst [vmem:[#allocation2 + $0x40] sm:$0xff] %v443
    %599 = vst [vmem:[#allocation2 + $0x48] sm:$0xff] %v445
    %600 = vst [vmem:[#allocation2 + $0x50] sm:$0xff] %v556
    %601 = vst [vmem:[#allocation2 + $0x58] sm:$0xff] %v558
    %602 = vst [vmem:[#allocation2 + $0x60] sm:$0xff] %v449
    %603 = vst [vmem:[#allocation2 + $0x68] sm:$0xff] %v451
    %604 = vst [vmem:[#allocation2 + $0x70] sm:$0xff] %v562
    %605 = vst [vmem:[#allocation2 + $0x78] sm:$0xff] %v564
    %606 = vst [vmem:[#allocation2 + $0x80] sm:$0xff] %v455
    %607 = vst [vmem:[#allocation2 + $0x88] sm:$0xff] %v457
    %608 = vst [vmem:[#allocation2 + $0x90] sm:$0xff] %v568
    %609 = vst [vmem:[#allocation2 + $0x98] sm:$0xff] %v570
    %610 = vst [vmem:[#allocation2 + $0xa0] sm:$0xff] %v461
    %611 = vst [vmem:[#allocation2 + $0xa8] sm:$0xff] %v463
    %612 = vst [vmem:[#allocation2 + $0xb0] sm:$0xff] %v574
    %613 = vst [vmem:[#allocation2 + $0xb8] sm:$0xff] %v576
    %614 = vst [vmem:[#allocation2 + $0xc0] sm:$0xff] %v467
    %615 = vst [vmem:[#allocation2 + $0xc8] sm:$0xff] %v469
    %616 = vst [vmem:[#allocation2 + $0xd0] sm:$0xff] %v580
    %617 = vst [vmem:[#allocation2 + $0xd8] sm:$0xff] %v582
    %618 = vst [vmem:[#allocation2 + $0xe0] sm:$0xff] %v473
    %619 = vst [vmem:[#allocation2 + $0xe8] sm:$0xff] %v475
    %620 = vst [vmem:[#allocation2 + $0xf0] sm:$0xff] %v586
    %621 = vst [vmem:[#allocation2 + $0xf8] sm:$0xff] %v588
    %v622 = vld [vmem:[#allocation11] sm:$0xff]
    %v623 = vld [vmem:[#allocation11 + $0x8] sm:$0xff]
    %v624 = vld [vmem:[#allocation11 + $0x10] sm:$0xff]
    %v625 = vld [vmem:[#allocation11 + $0x18] sm:$0xff]
    %v626 = vld [vmem:[#allocation11 + $0x20] sm:$0xff]
    %v627 = vld [vmem:[#allocation11 + $0x28] sm:$0xff]
    %v628 = vld [vmem:[#allocation11 + $0x30] sm:$0xff]
    %v629 = vld [vmem:[#allocation11 + $0x38] sm:$0xff]
    %v630 = vld [vmem:[#allocation11 + $0x40] sm:$0xff]
    %v631 = vld [vmem:[#allocation11 + $0x48] sm:$0xff]
    %v632 = vld [vmem:[#allocation11 + $0x50] sm:$0xff]
    %v633 = vld [vmem:[#allocation11 + $0x58] sm:$0xff]
    %v634 = vld [vmem:[#allocation11 + $0x60] sm:$0xff]
    %v635 = vld [vmem:[#allocation11 + $0x68] sm:$0xff]
    %v636 = vld [vmem:[#allocation11 + $0x70] sm:$0xff]
    %v637 = vld [vmem:[#allocation11 + $0x78] sm:$0xff]
    %v638 = vld [vmem:[#allocation11 + $0x80] sm:$0xff]
    %v639 = vld [vmem:[#allocation11 + $0x88] sm:$0xff]
    %v640 = vld [vmem:[#allocation11 + $0x90] sm:$0xff]
    %v641 = vld [vmem:[#allocation11 + $0x98] sm:$0xff]
    %v642 = vld [vmem:[#allocation11 + $0xa0] sm:$0xff]
    %v643 = vld [vmem:[#allocation11 + $0xa8] sm:$0xff]
    %v644 = vld [vmem:[#allocation11 + $0xb0] sm:$0xff]
    %v645 = vld [vmem:[#allocation11 + $0xb8] sm:$0xff]
    %v646 = vld [vmem:[#allocation11 + $0xc0] sm:$0xff]
    %v647 = vld [vmem:[#allocation11 + $0xc8] sm:$0xff]
    %v648 = vld [vmem:[#allocation11 + $0xd0] sm:$0xff]
    %v649 = vld [vmem:[#allocation11 + $0xd8] sm:$0xff]
    %v650 = vld [vmem:[#allocation11 + $0xe0] sm:$0xff]
    %v651 = vld [vmem:[#allocation11 + $0xe8] sm:$0xff]
    %v652 = vld [vmem:[#allocation11 + $0xf0] sm:$0xff]
    %v653 = vld [vmem:[#allocation11 + $0xf8] sm:$0xff]
    %v654 = vld [vmem:[#allocation11 + $0x100] sm:$0xff]
    %v655 = vld [vmem:[#allocation11 + $0x108] sm:$0xff]
    %v656 = vld [vmem:[#allocation11 + $0x110] sm:$0xff]
    %v657 = vld [vmem:[#allocation11 + $0x118] sm:$0xff]
    %v658 = vld [vmem:[#allocation11 + $0x120] sm:$0xff]
    %v659 = vld [vmem:[#allocation11 + $0x128] sm:$0xff]
    %v660 = vld [vmem:[#allocation11 + $0x130] sm:$0xff]
    %v661 = vld [vmem:[#allocation11 + $0x138] sm:$0xff]
    %v662 = vld [vmem:[#allocation11 + $0x140] sm:$0xff]
    %v663 = vld [vmem:[#allocation11 + $0x148] sm:$0xff]
    %v664 = vld [vmem:[#allocation11 + $0x150] sm:$0xff]
    %v665 = vld [vmem:[#allocation11 + $0x158] sm:$0xff]
    %v666 = vld [vmem:[#allocation11 + $0x160] sm:$0xff]
    %v667 = vld [vmem:[#allocation11 + $0x168] sm:$0xff]
    %v668 = vld [vmem:[#allocation11 + $0x170] sm:$0xff]
    %v669 = vld [vmem:[#allocation11 + $0x178] sm:$0xff]
    %v670 = vld [vmem:[#allocation11 + $0x180] sm:$0xff]
    %v671 = vld [vmem:[#allocation11 + $0x188] sm:$0xff]
    %v672 = vld [vmem:[#allocation11 + $0x190] sm:$0xff]
    %v673 = vld [vmem:[#allocation11 + $0x198] sm:$0xff]
    %v674 = vld [vmem:[#allocation11 + $0x1a0] sm:$0xff]
    %v675 = vld [vmem:[#allocation11 + $0x1a8] sm:$0xff]
    %v676 = vld [vmem:[#allocation11 + $0x1b0] sm:$0xff]
    %v677 = vld [vmem:[#allocation11 + $0x1b8] sm:$0xff]
    %v678 = vld [vmem:[#allocation11 + $0x1c0] sm:$0xff]
    %v679 = vld [vmem:[#allocation11 + $0x1c8] sm:$0xff]
    %v680 = vld [vmem:[#allocation11 + $0x1d0] sm:$0xff]
    %v681 = vld [vmem:[#allocation11 + $0x1d8] sm:$0xff]
    %v682 = vld [vmem:[#allocation11 + $0x1e0] sm:$0xff]
    %v683 = vld [vmem:[#allocation11 + $0x1e8] sm:$0xff]
    %v684 = vld [vmem:[#allocation11 + $0x1f0] sm:$0xff]
    %v685 = vld [vmem:[#allocation11 + $0x1f8] sm:$0xff]
    %v686 = vld [vmem:[#allocation2] sm:$0xff]
    %v687 = vld [vmem:[#allocation2 + $0x8] sm:$0xff]
    %v688 = vld [vmem:[#allocation2 + $0x10] sm:$0xff]
    %v689 = vld [vmem:[#allocation2 + $0x18] sm:$0xff]
    %690 = vmatprep.subr.mxu0 %v623
    %691 = vmatpush1.msra.mxu0 %v622
    %692 = vmatprep.subr.mxu0 %v627
    %693 = vmatpush1.msra.mxu0 %v626
    %694 = vmatprep.subr.mxu0 %v631
    %695 = vmatpush1.msra.mxu0 %v630
    %696 = vmatprep.subr.mxu0 %v635
    %697 = vmatpush1.msra.mxu0 %v634
    %698 = vmatprep.subr.mxu0 %v639
    %699 = vmatpush1.msra.mxu0 %v638
    %700 = vmatprep.subr.mxu0 %v643
    %701 = vmatpush1.msra.mxu0 %v642
    %702 = vmatprep.subr.mxu0 %v647
    %703 = vmatpush1.msra.mxu0 %v646
    %704 = vmatprep.subr.mxu0 %v651
    %705 = vmatpush1.msra.mxu0 %v650
    %706 = vmatprep.subr.mxu0 %v655
    %707 = vmatpush1.msra.mxu0 %v654
    %708 = vmatprep.subr.mxu0 %v659
    %709 = vmatpush1.msra.mxu0 %v658
    %710 = vmatprep.subr.mxu0 %v663
    %711 = vmatpush1.msra.mxu0 %v662
    %712 = vmatprep.subr.mxu0 %v667
    %713 = vmatpush1.msra.mxu0 %v666
    %714 = vmatprep.subr.mxu0 %v671
    %715 = vmatpush1.msra.mxu0 %v670
    %716 = vmatprep.subr.mxu0 %v675
    %717 = vmatpush1.msra.mxu0 %v674
    %718 = vmatprep.subr.mxu0 %v679
    %719 = vmatpush1.msra.mxu0 %v678
    %720 = vmatprep.subr.mxu0 %v683
    %721 = vmatpush1.msra.mxu0 %v682
    %722 = vmatprep.subr.mxu0 0.0
    %723 = vmatpush1.msra.mxu0 0.0
    %724 = vmatprep.subr.mxu0 0.0
    %725 = vmatpush1.msra.mxu0 0.0
    %726 = vmatprep.subr.mxu0 0.0
    %727 = vmatpush1.msra.mxu0 0.0
    %728 = vmatprep.subr.mxu0 0.0
    %729 = vmatpush1.msra.mxu0 0.0
    %730 = vmatprep.subr.mxu0 0.0
    %731 = vmatpush1.msra.mxu0 0.0
    %732 = vmatprep.subr.mxu0 0.0
    %733 = vmatpush1.msra.mxu0 0.0
    %734 = vmatprep.subr.mxu0 0.0
    %735 = vmatpush1.msra.mxu0 0.0
    %736 = vmatprep.subr.mxu0 0.0
    %737 = vmatpush1.msra.mxu0 0.0
    %738 = vmatprep.subr.mxu0 0.0
    %739 = vmatpush1.msra.mxu0 0.0
    %740 = vmatprep.subr.mxu0 0.0
    %741 = vmatpush1.msra.mxu0 0.0
    %742 = vmatprep.subr.mxu0 0.0
    %743 = vmatpush1.msra.mxu0 0.0
    %744 = vmatprep.subr.mxu0 0.0
    %745 = vmatpush1.msra.mxu0 0.0
    %746 = vmatprep.subr.mxu0 0.0
    %747 = vmatpush1.msra.mxu0 0.0
    %748 = vmatprep.subr.mxu0 0.0
    %749 = vmatpush1.msra.mxu0 0.0
    %750 = vmatprep.subr.mxu0 0.0
    %751 = vmatpush1.msra.mxu0 0.0
    %752 = vmatprep.subr.mxu0 0.0
    %753 = vmatpush1.msra.mxu0 0.0
    %754 = vmatprep.mubr.f32.mxu0 0.0
    %755 = vmatmul.mubr.f32.gmra.mrb[0].mxu0 0.0
    %v756 = vpop.f32.mrb[0].mxu0
    %v757 = vadd.f32 0.0, %v756
    %v758 = vpop.f32.mrb[0].mxu0
    %v759 = vadd.f32 0.0, %v758
    %760 = vdwg.mxu0
    %761 = vmatprep.subr.mxu0 %v625
    %762 = vmatpush1.msra.mxu0 %v624
    %763 = vmatprep.subr.mxu0 %v629
    %764 = vmatpush1.msra.mxu0 %v628
    %765 = vmatprep.subr.mxu0 %v633
    %766 = vmatpush1.msra.mxu0 %v632
    %767 = vmatprep.subr.mxu0 %v637
    %768 = vmatpush1.msra.mxu0 %v636
    %769 = vmatprep.subr.mxu0 %v641
    %770 = vmatpush1.msra.mxu0 %v640
    %771 = vmatprep.subr.mxu0 %v645
    %772 = vmatpush1.msra.mxu0 %v644
    %773 = vmatprep.subr.mxu0 %v649
    %774 = vmatpush1.msra.mxu0 %v648
    %775 = vmatprep.subr.mxu0 %v653
    %776 = vmatpush1.msra.mxu0 %v652
    %777 = vmatprep.subr.mxu0 %v657
    %778 = vmatpush1.msra.mxu0 %v656
    %779 = vmatprep.subr.mxu0 %v661
    %780 = vmatpush1.msra.mxu0 %v660
    %781 = vmatprep.subr.mxu0 %v665
    %782 = vmatpush1.msra.mxu0 %v664
    %783 = vmatprep.subr.mxu0 %v669
    %784 = vmatpush1.msra.mxu0 %v668
    %785 = vmatprep.subr.mxu0 %v673
    %786 = vmatpush1.msra.mxu0 %v672
    %787 = vmatprep.subr.mxu0 %v677
    %788 = vmatpush1.msra.mxu0 %v676
    %789 = vmatprep.subr.mxu0 %v681
    %790 = vmatpush1.msra.mxu0 %v680
    %791 = vmatprep.subr.mxu0 %v685
    %792 = vmatpush1.msra.mxu0 %v684
    %793 = vmatprep.subr.mxu0 0.0
    %794 = vmatpush1.msra.mxu0 0.0
    %795 = vmatprep.subr.mxu0 0.0
    %796 = vmatpush1.msra.mxu0 0.0
    %797 = vmatprep.subr.mxu0 0.0
    %798 = vmatpush1.msra.mxu0 0.0
    %799 = vmatprep.subr.mxu0 0.0
    %800 = vmatpush1.msra.mxu0 0.0
    %801 = vmatprep.subr.mxu0 0.0
    %802 = vmatpush1.msra.mxu0 0.0
    %803 = vmatprep.subr.mxu0 0.0
    %804 = vmatpush1.msra.mxu0 0.0
    %805 = vmatprep.subr.mxu0 0.0
    %806 = vmatpush1.msra.mxu0 0.0
    %807 = vmatprep.subr.mxu0 0.0
    %808 = vmatpush1.msra.mxu0 0.0
    %809 = vmatprep.subr.mxu0 0.0
    %810 = vmatpush1.msra.mxu0 0.0
    %811 = vmatprep.subr.mxu0 0.0
    %812 = vmatpush1.msra.mxu0 0.0
    %813 = vmatprep.subr.mxu0 0.0
    %814 = vmatpush1.msra.mxu0 0.0
    %815 = vmatprep.subr.mxu0 0.0
    %816 = vmatpush1.msra.mxu0 0.0
    %817 = vmatprep.subr.mxu0 0.0
    %818 = vmatpush1.msra.mxu0 0.0
    %819 = vmatprep.subr.mxu0 0.0
    %820 = vmatpush1.msra.mxu0 0.0
    %821 = vmatprep.subr.mxu0 0.0
    %822 = vmatpush1.msra.mxu0 0.0
    %823 = vmatprep.subr.mxu0 0.0
    %824 = vmatpush1.msra.mxu0 0.0
    %825 = vmatprep.mubr.f32.mxu0 0.0
    %826 = vmatmul.mubr.f32.gmra.mrb[0].mxu0 0.0
    %v827 = vpop.f32.mrb[0].mxu0
    %v828 = vadd.f32 0.0, %v827
    %v829 = vpop.f32.mrb[0].mxu0
    %v830 = vadd.f32 0.0, %v829
    %831 = vdwg.mxu0
    %v832 = vadd.f32 %v686, %v757
    %v833 = vadd.f32 %v687, %v759
    %v834 = vadd.f32 %v688, %v828
    %v835 = vadd.f32 %v689, %v830
    %v836 = vxor.u32 %v832, 2147483648
    %v837 = vmul.f32 %v836, 1.442695
    %v838 = vpow.pop %v837
    %v839 = vadd.f32 %v838, 1.0
    %v840 = vrcp.pop %v839
    %v841 = vmul.f32 1.0, %v840
    %v842 = vxor.u32 %v833, 2147483648
    %v843 = vmul.f32 %v842, 1.442695
    %v844 = vpow.pop %v843
    %v845 = vadd.f32 %v844, 1.0
    %v846 = vrcp.pop %v845
    %v847 = vmul.f32 1.0, %v846
    %v848 = vtanh.pop %v834
    %v849 = vxor.u32 %v835, 2147483648
    %v850 = vmul.f32 %v849, 1.442695
    %v851 = vpow.pop %v850
    %v852 = vadd.f32 %v851, 1.0
    %v853 = vrcp.pop %v852
    %v854 = vmul.f32 1.0, %v853
    %v855 = vmul.f32 %v847, 0.0
    %v856 = vmul.f32 %v841, %v848
    %v857 = vadd.f32 %v855, %v856
    %v858 = vtanh.pop %v857
    %v859 = vmul.f32 %v854, %v858
    %860 = vst [vmem:[#allocation3] sm:$0xff] %v859
    %s861 = scalar_lea.vmem [#allocation2], 32
    %v862 = vld [vmem:[%s861] sm:$0xff]
    %v863 = vld [vmem:[%s861 + $0x8] sm:$0xff]
    %v864 = vld [vmem:[%s861 + $0x10] sm:$0xff]
    %v865 = vld [vmem:[%s861 + $0x18] sm:$0xff]
    %866 = vmatprep.subr.mxu0 %v623
    %867 = vmatpush1.msra.mxu0 %v622
    %868 = vmatprep.subr.mxu0 %v627
    %869 = vmatpush1.msra.mxu0 %v626
    %870 = vmatprep.subr.mxu0 %v631
    %871 = vmatpush1.msra.mxu0 %v630
    %872 = vmatprep.subr.mxu0 %v635
    %873 = vmatpush1.msra.mxu0 %v634
    %874 = vmatprep.subr.mxu0 %v639
    %875 = vmatpush1.msra.mxu0 %v638
    %876 = vmatprep.subr.mxu0 %v643
    %877 = vmatpush1.msra.mxu0 %v642
    %878 = vmatprep.subr.mxu0 %v647
    %879 = vmatpush1.msra.mxu0 %v646
    %880 = vmatprep.subr.mxu0 %v651
    %881 = vmatpush1.msra.mxu0 %v650
    %882 = vmatprep.subr.mxu0 %v655
    %883 = vmatpush1.msra.mxu0 %v654
    %884 = vmatprep.subr.mxu0 %v659
    %885 = vmatpush1.msra.mxu0 %v658
    %886 = vmatprep.subr.mxu0 %v663
    %887 = vmatpush1.msra.mxu0 %v662
    %888 = vmatprep.subr.mxu0 %v667
    %889 = vmatpush1.msra.mxu0 %v666
    %890 = vmatprep.subr.mxu0 %v671
    %891 = vmatpush1.msra.mxu0 %v670
    %892 = vmatprep.subr.mxu0 %v675
    %893 = vmatpush1.msra.mxu0 %v674
    %894 = vmatprep.subr.mxu0 %v679
    %895 = vmatpush1.msra.mxu0 %v678
    %896 = vmatprep.subr.mxu0 %v683
    %897 = vmatpush1.msra.mxu0 %v682
    %898 = vmatprep.subr.mxu0 0.0
    %899 = vmatpush1.msra.mxu0 0.0
    %900 = vmatprep.subr.mxu0 0.0
    %901 = vmatpush1.msra.mxu0 0.0
    %902 = vmatprep.subr.mxu0 0.0
    %903 = vmatpush1.msra.mxu0 0.0
    %904 = vmatprep.subr.mxu0 0.0
    %905 = vmatpush1.msra.mxu0 0.0
    %906 = vmatprep.subr.mxu0 0.0
    %907 = vmatpush1.msra.mxu0 0.0
    %908 = vmatprep.subr.mxu0 0.0
    %909 = vmatpush1.msra.mxu0 0.0
    %910 = vmatprep.subr.mxu0 0.0
    %911 = vmatpush1.msra.mxu0 0.0
    %912 = vmatprep.subr.mxu0 0.0
    %913 = vmatpush1.msra.mxu0 0.0
    %914 = vmatprep.subr.mxu0 0.0
    %915 = vmatpush1.msra.mxu0 0.0
    %916 = vmatprep.subr.mxu0 0.0
    %917 = vmatpush1.msra.mxu0 0.0
    %918 = vmatprep.subr.mxu0 0.0
    %919 = vmatpush1.msra.mxu0 0.0
    %920 = vmatprep.subr.mxu0 0.0
    %921 = vmatpush1.msra.mxu0 0.0
    %922 = vmatprep.subr.mxu0 0.0
    %923 = vmatpush1.msra.mxu0 0.0
    %924 = vmatprep.subr.mxu0 0.0
    %925 = vmatpush1.msra.mxu0 0.0
    %926 = vmatprep.subr.mxu0 0.0
    %927 = vmatpush1.msra.mxu0 0.0
    %928 = vmatprep.subr.mxu0 0.0
    %929 = vmatpush1.msra.mxu0 0.0
    %930 = vmatprep.mubr.f32.mxu0 0.0
    %931 = vmatmul.mubr.f32.gmra.mrb[0].mxu0 %v859
    %v932 = vpop.f32.mrb[0].mxu0
    %v933 = vadd.f32 0.0, %v932
    %v934 = vpop.f32.mrb[0].mxu0
    %v935 = vadd.f32 0.0, %v934
    %936 = vdwg.mxu0
    %937 = vmatprep.subr.mxu0 %v625
    %938 = vmatpush1.msra.mxu0 %v624
    %939 = vmatprep.subr.mxu0 %v629
    %940 = vmatpush1.msra.mxu0 %v628
    %941 = vmatprep.subr.mxu0 %v633
    %942 = vmatpush1.msra.mxu0 %v632
    %943 = vmatprep.subr.mxu0 %v637
    %944 = vmatpush1.msra.mxu0 %v636
    %945 = vmatprep.subr.mxu0 %v641
    %946 = vmatpush1.msra.mxu0 %v640
    %947 = vmatprep.subr.mxu0 %v645
    %948 = vmatpush1.msra.mxu0 %v644
    %949 = vmatprep.subr.mxu0 %v649
    %950 = vmatpush1.msra.mxu0 %v648
    %951 = vmatprep.subr.mxu0 %v653
    %952 = vmatpush1.msra.mxu0 %v652
    %953 = vmatprep.subr.mxu0 %v657
    %954 = vmatpush1.msra.mxu0 %v656
    %955 = vmatprep.subr.mxu0 %v661
    %956 = vmatpush1.msra.mxu0 %v660
    %957 = vmatprep.subr.mxu0 %v665
    %958 = vmatpush1.msra.mxu0 %v664
    %959 = vmatprep.subr.mxu0 %v669
    %960 = vmatpush1.msra.mxu0 %v668
    %961 = vmatprep.subr.mxu0 %v673
    %962 = vmatpush1.msra.mxu0 %v672
    %963 = vmatprep.subr.mxu0 %v677
    %964 = vmatpush1.msra.mxu0 %v676
    %965 = vmatprep.subr.mxu0 %v681
    %966 = vmatpush1.msra.mxu0 %v680
    %967 = vmatprep.subr.mxu0 %v685
    %968 = vmatpush1.msra.mxu0 %v684
    %969 = vmatprep.subr.mxu0 0.0
    %970 = vmatpush1.msra.mxu0 0.0
    %971 = vmatprep.subr.mxu0 0.0
    %972 = vmatpush1.msra.mxu0 0.0
    %973 = vmatprep.subr.mxu0 0.0
    %974 = vmatpush1.msra.mxu0 0.0
    %975 = vmatprep.subr.mxu0 0.0
    %976 = vmatpush1.msra.mxu0 0.0
    %977 = vmatprep.subr.mxu0 0.0
    %978 = vmatpush1.msra.mxu0 0.0
    %979 = vmatprep.subr.mxu0 0.0
    %980 = vmatpush1.msra.mxu0 0.0
    %981 = vmatprep.subr.mxu0 0.0
    %982 = vmatpush1.msra.mxu0 0.0
    %983 = vmatprep.subr.mxu0 0.0
    %984 = vmatpush1.msra.mxu0 0.0
    %985 = vmatprep.subr.mxu0 0.0
    %986 = vmatpush1.msra.mxu0 0.0
    %987 = vmatprep.subr.mxu0 0.0
    %988 = vmatpush1.msra.mxu0 0.0
    %989 = vmatprep.subr.mxu0 0.0
    %990 = vmatpush1.msra.mxu0 0.0
    %991 = vmatprep.subr.mxu0 0.0
    %992 = vmatpush1.msra.mxu0 0.0
    %993 = vmatprep.subr.mxu0 0.0
    %994 = vmatpush1.msra.mxu0 0.0
    %995 = vmatprep.subr.mxu0 0.0
    %996 = vmatpush1.msra.mxu0 0.0
    %997 = vmatprep.subr.mxu0 0.0
    %998 = vmatpush1.msra.mxu0 0.0
    %999 = vmatprep.subr.mxu0 0.0
    %1000 = vmatpush1.msra.mxu0 0.0
    %1001 = vmatprep.mubr.f32.mxu0 0.0
    %1002 = vmatmul.mubr.f32.gmra.mrb[0].mxu0 %v859
    %v1003 = vpop.f32.mrb[0].mxu0
    %v1004 = vadd.f32 0.0, %v1003
    %v1005 = vpop.f32.mrb[0].mxu0
    %v1006 = vadd.f32 0.0, %v1005
    %1007 = vdwg.mxu0
    %v1008 = vadd.f32 %v862, %v933
    %v1009 = vadd.f32 %v863, %v935
    %v1010 = vadd.f32 %v864, %v1004
    %v1011 = vadd.f32 %v865, %v1006
    %v1012 = vxor.u32 %v1008, 2147483648
    %v1013 = vmul.f32 %v1012, 1.442695
    %v1014 = vpow.pop %v1013
    %v1015 = vadd.f32 %v1014, 1.0
    %v1016 = vrcp.pop %v1015
    %v1017 = vmul.f32 1.0, %v1016
    %v1018 = vxor.u32 %v1009, 2147483648
    %v1019 = vmul.f32 %v1018, 1.442695
    %v1020 = vpow.pop %v1019
    %v1021 = vadd.f32 %v1020, 1.0
    %v1022 = vrcp.pop %v1021
    %v1023 = vmul.f32 1.0, %v1022
    %v1024 = vtanh.pop %v1010
    %v1025 = vxor.u32 %v1011, 2147483648
    %v1026 = vmul.f32 %v1025, 1.442695
    %v1027 = vpow.pop %v1026
    %v1028 = vadd.f32 %v1027, 1.0
    %v1029 = vrcp.pop %v1028
    %v1030 = vmul.f32 1.0, %v1029
    %v1031 = vmul.f32 %v1023, %v857
    %v1032 = vmul.f32 %v1017, %v1024
    %v1033 = vadd.f32 %v1031, %v1032
    %v1034 = vtanh.pop %v1033
    %v1035 = vmul.f32 %v1030, %v1034
    %s1036 = scalar_lea.vmem [#allocation3], 8
    %1037 = vst [vmem:[%s1036] sm:$0xff] %v1035
    %s1038 = scalar_lea.vmem [#allocation2], 64
    %v1039 = vld [vmem:[%s1038] sm:$0xff]
    %v1040 = vld [vmem:[%s1038 + $0x8] sm:$0xff]
    %v1041 = vld [vmem:[%s1038 + $0x10] sm:$0xff]
    %v1042 = vld [vmem:[%s1038 + $0x18] sm:$0xff]
    %1043 = vmatprep.subr.mxu0 %v623
    %1044 = vmatpush1.msra.mxu0 %v622
    %1045 = vmatprep.subr.mxu0 %v627
    %1046 = vmatpush1.msra.mxu0 %v626
    %1047 = vmatprep.subr.mxu0 %v631
    %1048 = vmatpush1.msra.mxu0 %v630
    %1049 = vmatprep.subr.mxu0 %v635
    %1050 = vmatpush1.msra.mxu0 %v634
    %1051 = vmatprep.subr.mxu0 %v639
    %1052 = vmatpush1.msra.mxu0 %v638
    %1053 = vmatprep.subr.mxu0 %v643
    %1054 = vmatpush1.msra.mxu0 %v642
    %1055 = vmatprep.subr.mxu0 %v647
    %1056 = vmatpush1.msra.mxu0 %v646
    %1057 = vmatprep.subr.mxu0 %v651
    %1058 = vmatpush1.msra.mxu0 %v650
    %1059 = vmatprep.subr.mxu0 %v655
    %1060 = vmatpush1.msra.mxu0 %v654
    %1061 = vmatprep.subr.mxu0 %v659
    %1062 = vmatpush1.msra.mxu0 %v658
    %1063 = vmatprep.subr.mxu0 %v663
    %1064 = vmatpush1.msra.mxu0 %v662
    %1065 = vmatprep.subr.mxu0 %v667
    %1066 = vmatpush1.msra.mxu0 %v666
    %1067 = vmatprep.subr.mxu0 %v671
    %1068 = vmatpush1.msra.mxu0 %v670
    %1069 = vmatprep.subr.mxu0 %v675
    %1070 = vmatpush1.msra.mxu0 %v674
    %1071 = vmatprep.subr.mxu0 %v679
    %1072 = vmatpush1.msra.mxu0 %v678
    %1073 = vmatprep.subr.mxu0 %v683
    %1074 = vmatpush1.msra.mxu0 %v682
    %1075 = vmatprep.subr.mxu0 0.0
    %1076 = vmatpush1.msra.mxu0 0.0
    %1077 = vmatprep.subr.mxu0 0.0
    %1078 = vmatpush1.msra.mxu0 0.0
    %1079 = vmatprep.subr.mxu0 0.0
    %1080 = vmatpush1.msra.mxu0 0.0
    %1081 = vmatprep.subr.mxu0 0.0
    %1082 = vmatpush1.msra.mxu0 0.0
    %1083 = vmatprep.subr.mxu0 0.0
    %1084 = vmatpush1.msra.mxu0 0.0
    %1085 = vmatprep.subr.mxu0 0.0
    %1086 = vmatpush1.msra.mxu0 0.0
    %1087 = vmatprep.subr.mxu0 0.0
    %1088 = vmatpush1.msra.mxu0 0.0
    %1089 = vmatprep.subr.mxu0 0.0
    %1090 = vmatpush1.msra.mxu0 0.0
    %1091 = vmatprep.subr.mxu0 0.0
    %1092 = vmatpush1.msra.mxu0 0.0
    %1093 = vmatprep.subr.mxu0 0.0
    %1094 = vmatpush1.msra.mxu0 0.0
    %1095 = vmatprep.subr.mxu0 0.0
    %1096 = vmatpush1.msra.mxu0 0.0
    %1097 = vmatprep.subr.mxu0 0.0
    %1098 = vmatpush1.msra.mxu0 0.0
    %1099 = vmatprep.subr.mxu0 0.0
    %1100 = vmatpush1.msra.mxu0 0.0
    %1101 = vmatprep.subr.mxu0 0.0
    %1102 = vmatpush1.msra.mxu0 0.0
    %1103 = vmatprep.subr.mxu0 0.0
    %1104 = vmatpush1.msra.mxu0 0.0
    %1105 = vmatprep.subr.mxu0 0.0
    %1106 = vmatpush1.msra.mxu0 0.0
    %1107 = vmatprep.mubr.f32.mxu0 0.0
    %1108 = vmatmul.mubr.f32.gmra.mrb[0].mxu0 %v1035
    %v1109 = vpop.f32.mrb[0].mxu0
    %v1110 = vadd.f32 0.0, %v1109
    %v1111 = vpop.f32.mrb[0].mxu0
    %v1112 = vadd.f32 0.0, %v1111
    %1113 = vdwg.mxu0
    %1114 = vmatprep.subr.mxu0 %v625
    %1115 = vmatpush1.msra.mxu0 %v624
    %1116 = vmatprep.subr.mxu0 %v629
    %1117 = vmatpush1.msra.mxu0 %v628
    %1118 = vmatprep.subr.mxu0 %v633
    %1119 = vmatpush1.msra.mxu0 %v632
    %1120 = vmatprep.subr.mxu0 %v637
    %1121 = vmatpush1.msra.mxu0 %v636
    %1122 = vmatprep.subr.mxu0 %v641
    %1123 = vmatpush1.msra.mxu0 %v640
    %1124 = vmatprep.subr.mxu0 %v645
    %1125 = vmatpush1.msra.mxu0 %v644
    %1126 = vmatprep.subr.mxu0 %v649
    %1127 = vmatpush1.msra.mxu0 %v648
    %1128 = vmatprep.subr.mxu0 %v653
    %1129 = vmatpush1.msra.mxu0 %v652
    %1130 = vmatprep.subr.mxu0 %v657
    %1131 = vmatpush1.msra.mxu0 %v656
    %1132 = vmatprep.subr.mxu0 %v661
    %1133 = vmatpush1.msra.mxu0 %v660
    %1134 = vmatprep.subr.mxu0 %v665
    %1135 = vmatpush1.msra.mxu0 %v664
    %1136 = vmatprep.subr.mxu0 %v669
    %1137 = vmatpush1.msra.mxu0 %v668
    %1138 = vmatprep.subr.mxu0 %v673
    %1139 = vmatpush1.msra.mxu0 %v672
    %1140 = vmatprep.subr.mxu0 %v677
    %1141 = vmatpush1.msra.mxu0 %v676
    %1142 = vmatprep.subr.mxu0 %v681
    %1143 = vmatpush1.msra.mxu0 %v680
    %1144 = vmatprep.subr.mxu0 %v685
    %1145 = vmatpush1.msra.mxu0 %v684
    %1146 = vmatprep.subr.mxu0 0.0
    %1147 = vmatpush1.msra.mxu0 0.0
    %1148 = vmatprep.subr.mxu0 0.0
    %1149 = vmatpush1.msra.mxu0 0.0
    %1150 = vmatprep.subr.mxu0 0.0
    %1151 = vmatpush1.msra.mxu0 0.0
    %1152 = vmatprep.subr.mxu0 0.0
    %1153 = vmatpush1.msra.mxu0 0.0
    %1154 = vmatprep.subr.mxu0 0.0
    %1155 = vmatpush1.msra.mxu0 0.0
    %1156 = vmatprep.subr.mxu0 0.0
    %1157 = vmatpush1.msra.mxu0 0.0
    %1158 = vmatprep.subr.mxu0 0.0
    %1159 = vmatpush1.msra.mxu0 0.0
    %1160 = vmatprep.subr.mxu0 0.0
    %1161 = vmatpush1.msra.mxu0 0.0
    %1162 = vmatprep.subr.mxu0 0.0
    %1163 = vmatpush1.msra.mxu0 0.0
    %1164 = vmatprep.subr.mxu0 0.0
    %1165 = vmatpush1.msra.mxu0 0.0
    %1166 = vmatprep.subr.mxu0 0.0
    %1167 = vmatpush1.msra.mxu0 0.0
    %1168 = vmatprep.subr.mxu0 0.0
    %1169 = vmatpush1.msra.mxu0 0.0
    %1170 = vmatprep.subr.mxu0 0.0
    %1171 = vmatpush1.msra.mxu0 0.0
    %1172 = vmatprep.subr.mxu0 0.0
    %1173 = vmatpush1.msra.mxu0 0.0
    %1174 = vmatprep.subr.mxu0 0.0
    %1175 = vmatpush1.msra.mxu0 0.0
    %1176 = vmatprep.subr.mxu0 0.0
    %1177 = vmatpush1.msra.mxu0 0.0
    %1178 = vmatprep.mubr.f32.mxu0 0.0
    %1179 = vmatmul.mubr.f32.gmra.mrb[0].mxu0 %v1035
    %v1180 = vpop.f32.mrb[0].mxu0
    %v1181 = vadd.f32 0.0, %v1180
    %v1182 = vpop.f32.mrb[0].mxu0
    %v1183 = vadd.f32 0.0, %v1182
    %1184 = vdwg.mxu0
    %v1185 = vadd.f32 %v1039, %v1110
    %v1186 = vadd.f32 %v1040, %v1112
    %v1187 = vadd.f32 %v1041, %v1181
    %v1188 = vadd.f32 %v1042, %v1183
    %v1189 = vxor.u32 %v1185, 2147483648
    %v1190 = vmul.f32 %v1189, 1.442695
    %v1191 = vpow.pop %v1190
    %v1192 = vadd.f32 %v1191, 1.0
    %v1193 = vrcp.pop %v1192
    %v1194 = vmul.f32 1.0, %v1193
    %v1195 = vxor.u32 %v1186, 2147483648
    %v1196 = vmul.f32 %v1195, 1.442695
    %v1197 = vpow.pop %v1196
    %v1198 = vadd.f32 %v1197, 1.0
    %v1199 = vrcp.pop %v1198
    %v1200 = vmul.f32 1.0, %v1199
    %v1201 = vtanh.pop %v1187
    %v1202 = vxor.u32 %v1188, 2147483648
    %v1203 = vmul.f32 %v1202, 1.442695
    %v1204 = vpow.pop %v1203
    %v1205 = vadd.f32 %v1204, 1.0
    %v1206 = vrcp.pop %v1205
    %v1207 = vmul.f32 1.0, %v1206
    %v1208 = vmul.f32 %v1200, %v1033
    %v1209 = vmul.f32 %v1194, %v1201
    %v1210 = vadd.f32 %v1208, %v1209
    %v1211 = vtanh.pop %v1210
    %v1212 = vmul.f32 %v1207, %v1211
    %s1213 = scalar_lea.vmem [#allocation3], 16
    %1214 = vst [vmem:[%s1213] sm:$0xff] %v1212
    %s1215 = scalar_lea.vmem [#allocation2], 96
    %v1216 = vld [vmem:[%s1215] sm:$0xff]
    %v1217 = vld [vmem:[%s1215 + $0x8] sm:$0xff]
    %v1218 = vld [vmem:[%s1215 + $0x10] sm:$0xff]
    %v1219 = vld [vmem:[%s1215 + $0x18] sm:$0xff]
    %1220 = vmatprep.subr.mxu0 %v623
    %1221 = vmatpush1.msra.mxu0 %v622
    %1222 = vmatprep.subr.mxu0 %v627
    %1223 = vmatpush1.msra.mxu0 %v626
    %1224 = vmatprep.subr.mxu0 %v631
    %1225 = vmatpush1.msra.mxu0 %v630
    %1226 = vmatprep.subr.mxu0 %v635
    %1227 = vmatpush1.msra.mxu0 %v634
    %1228 = vmatprep.subr.mxu0 %v639
    %1229 = vmatpush1.msra.mxu0 %v638
    %1230 = vmatprep.subr.mxu0 %v643
    %1231 = vmatpush1.msra.mxu0 %v642
    %1232 = vmatprep.subr.mxu0 %v647
    %1233 = vmatpush1.msra.mxu0 %v646
    %1234 = vmatprep.subr.mxu0 %v651
    %1235 = vmatpush1.msra.mxu0 %v650
    %1236 = vmatprep.subr.mxu0 %v655
    %1237 = vmatpush1.msra.mxu0 %v654
    %1238 = vmatprep.subr.mxu0 %v659
    %1239 = vmatpush1.msra.mxu0 %v658
    %1240 = vmatprep.subr.mxu0 %v663
    %1241 = vmatpush1.msra.mxu0 %v662
    %1242 = vmatprep.subr.mxu0 %v667
    %1243 = vmatpush1.msra.mxu0 %v666
    %1244 = vmatprep.subr.mxu0 %v671
    %1245 = vmatpush1.msra.mxu0 %v670
    %1246 = vmatprep.subr.mxu0 %v675
    %1247 = vmatpush1.msra.mxu0 %v674
    %1248 = vmatprep.subr.mxu0 %v679
    %1249 = vmatpush1.msra.mxu0 %v678
    %1250 = vmatprep.subr.mxu0 %v683
    %1251 = vmatpush1.msra.mxu0 %v682
    %1252 = vmatprep.subr.mxu0 0.0
    %1253 = vmatpush1.msra.mxu0 0.0
    %1254 = vmatprep.subr.mxu0 0.0
    %1255 = vmatpush1.msra.mxu0 0.0
    %1256 = vmatprep.subr.mxu0 0.0
    %1257 = vmatpush1.msra.mxu0 0.0
    %1258 = vmatprep.subr.mxu0 0.0
    %1259 = vmatpush1.msra.mxu0 0.0
    %1260 = vmatprep.subr.mxu0 0.0
    %1261 = vmatpush1.msra.mxu0 0.0
    %1262 = vmatprep.subr.mxu0 0.0
    %1263 = vmatpush1.msra.mxu0 0.0
    %1264 = vmatprep.subr.mxu0 0.0
    %1265 = vmatpush1.msra.mxu0 0.0
    %1266 = vmatprep.subr.mxu0 0.0
    %1267 = vmatpush1.msra.mxu0 0.0
    %1268 = vmatprep.subr.mxu0 0.0
    %1269 = vmatpush1.msra.mxu0 0.0
    %1270 = vmatprep.subr.mxu0 0.0
    %1271 = vmatpush1.msra.mxu0 0.0
    %1272 = vmatprep.subr.mxu0 0.0
    %1273 = vmatpush1.msra.mxu0 0.0
    %1274 = vmatprep.subr.mxu0 0.0
    %1275 = vmatpush1.msra.mxu0 0.0
    %1276 = vmatprep.subr.mxu0 0.0
    %1277 = vmatpush1.msra.mxu0 0.0
    %1278 = vmatprep.subr.mxu0 0.0
    %1279 = vmatpush1.msra.mxu0 0.0
    %1280 = vmatprep.subr.mxu0 0.0
    %1281 = vmatpush1.msra.mxu0 0.0
    %1282 = vmatprep.subr.mxu0 0.0
    %1283 = vmatpush1.msra.mxu0 0.0
    %1284 = vmatprep.mubr.f32.mxu0 0.0
    %1285 = vmatmul.mubr.f32.gmra.mrb[0].mxu0 %v1212
    %v1286 = vpop.f32.mrb[0].mxu0
    %v1287 = vadd.f32 0.0, %v1286
    %v1288 = vpop.f32.mrb[0].mxu0
    %v1289 = vadd.f32 0.0, %v1288
    %1290 = vdwg.mxu0
    %1291 = vmatprep.subr.mxu0 %v625
    %1292 = vmatpush1.msra.mxu0 %v624
    %1293 = vmatprep.subr.mxu0 %v629
    %1294 = vmatpush1.msra.mxu0 %v628
    %1295 = vmatprep.subr.mxu0 %v633
    %1296 = vmatpush1.msra.mxu0 %v632
    %1297 = vmatprep.subr.mxu0 %v637
    %1298 = vmatpush1.msra.mxu0 %v636
    %1299 = vmatprep.subr.mxu0 %v641
    %1300 = vmatpush1.msra.mxu0 %v640
    %1301 = vmatprep.subr.mxu0 %v645
    %1302 = vmatpush1.msra.mxu0 %v644
    %1303 = vmatprep.subr.mxu0 %v649
    %1304 = vmatpush1.msra.mxu0 %v648
    %1305 = vmatprep.subr.mxu0 %v653
    %1306 = vmatpush1.msra.mxu0 %v652
    %1307 = vmatprep.subr.mxu0 %v657
    %1308 = vmatpush1.msra.mxu0 %v656
    %1309 = vmatprep.subr.mxu0 %v661
    %1310 = vmatpush1.msra.mxu0 %v660
    %1311 = vmatprep.subr.mxu0 %v665
    %1312 = vmatpush1.msra.mxu0 %v664
    %1313 = vmatprep.subr.mxu0 %v669
    %1314 = vmatpush1.msra.mxu0 %v668
    %1315 = vmatprep.subr.mxu0 %v673
    %1316 = vmatpush1.msra.mxu0 %v672
    %1317 = vmatprep.subr.mxu0 %v677
    %1318 = vmatpush1.msra.mxu0 %v676
    %1319 = vmatprep.subr.mxu0 %v681
    %1320 = vmatpush1.msra.mxu0 %v680
    %1321 = vmatprep.subr.mxu0 %v685
    %1322 = vmatpush1.msra.mxu0 %v684
    %1323 = vmatprep.subr.mxu0 0.0
    %1324 = vmatpush1.msra.mxu0 0.0
    %1325 = vmatprep.subr.mxu0 0.0
    %1326 = vmatpush1.msra.mxu0 0.0
    %1327 = vmatprep.subr.mxu0 0.0
    %1328 = vmatpush1.msra.mxu0 0.0
    %1329 = vmatprep.subr.mxu0 0.0
    %1330 = vmatpush1.msra.mxu0 0.0
    %1331 = vmatprep.subr.mxu0 0.0
    %1332 = vmatpush1.msra.mxu0 0.0
    %1333 = vmatprep.subr.mxu0 0.0
    %1334 = vmatpush1.msra.mxu0 0.0
    %1335 = vmatprep.subr.mxu0 0.0
    %1336 = vmatpush1.msra.mxu0 0.0
    %1337 = vmatprep.subr.mxu0 0.0
    %1338 = vmatpush1.msra.mxu0 0.0
    %1339 = vmatprep.subr.mxu0 0.0
    %1340 = vmatpush1.msra.mxu0 0.0
    %1341 = vmatprep.subr.mxu0 0.0
    %1342 = vmatpush1.msra.mxu0 0.0
    %1343 = vmatprep.subr.mxu0 0.0
    %1344 = vmatpush1.msra.mxu0 0.0
    %1345 = vmatprep.subr.mxu0 0.0
    %1346 = vmatpush1.msra.mxu0 0.0
    %1347 = vmatprep.subr.mxu0 0.0
    %1348 = vmatpush1.msra.mxu0 0.0
    %1349 = vmatprep.subr.mxu0 0.0
    %1350 = vmatpush1.msra.mxu0 0.0
    %1351 = vmatprep.subr.mxu0 0.0
    %1352 = vmatpush1.msra.mxu0 0.0
    %1353 = vmatprep.subr.mxu0 0.0
    %1354 = vmatpush1.msra.mxu0 0.0
    %1355 = vmatprep.mubr.f32.mxu0 0.0
    %1356 = vmatmul.mubr.f32.gmra.mrb[0].mxu0 %v1212
    %v1357 = vpop.f32.mrb[0].mxu0
    %v1358 = vadd.f32 0.0, %v1357
    %v1359 = vpop.f32.mrb[0].mxu0
    %v1360 = vadd.f32 0.0, %v1359
    %1361 = vdwg.mxu0
    %v1362 = vadd.f32 %v1216, %v1287
    %v1363 = vadd.f32 %v1217, %v1289
    %v1364 = vadd.f32 %v1218, %v1358
    %v1365 = vadd.f32 %v1219, %v1360
    %v1366 = vxor.u32 %v1362, 2147483648
    %v1367 = vmul.f32 %v1366, 1.442695
    %v1368 = vpow.pop %v1367
    %v1369 = vadd.f32 %v1368, 1.0
    %v1370 = vrcp.pop %v1369
    %v1371 = vmul.f32 1.0, %v1370
    %v1372 = vxor.u32 %v1363, 2147483648
    %v1373 = vmul.f32 %v1372, 1.442695
    %v1374 = vpow.pop %v1373
    %v1375 = vadd.f32 %v1374, 1.0
    %v1376 = vrcp.pop %v1375
    %v1377 = vmul.f32 1.0, %v1376
    %v1378 = vtanh.pop %v1364
    %v1379 = vxor.u32 %v1365, 2147483648
    %v1380 = vmul.f32 %v1379, 1.442695
    %v1381 = vpow.pop %v1380
    %v1382 = vadd.f32 %v1381, 1.0
    %v1383 = vrcp.pop %v1382
    %v1384 = vmul.f32 1.0, %v1383
    %v1385 = vmul.f32 %v1377, %v1210
    %v1386 = vmul.f32 %v1371, %v1378
    %v1387 = vadd.f32 %v1385, %v1386
    %v1388 = vtanh.pop %v1387
    %v1389 = vmul.f32 %v1384, %v1388
    %s1390 = scalar_lea.vmem [#allocation3], 24
    %1391 = vst [vmem:[%s1390] sm:$0xff] %v1389
    %s1392 = scalar_lea.vmem [#allocation2], 128
    %v1393 = vld [vmem:[%s1392] sm:$0xff]
    %v1394 = vld [vmem:[%s1392 + $0x8] sm:$0xff]
    %v1395 = vld [vmem:[%s1392 + $0x10] sm:$0xff]
    %v1396 = vld [vmem:[%s1392 + $0x18] sm:$0xff]
    %1397 = vmatprep.subr.mxu0 %v623
    %1398 = vmatpush1.msra.mxu0 %v622
    %1399 = vmatprep.subr.mxu0 %v627
    %1400 = vmatpush1.msra.mxu0 %v626
    %1401 = vmatprep.subr.mxu0 %v631
    %1402 = vmatpush1.msra.mxu0 %v630
    %1403 = vmatprep.subr.mxu0 %v635
    %1404 = vmatpush1.msra.mxu0 %v634
    %1405 = vmatprep.subr.mxu0 %v639
    %1406 = vmatpush1.msra.mxu0 %v638
    %1407 = vmatprep.subr.mxu0 %v643
    %1408 = vmatpush1.msra.mxu0 %v642
    %1409 = vmatprep.subr.mxu0 %v647
    %1410 = vmatpush1.msra.mxu0 %v646
    %1411 = vmatprep.subr.mxu0 %v651
    %1412 = vmatpush1.msra.mxu0 %v650
    %1413 = vmatprep.subr.mxu0 %v655
    %1414 = vmatpush1.msra.mxu0 %v654
    %1415 = vmatprep.subr.mxu0 %v659
    %1416 = vmatpush1.msra.mxu0 %v658
    %1417 = vmatprep.subr.mxu0 %v663
    %1418 = vmatpush1.msra.mxu0 %v662
    %1419 = vmatprep.subr.mxu0 %v667
    %1420 = vmatpush1.msra.mxu0 %v666
    %1421 = vmatprep.subr.mxu0 %v671
    %1422 = vmatpush1.msra.mxu0 %v670
    %1423 = vmatprep.subr.mxu0 %v675
    %1424 = vmatpush1.msra.mxu0 %v674
    %1425 = vmatprep.subr.mxu0 %v679
    %1426 = vmatpush1.msra.mxu0 %v678
    %1427 = vmatprep.subr.mxu0 %v683
    %1428 = vmatpush1.msra.mxu0 %v682
    %1429 = vmatprep.subr.mxu0 0.0
    %1430 = vmatpush1.msra.mxu0 0.0
    %1431 = vmatprep.subr.mxu0 0.0
    %1432 = vmatpush1.msra.mxu0 0.0
    %1433 = vmatprep.subr.mxu0 0.0
    %1434 = vmatpush1.msra.mxu0 0.0
    %1435 = vmatprep.subr.mxu0 0.0
    %1436 = vmatpush1.msra.mxu0 0.0
    %1437 = vmatprep.subr.mxu0 0.0
    %1438 = vmatpush1.msra.mxu0 0.0
    %1439 = vmatprep.subr.mxu0 0.0
    %1440 = vmatpush1.msra.mxu0 0.0
    %1441 = vmatprep.subr.mxu0 0.0
    %1442 = vmatpush1.msra.mxu0 0.0
    %1443 = vmatprep.subr.mxu0 0.0
    %1444 = vmatpush1.msra.mxu0 0.0
    %1445 = vmatprep.subr.mxu0 0.0
    %1446 = vmatpush1.msra.mxu0 0.0
    %1447 = vmatprep.subr.mxu0 0.0
    %1448 = vmatpush1.msra.mxu0 0.0
    %1449 = vmatprep.subr.mxu0 0.0
    %1450 = vmatpush1.msra.mxu0 0.0
    %1451 = vmatprep.subr.mxu0 0.0
    %1452 = vmatpush1.msra.mxu0 0.0
    %1453 = vmatprep.subr.mxu0 0.0
    %1454 = vmatpush1.msra.mxu0 0.0
    %1455 = vmatprep.subr.mxu0 0.0
    %1456 = vmatpush1.msra.mxu0 0.0
    %1457 = vmatprep.subr.mxu0 0.0
    %1458 = vmatpush1.msra.mxu0 0.0
    %1459 = vmatprep.subr.mxu0 0.0
    %1460 = vmatpush1.msra.mxu0 0.0
    %1461 = vmatprep.mubr.f32.mxu0 0.0
    %1462 = vmatmul.mubr.f32.gmra.mrb[0].mxu0 %v1389
    %v1463 = vpop.f32.mrb[0].mxu0
    %v1464 = vadd.f32 0.0, %v1463
    %v1465 = vpop.f32.mrb[0].mxu0
    %v1466 = vadd.f32 0.0, %v1465
    %1467 = vdwg.mxu0
    %1468 = vmatprep.subr.mxu0 %v625
    %1469 = vmatpush1.msra.mxu0 %v624
    %1470 = vmatprep.subr.mxu0 %v629
    %1471 = vmatpush1.msra.mxu0 %v628
    %1472 = vmatprep.subr.mxu0 %v633
    %1473 = vmatpush1.msra.mxu0 %v632
    %1474 = vmatprep.subr.mxu0 %v637
    %1475 = vmatpush1.msra.mxu0 %v636
    %1476 = vmatprep.subr.mxu0 %v641
    %1477 = vmatpush1.msra.mxu0 %v640
    %1478 = vmatprep.subr.mxu0 %v645
    %1479 = vmatpush1.msra.mxu0 %v644
    %1480 = vmatprep.subr.mxu0 %v649
    %1481 = vmatpush1.msra.mxu0 %v648
    %1482 = vmatprep.subr.mxu0 %v653
    %1483 = vmatpush1.msra.mxu0 %v652
    %1484 = vmatprep.subr.mxu0 %v657
    %1485 = vmatpush1.msra.mxu0 %v656
    %1486 = vmatprep.subr.mxu0 %v661
    %1487 = vmatpush1.msra.mxu0 %v660
    %1488 = vmatprep.subr.mxu0 %v665
    %1489 = vmatpush1.msra.mxu0 %v664
    %1490 = vmatprep.subr.mxu0 %v669
    %1491 = vmatpush1.msra.mxu0 %v668
    %1492 = vmatprep.subr.mxu0 %v673
    %1493 = vmatpush1.msra.mxu0 %v672
    %1494 = vmatprep.subr.mxu0 %v677
    %1495 = vmatpush1.msra.mxu0 %v676
    %1496 = vmatprep.subr.mxu0 %v681
    %1497 = vmatpush1.msra.mxu0 %v680
    %1498 = vmatprep.subr.mxu0 %v685
    %1499 = vmatpush1.msra.mxu0 %v684
    %1500 = vmatprep.subr.mxu0 0.0
    %1501 = vmatpush1.msra.mxu0 0.0
    %1502 = vmatprep.subr.mxu0 0.0
    %1503 = vmatpush1.msra.mxu0 0.0
    %1504 = vmatprep.subr.mxu0 0.0
    %1505 = vmatpush1.msra.mxu0 0.0
    %1506 = vmatprep.subr.mxu0 0.0
    %1507 = vmatpush1.msra.mxu0 0.0
    %1508 = vmatprep.subr.mxu0 0.0
    %1509 = vmatpush1.msra.mxu0 0.0
    %1510 = vmatprep.subr.mxu0 0.0
    %1511 = vmatpush1.msra.mxu0 0.0
    %1512 = vmatprep.subr.mxu0 0.0
    %1513 = vmatpush1.msra.mxu0 0.0
    %1514 = vmatprep.subr.mxu0 0.0
    %1515 = vmatpush1.msra.mxu0 0.0
    %1516 = vmatprep.subr.mxu0 0.0
    %1517 = vmatpush1.msra.mxu0 0.0
    %1518 = vmatprep.subr.mxu0 0.0
    %1519 = vmatpush1.msra.mxu0 0.0
    %1520 = vmatprep.subr.mxu0 0.0
    %1521 = vmatpush1.msra.mxu0 0.0
    %1522 = vmatprep.subr.mxu0 0.0
    %1523 = vmatpush1.msra.mxu0 0.0
    %1524 = vmatprep.subr.mxu0 0.0
    %1525 = vmatpush1.msra.mxu0 0.0
    %1526 = vmatprep.subr.mxu0 0.0
    %1527 = vmatpush1.msra.mxu0 0.0
    %1528 = vmatprep.subr.mxu0 0.0
    %1529 = vmatpush1.msra.mxu0 0.0
    %1530 = vmatprep.subr.mxu0 0.0
    %1531 = vmatpush1.msra.mxu0 0.0
    %1532 = vmatprep.mubr.f32.mxu0 0.0
    %1533 = vmatmul.mubr.f32.gmra.mrb[0].mxu0 %v1389
    %v1534 = vpop.f32.mrb[0].mxu0
    %v1535 = vadd.f32 0.0, %v1534
    %v1536 = vpop.f32.mrb[0].mxu0
    %v1537 = vadd.f32 0.0, %v1536
    %1538 = vdwg.mxu0
    %v1539 = vadd.f32 %v1393, %v1464
    %v1540 = vadd.f32 %v1394, %v1466
    %v1541 = vadd.f32 %v1395, %v1535
    %v1542 = vadd.f32 %v1396, %v1537
    %v1543 = vxor.u32 %v1539, 2147483648
    %v1544 = vmul.f32 %v1543, 1.442695
    %v1545 = vpow.pop %v1544
    %v1546 = vadd.f32 %v1545, 1.0
    %v1547 = vrcp.pop %v1546
    %v1548 = vmul.f32 1.0, %v1547
    %v1549 = vxor.u32 %v1540, 2147483648
    %v1550 = vmul.f32 %v1549, 1.442695
    %v1551 = vpow.pop %v1550
    %v1552 = vadd.f32 %v1551, 1.0
    %v1553 = vrcp.pop %v1552
    %v1554 = vmul.f32 1.0, %v1553
    %v1555 = vtanh.pop %v1541
    %v1556 = vxor.u32 %v1542, 2147483648
    %v1557 = vmul.f32 %v1556, 1.442695
    %v1558 = vpow.pop %v1557
    %v1559 = vadd.f32 %v1558, 1.0
    %v1560 = vrcp.pop %v1559
    %v1561 = vmul.f32 1.0, %v1560
    %v1562 = vmul.f32 %v1554, %v1387
    %v1563 = vmul.f32 %v1548, %v1555
    %v1564 = vadd.f32 %v1562, %v1563
    %v1565 = vtanh.pop %v1564
    %v1566 = vmul.f32 %v1561, %v1565
    %s1567 = scalar_lea.vmem [#allocation3], 32
    %1568 = vst [vmem:[%s1567] sm:$0xff] %v1566
    %s1569 = scalar_lea.vmem [#allocation2], 160
    %v1570 = vld [vmem:[%s1569] sm:$0xff]
    %v1571 = vld [vmem:[%s1569 + $0x8] sm:$0xff]
    %v1572 = vld [vmem:[%s1569 + $0x10] sm:$0xff]
    %v1573 = vld [vmem:[%s1569 + $0x18] sm:$0xff]
    %1574 = vmatprep.subr.mxu0 %v623
    %1575 = vmatpush1.msra.mxu0 %v622
    %1576 = vmatprep.subr.mxu0 %v627
    %1577 = vmatpush1.msra.mxu0 %v626
    %1578 = vmatprep.subr.mxu0 %v631
    %1579 = vmatpush1.msra.mxu0 %v630
    %1580 = vmatprep.subr.mxu0 %v635
    %1581 = vmatpush1.msra.mxu0 %v634
    %1582 = vmatprep.subr.mxu0 %v639
    %1583 = vmatpush1.msra.mxu0 %v638
    %1584 = vmatprep.subr.mxu0 %v643
    %1585 = vmatpush1.msra.mxu0 %v642
    %1586 = vmatprep.subr.mxu0 %v647
    %1587 = vmatpush1.msra.mxu0 %v646
    %1588 = vmatprep.subr.mxu0 %v651
    %1589 = vmatpush1.msra.mxu0 %v650
    %1590 = vmatprep.subr.mxu0 %v655
    %1591 = vmatpush1.msra.mxu0 %v654
    %1592 = vmatprep.subr.mxu0 %v659
    %1593 = vmatpush1.msra.mxu0 %v658
    %1594 = vmatprep.subr.mxu0 %v663
    %1595 = vmatpush1.msra.mxu0 %v662
    %1596 = vmatprep.subr.mxu0 %v667
    %1597 = vmatpush1.msra.mxu0 %v666
    %1598 = vmatprep.subr.mxu0 %v671
    %1599 = vmatpush1.msra.mxu0 %v670
    %1600 = vmatprep.subr.mxu0 %v675
    %1601 = vmatpush1.msra.mxu0 %v674
    %1602 = vmatprep.subr.mxu0 %v679
    %1603 = vmatpush1.msra.mxu0 %v678
    %1604 = vmatprep.subr.mxu0 %v683
    %1605 = vmatpush1.msra.mxu0 %v682
    %1606 = vmatprep.subr.mxu0 0.0
    %1607 = vmatpush1.msra.mxu0 0.0
    %1608 = vmatprep.subr.mxu0 0.0
    %1609 = vmatpush1.msra.mxu0 0.0
    %1610 = vmatprep.subr.mxu0 0.0
    %1611 = vmatpush1.msra.mxu0 0.0
    %1612 = vmatprep.subr.mxu0 0.0
    %1613 = vmatpush1.msra.mxu0 0.0
    %1614 = vmatprep.subr.mxu0 0.0
    %1615 = vmatpush1.msra.mxu0 0.0
    %1616 = vmatprep.subr.mxu0 0.0
    %1617 = vmatpush1.msra.mxu0 0.0
    %1618 = vmatprep.subr.mxu0 0.0
    %1619 = vmatpush1.msra.mxu0 0.0
    %1620 = vmatprep.subr.mxu0 0.0
    %1621 = vmatpush1.msra.mxu0 0.0
    %1622 = vmatprep.subr.mxu0 0.0
    %1623 = vmatpush1.msra.mxu0 0.0
    %1624 = vmatprep.subr.mxu0 0.0
    %1625 = vmatpush1.msra.mxu0 0.0
    %1626 = vmatprep.subr.mxu0 0.0
    %1627 = vmatpush1.msra.mxu0 0.0
    %1628 = vmatprep.subr.mxu0 0.0
    %1629 = vmatpush1.msra.mxu0 0.0
    %1630 = vmatprep.subr.mxu0 0.0
    %1631 = vmatpush1.msra.mxu0 0.0
    %1632 = vmatprep.subr.mxu0 0.0
    %1633 = vmatpush1.msra.mxu0 0.0
    %1634 = vmatprep.subr.mxu0 0.0
    %1635 = vmatpush1.msra.mxu0 0.0
    %1636 = vmatprep.subr.mxu0 0.0
    %1637 = vmatpush1.msra.mxu0 0.0
    %1638 = vmatprep.mubr.f32.mxu0 0.0
    %1639 = vmatmul.mubr.f32.gmra.mrb[0].mxu0 %v1566
    %v1640 = vpop.f32.mrb[0].mxu0
    %v1641 = vadd.f32 0.0, %v1640
    %v1642 = vpop.f32.mrb[0].mxu0
    %v1643 = vadd.f32 0.0, %v1642
    %1644 = vdwg.mxu0
    %1645 = vmatprep.subr.mxu0 %v625
    %1646 = vmatpush1.msra.mxu0 %v624
    %1647 = vmatprep.subr.mxu0 %v629
    %1648 = vmatpush1.msra.mxu0 %v628
    %1649 = vmatprep.subr.mxu0 %v633
    %1650 = vmatpush1.msra.mxu0 %v632
    %1651 = vmatprep.subr.mxu0 %v637
    %1652 = vmatpush1.msra.mxu0 %v636
    %1653 = vmatprep.subr.mxu0 %v641
    %1654 = vmatpush1.msra.mxu0 %v640
    %1655 = vmatprep.subr.mxu0 %v645
    %1656 = vmatpush1.msra.mxu0 %v644
    %1657 = vmatprep.subr.mxu0 %v649
    %1658 = vmatpush1.msra.mxu0 %v648
    %1659 = vmatprep.subr.mxu0 %v653
    %1660 = vmatpush1.msra.mxu0 %v652
    %1661 = vmatprep.subr.mxu0 %v657
    %1662 = vmatpush1.msra.mxu0 %v656
    %1663 = vmatprep.subr.mxu0 %v661
    %1664 = vmatpush1.msra.mxu0 %v660
    %1665 = vmatprep.subr.mxu0 %v665
    %1666 = vmatpush1.msra.mxu0 %v664
    %1667 = vmatprep.subr.mxu0 %v669
    %1668 = vmatpush1.msra.mxu0 %v668
    %1669 = vmatprep.subr.mxu0 %v673
    %1670 = vmatpush1.msra.mxu0 %v672
    %1671 = vmatprep.subr.mxu0 %v677
    %1672 = vmatpush1.msra.mxu0 %v676
    %1673 = vmatprep.subr.mxu0 %v681
    %1674 = vmatpush1.msra.mxu0 %v680
    %1675 = vmatprep.subr.mxu0 %v685
    %1676 = vmatpush1.msra.mxu0 %v684
    %1677 = vmatprep.subr.mxu0 0.0
    %1678 = vmatpush1.msra.mxu0 0.0
    %1679 = vmatprep.subr.mxu0 0.0
    %1680 = vmatpush1.msra.mxu0 0.0
    %1681 = vmatprep.subr.mxu0 0.0
    %1682 = vmatpush1.msra.mxu0 0.0
    %1683 = vmatprep.subr.mxu0 0.0
    %1684 = vmatpush1.msra.mxu0 0.0
    %1685 = vmatprep.subr.mxu0 0.0
    %1686 = vmatpush1.msra.mxu0 0.0
    %1687 = vmatprep.subr.mxu0 0.0
    %1688 = vmatpush1.msra.mxu0 0.0
    %1689 = vmatprep.subr.mxu0 0.0
    %1690 = vmatpush1.msra.mxu0 0.0
    %1691 = vmatprep.subr.mxu0 0.0
    %1692 = vmatpush1.msra.mxu0 0.0
    %1693 = vmatprep.subr.mxu0 0.0
    %1694 = vmatpush1.msra.mxu0 0.0
    %1695 = vmatprep.subr.mxu0 0.0
    %1696 = vmatpush1.msra.mxu0 0.0
    %1697 = vmatprep.subr.mxu0 0.0
    %1698 = vmatpush1.msra.mxu0 0.0
    %1699 = vmatprep.subr.mxu0 0.0
    %1700 = vmatpush1.msra.mxu0 0.0
    %1701 = vmatprep.subr.mxu0 0.0
    %1702 = vmatpush1.msra.mxu0 0.0
    %1703 = vmatprep.subr.mxu0 0.0
    %1704 = vmatpush1.msra.mxu0 0.0
    %1705 = vmatprep.subr.mxu0 0.0
    %1706 = vmatpush1.msra.mxu0 0.0
    %1707 = vmatprep.subr.mxu0 0.0
    %1708 = vmatpush1.msra.mxu0 0.0
    %1709 = vmatprep.mubr.f32.mxu0 0.0
    %1710 = vmatmul.mubr.f32.gmra.mrb[0].mxu0 %v1566
    %v1711 = vpop.f32.mrb[0].mxu0
    %v1712 = vadd.f32 0.0, %v1711
    %v1713 = vpop.f32.mrb[0].mxu0
    %v1714 = vadd.f32 0.0, %v1713
    %1715 = vdwg.mxu0
    %v1716 = vadd.f32 %v1570, %v1641
    %v1717 = vadd.f32 %v1571, %v1643
    %v1718 = vadd.f32 %v1572, %v1712
    %v1719 = vadd.f32 %v1573, %v1714
    %v1720 = vxor.u32 %v1716, 2147483648
    %v1721 = vmul.f32 %v1720, 1.442695
    %v1722 = vpow.pop %v1721
    %v1723 = vadd.f32 %v1722, 1.0
    %v1724 = vrcp.pop %v1723
    %v1725 = vmul.f32 1.0, %v1724
    %v1726 = vxor.u32 %v1717, 2147483648
    %v1727 = vmul.f32 %v1726, 1.442695
    %v1728 = vpow.pop %v1727
    %v1729 = vadd.f32 %v1728, 1.0
    %v1730 = vrcp.pop %v1729
    %v1731 = vmul.f32 1.0, %v1730
    %v1732 = vtanh.pop %v1718
    %v1733 = vxor.u32 %v1719, 2147483648
    %v1734 = vmul.f32 %v1733, 1.442695
    %v1735 = vpow.pop %v1734
    %v1736 = vadd.f32 %v1735, 1.0
    %v1737 = vrcp.pop %v1736
    %v1738 = vmul.f32 1.0, %v1737
    %v1739 = vmul.f32 %v1731, %v1564
    %v1740 = vmul.f32 %v1725, %v1732
    %v1741 = vadd.f32 %v1739, %v1740
    %v1742 = vtanh.pop %v1741
    %v1743 = vmul.f32 %v1738, %v1742
    %s1744 = scalar_lea.vmem [#allocation3], 40
    %1745 = vst [vmem:[%s1744] sm:$0xff] %v1743
    %s1746 = scalar_lea.vmem [#allocation2], 192
    %v1747 = vld [vmem:[%s1746] sm:$0xff]
    %v1748 = vld [vmem:[%s1746 + $0x8] sm:$0xff]
    %v1749 = vld [vmem:[%s1746 + $0x10] sm:$0xff]
    %v1750 = vld [vmem:[%s1746 + $0x18] sm:$0xff]
    %1751 = vmatprep.subr.mxu0 %v623
    %1752 = vmatpush1.msra.mxu0 %v622
    %1753 = vmatprep.subr.mxu0 %v627
    %1754 = vmatpush1.msra.mxu0 %v626
    %1755 = vmatprep.subr.mxu0 %v631
    %1756 = vmatpush1.msra.mxu0 %v630
    %1757 = vmatprep.subr.mxu0 %v635
    %1758 = vmatpush1.msra.mxu0 %v634
    %1759 = vmatprep.subr.mxu0 %v639
    %1760 = vmatpush1.msra.mxu0 %v638
    %1761 = vmatprep.subr.mxu0 %v643
    %1762 = vmatpush1.msra.mxu0 %v642
    %1763 = vmatprep.subr.mxu0 %v647
    %1764 = vmatpush1.msra.mxu0 %v646
    %1765 = vmatprep.subr.mxu0 %v651
    %1766 = vmatpush1.msra.mxu0 %v650
    %1767 = vmatprep.subr.mxu0 %v655
    %1768 = vmatpush1.msra.mxu0 %v654
    %1769 = vmatprep.subr.mxu0 %v659
    %1770 = vmatpush1.msra.mxu0 %v658
    %1771 = vmatprep.subr.mxu0 %v663
    %1772 = vmatpush1.msra.mxu0 %v662
    %1773 = vmatprep.subr.mxu0 %v667
    %1774 = vmatpush1.msra.mxu0 %v666
    %1775 = vmatprep.subr.mxu0 %v671
    %1776 = vmatpush1.msra.mxu0 %v670
    %1777 = vmatprep.subr.mxu0 %v675
    %1778 = vmatpush1.msra.mxu0 %v674
    %1779 = vmatprep.subr.mxu0 %v679
    %1780 = vmatpush1.msra.mxu0 %v678
    %1781 = vmatprep.subr.mxu0 %v683
    %1782 = vmatpush1.msra.mxu0 %v682
    %1783 = vmatprep.subr.mxu0 0.0
    %1784 = vmatpush1.msra.mxu0 0.0
    %1785 = vmatprep.subr.mxu0 0.0
    %1786 = vmatpush1.msra.mxu0 0.0
    %1787 = vmatprep.subr.mxu0 0.0
    %1788 = vmatpush1.msra.mxu0 0.0
    %1789 = vmatprep.subr.mxu0 0.0
    %1790 = vmatpush1.msra.mxu0 0.0
    %1791 = vmatprep.subr.mxu0 0.0
    %1792 = vmatpush1.msra.mxu0 0.0
    %1793 = vmatprep.subr.mxu0 0.0
    %1794 = vmatpush1.msra.mxu0 0.0
    %1795 = vmatprep.subr.mxu0 0.0
    %1796 = vmatpush1.msra.mxu0 0.0
    %1797 = vmatprep.subr.mxu0 0.0
    %1798 = vmatpush1.msra.mxu0 0.0
    %1799 = vmatprep.subr.mxu0 0.0
    %1800 = vmatpush1.msra.mxu0 0.0
    %1801 = vmatprep.subr.mxu0 0.0
    %1802 = vmatpush1.msra.mxu0 0.0
    %1803 = vmatprep.subr.mxu0 0.0
    %1804 = vmatpush1.msra.mxu0 0.0
    %1805 = vmatprep.subr.mxu0 0.0
    %1806 = vmatpush1.msra.mxu0 0.0
    %1807 = vmatprep.subr.mxu0 0.0
    %1808 = vmatpush1.msra.mxu0 0.0
    %1809 = vmatprep.subr.mxu0 0.0
    %1810 = vmatpush1.msra.mxu0 0.0
    %1811 = vmatprep.subr.mxu0 0.0
    %1812 = vmatpush1.msra.mxu0 0.0
    %1813 = vmatprep.subr.mxu0 0.0
    %1814 = vmatpush1.msra.mxu0 0.0
    %1815 = vmatprep.mubr.f32.mxu0 0.0
    %1816 = vmatmul.mubr.f32.gmra.mrb[0].mxu0 %v1743
    %v1817 = vpop.f32.mrb[0].mxu0
    %v1818 = vadd.f32 0.0, %v1817
    %v1819 = vpop.f32.mrb[0].mxu0
    %v1820 = vadd.f32 0.0, %v1819
    %1821 = vdwg.mxu0
    %1822 = vmatprep.subr.mxu0 %v625
    %1823 = vmatpush1.msra.mxu0 %v624
    %1824 = vmatprep.subr.mxu0 %v629
    %1825 = vmatpush1.msra.mxu0 %v628
    %1826 = vmatprep.subr.mxu0 %v633
    %1827 = vmatpush1.msra.mxu0 %v632
    %1828 = vmatprep.subr.mxu0 %v637
    %1829 = vmatpush1.msra.mxu0 %v636
    %1830 = vmatprep.subr.mxu0 %v641
    %1831 = vmatpush1.msra.mxu0 %v640
    %1832 = vmatprep.subr.mxu0 %v645
    %1833 = vmatpush1.msra.mxu0 %v644
    %1834 = vmatprep.subr.mxu0 %v649
    %1835 = vmatpush1.msra.mxu0 %v648
    %1836 = vmatprep.subr.mxu0 %v653
    %1837 = vmatpush1.msra.mxu0 %v652
    %1838 = vmatprep.subr.mxu0 %v657
    %1839 = vmatpush1.msra.mxu0 %v656
    %1840 = vmatprep.subr.mxu0 %v661
    %1841 = vmatpush1.msra.mxu0 %v660
    %1842 = vmatprep.subr.mxu0 %v665
    %1843 = vmatpush1.msra.mxu0 %v664
    %1844 = vmatprep.subr.mxu0 %v669
    %1845 = vmatpush1.msra.mxu0 %v668
    %1846 = vmatprep.subr.mxu0 %v673
    %1847 = vmatpush1.msra.mxu0 %v672
    %1848 = vmatprep.subr.mxu0 %v677
    %1849 = vmatpush1.msra.mxu0 %v676
    %1850 = vmatprep.subr.mxu0 %v681
    %1851 = vmatpush1.msra.mxu0 %v680
    %1852 = vmatprep.subr.mxu0 %v685
    %1853 = vmatpush1.msra.mxu0 %v684
    %1854 = vmatprep.subr.mxu0 0.0
    %1855 = vmatpush1.msra.mxu0 0.0
    %1856 = vmatprep.subr.mxu0 0.0
    %1857 = vmatpush1.msra.mxu0 0.0
    %1858 = vmatprep.subr.mxu0 0.0
    %1859 = vmatpush1.msra.mxu0 0.0
    %1860 = vmatprep.subr.mxu0 0.0
    %1861 = vmatpush1.msra.mxu0 0.0
    %1862 = vmatprep.subr.mxu0 0.0
    %1863 = vmatpush1.msra.mxu0 0.0
    %1864 = vmatprep.subr.mxu0 0.0
    %1865 = vmatpush1.msra.mxu0 0.0
    %1866 = vmatprep.subr.mxu0 0.0
    %1867 = vmatpush1.msra.mxu0 0.0
    %1868 = vmatprep.subr.mxu0 0.0
    %1869 = vmatpush1.msra.mxu0 0.0
    %1870 = vmatprep.subr.mxu0 0.0
    %1871 = vmatpush1.msra.mxu0 0.0
    %1872 = vmatprep.subr.mxu0 0.0
    %1873 = vmatpush1.msra.mxu0 0.0
    %1874 = vmatprep.subr.mxu0 0.0
    %1875 = vmatpush1.msra.mxu0 0.0
    %1876 = vmatprep.subr.mxu0 0.0
    %1877 = vmatpush1.msra.mxu0 0.0
    %1878 = vmatprep.subr.mxu0 0.0
    %1879 = vmatpush1.msra.mxu0 0.0
    %1880 = vmatprep.subr.mxu0 0.0
    %1881 = vmatpush1.msra.mxu0 0.0
    %1882 = vmatprep.subr.mxu0 0.0
    %1883 = vmatpush1.msra.mxu0 0.0
    %1884 = vmatprep.subr.mxu0 0.0
    %1885 = vmatpush1.msra.mxu0 0.0
    %1886 = vmatprep.mubr.f32.mxu0 0.0
    %1887 = vmatmul.mubr.f32.gmra.mrb[0].mxu0 %v1743
    %v1888 = vpop.f32.mrb[0].mxu0
    %v1889 = vadd.f32 0.0, %v1888
    %v1890 = vpop.f32.mrb[0].mxu0
    %v1891 = vadd.f32 0.0, %v1890
    %1892 = vdwg.mxu0
    %v1893 = vadd.f32 %v1747, %v1818
    %v1894 = vadd.f32 %v1748, %v1820
    %v1895 = vadd.f32 %v1749, %v1889
    %v1896 = vadd.f32 %v1750, %v1891
    %v1897 = vxor.u32 %v1893, 2147483648
    %v1898 = vmul.f32 %v1897, 1.442695
    %v1899 = vpow.pop %v1898
    %v1900 = vadd.f32 %v1899, 1.0
    %v1901 = vrcp.pop %v1900
    %v1902 = vmul.f32 1.0, %v1901
    %v1903 = vxor.u32 %v1894, 2147483648
    %v1904 = vmul.f32 %v1903, 1.442695
    %v1905 = vpow.pop %v1904
    %v1906 = vadd.f32 %v1905, 1.0
    %v1907 = vrcp.pop %v1906
    %v1908 = vmul.f32 1.0, %v1907
    %v1909 = vtanh.pop %v1895
    %v1910 = vxor.u32 %v1896, 2147483648
    %v1911 = vmul.f32 %v1910, 1.442695
    %v1912 = vpow.pop %v1911
    %v1913 = vadd.f32 %v1912, 1.0
    %v1914 = vrcp.pop %v1913
    %v1915 = vmul.f32 1.0, %v1914
    %v1916 = vmul.f32 %v1908, %v1741
    %v1917 = vmul.f32 %v1902, %v1909
    %v1918 = vadd.f32 %v1916, %v1917
    %v1919 = vtanh.pop %v1918
    %v1920 = vmul.f32 %v1915, %v1919
    %s1921 = scalar_lea.vmem [#allocation3], 48
    %1922 = vst [vmem:[%s1921] sm:$0xff] %v1920
    %s1923 = scalar_lea.vmem [#allocation2], 224
    %v1924 = vld [vmem:[%s1923] sm:$0xff]
    %v1925 = vld [vmem:[%s1923 + $0x8] sm:$0xff]
    %v1926 = vld [vmem:[%s1923 + $0x10] sm:$0xff]
    %v1927 = vld [vmem:[%s1923 + $0x18] sm:$0xff]
    %1928 = vmatprep.subr.mxu0 %v623
    %1929 = vmatpush1.msra.mxu0 %v622
    %1930 = vmatprep.subr.mxu0 %v627
    %1931 = vmatpush1.msra.mxu0 %v626
    %1932 = vmatprep.subr.mxu0 %v631
    %1933 = vmatpush1.msra.mxu0 %v630
    %1934 = vmatprep.subr.mxu0 %v635
    %1935 = vmatpush1.msra.mxu0 %v634
    %1936 = vmatprep.subr.mxu0 %v639
    %1937 = vmatpush1.msra.mxu0 %v638
    %1938 = vmatprep.subr.mxu0 %v643
    %1939 = vmatpush1.msra.mxu0 %v642
    %1940 = vmatprep.subr.mxu0 %v647
    %1941 = vmatpush1.msra.mxu0 %v646
    %1942 = vmatprep.subr.mxu0 %v651
    %1943 = vmatpush1.msra.mxu0 %v650
    %1944 = vmatprep.subr.mxu0 %v655
    %1945 = vmatpush1.msra.mxu0 %v654
    %1946 = vmatprep.subr.mxu0 %v659
    %1947 = vmatpush1.msra.mxu0 %v658
    %1948 = vmatprep.subr.mxu0 %v663
    %1949 = vmatpush1.msra.mxu0 %v662
    %1950 = vmatprep.subr.mxu0 %v667
    %1951 = vmatpush1.msra.mxu0 %v666
    %1952 = vmatprep.subr.mxu0 %v671
    %1953 = vmatpush1.msra.mxu0 %v670
    %1954 = vmatprep.subr.mxu0 %v675
    %1955 = vmatpush1.msra.mxu0 %v674
    %1956 = vmatprep.subr.mxu0 %v679
    %1957 = vmatpush1.msra.mxu0 %v678
    %1958 = vmatprep.subr.mxu0 %v683
    %1959 = vmatpush1.msra.mxu0 %v682
    %1960 = vmatprep.subr.mxu0 0.0
    %1961 = vmatpush1.msra.mxu0 0.0
    %1962 = vmatprep.subr.mxu0 0.0
    %1963 = vmatpush1.msra.mxu0 0.0
    %1964 = vmatprep.subr.mxu0 0.0
    %1965 = vmatpush1.msra.mxu0 0.0
    %1966 = vmatprep.subr.mxu0 0.0
    %1967 = vmatpush1.msra.mxu0 0.0
    %1968 = vmatprep.subr.mxu0 0.0
    %1969 = vmatpush1.msra.mxu0 0.0
    %1970 = vmatprep.subr.mxu0 0.0
    %1971 = vmatpush1.msra.mxu0 0.0
    %1972 = vmatprep.subr.mxu0 0.0
    %1973 = vmatpush1.msra.mxu0 0.0
    %1974 = vmatprep.subr.mxu0 0.0
    %1975 = vmatpush1.msra.mxu0 0.0
    %1976 = vmatprep.subr.mxu0 0.0
    %1977 = vmatpush1.msra.mxu0 0.0
    %1978 = vmatprep.subr.mxu0 0.0
    %1979 = vmatpush1.msra.mxu0 0.0
    %1980 = vmatprep.subr.mxu0 0.0
    %1981 = vmatpush1.msra.mxu0 0.0
    %1982 = vmatprep.subr.mxu0 0.0
    %1983 = vmatpush1.msra.mxu0 0.0
    %1984 = vmatprep.subr.mxu0 0.0
    %1985 = vmatpush1.msra.mxu0 0.0
    %1986 = vmatprep.subr.mxu0 0.0
    %1987 = vmatpush1.msra.mxu0 0.0
    %1988 = vmatprep.subr.mxu0 0.0
    %1989 = vmatpush1.msra.mxu0 0.0
    %1990 = vmatprep.subr.mxu0 0.0
    %1991 = vmatpush1.msra.mxu0 0.0
    %1992 = vmatprep.mubr.f32.mxu0 0.0
    %1993 = vmatmul.mubr.f32.gmra.mrb[0].mxu0 %v1920
    %v1994 = vpop.f32.mrb[0].mxu0
    %v1995 = vadd.f32 0.0, %v1994
    %v1996 = vpop.f32.mrb[0].mxu0
    %v1997 = vadd.f32 0.0, %v1996
    %1998 = vdwg.mxu0
    %1999 = vmatprep.subr.mxu0 %v625
    %2000 = vmatpush1.msra.mxu0 %v624
    %2001 = vmatprep.subr.mxu0 %v629
    %2002 = vmatpush1.msra.mxu0 %v628
    %2003 = vmatprep.subr.mxu0 %v633
    %2004 = vmatpush1.msra.mxu0 %v632
    %2005 = vmatprep.subr.mxu0 %v637
    %2006 = vmatpush1.msra.mxu0 %v636
    %2007 = vmatprep.subr.mxu0 %v641
    %2008 = vmatpush1.msra.mxu0 %v640
    %2009 = vmatprep.subr.mxu0 %v645
    %2010 = vmatpush1.msra.mxu0 %v644
    %2011 = vmatprep.subr.mxu0 %v649
    %2012 = vmatpush1.msra.mxu0 %v648
    %2013 = vmatprep.subr.mxu0 %v653
    %2014 = vmatpush1.msra.mxu0 %v652
    %2015 = vmatprep.subr.mxu0 %v657
    %2016 = vmatpush1.msra.mxu0 %v656
    %2017 = vmatprep.subr.mxu0 %v661
    %2018 = vmatpush1.msra.mxu0 %v660
    %2019 = vmatprep.subr.mxu0 %v665
    %2020 = vmatpush1.msra.mxu0 %v664
    %2021 = vmatprep.subr.mxu0 %v669
    %2022 = vmatpush1.msra.mxu0 %v668
    %2023 = vmatprep.subr.mxu0 %v673
    %2024 = vmatpush1.msra.mxu0 %v672
    %2025 = vmatprep.subr.mxu0 %v677
    %2026 = vmatpush1.msra.mxu0 %v676
    %2027 = vmatprep.subr.mxu0 %v681
    %2028 = vmatpush1.msra.mxu0 %v680
    %2029 = vmatprep.subr.mxu0 %v685
    %2030 = vmatpush1.msra.mxu0 %v684
    %2031 = vmatprep.subr.mxu0 0.0
    %2032 = vmatpush1.msra.mxu0 0.0
    %2033 = vmatprep.subr.mxu0 0.0
    %2034 = vmatpush1.msra.mxu0 0.0
    %2035 = vmatprep.subr.mxu0 0.0
    %2036 = vmatpush1.msra.mxu0 0.0
    %2037 = vmatprep.subr.mxu0 0.0
    %2038 = vmatpush1.msra.mxu0 0.0
    %2039 = vmatprep.subr.mxu0 0.0
    %2040 = vmatpush1.msra.mxu0 0.0
    %2041 = vmatprep.subr.mxu0 0.0
    %2042 = vmatpush1.msra.mxu0 0.0
    %2043 = vmatprep.subr.mxu0 0.0
    %2044 = vmatpush1.msra.mxu0 0.0
    %2045 = vmatprep.subr.mxu0 0.0
    %2046 = vmatpush1.msra.mxu0 0.0
    %2047 = vmatprep.subr.mxu0 0.0
    %2048 = vmatpush1.msra.mxu0 0.0
    %2049 = vmatprep.subr.mxu0 0.0
    %2050 = vmatpush1.msra.mxu0 0.0
    %2051 = vmatprep.subr.mxu0 0.0
    %2052 = vmatpush1.msra.mxu0 0.0
    %2053 = vmatprep.subr.mxu0 0.0
    %2054 = vmatpush1.msra.mxu0 0.0
    %2055 = vmatprep.subr.mxu0 0.0
    %2056 = vmatpush1.msra.mxu0 0.0
    %2057 = vmatprep.subr.mxu0 0.0
    %2058 = vmatpush1.msra.mxu0 0.0
    %2059 = vmatprep.subr.mxu0 0.0
    %2060 = vmatpush1.msra.mxu0 0.0
    %2061 = vmatprep.subr.mxu0 0.0
    %2062 = vmatpush1.msra.mxu0 0.0
    %2063 = vmatprep.mubr.f32.mxu0 0.0
    %2064 = vmatmul.mubr.f32.gmra.mrb[0].mxu0 %v1920
    %v2065 = vpop.f32.mrb[0].mxu0
    %v2066 = vadd.f32 0.0, %v2065
    %v2067 = vpop.f32.mrb[0].mxu0
    %v2068 = vadd.f32 0.0, %v2067
    %2069 = vdwg.mxu0
    %v2070 = vadd.f32 %v1924, %v1995
    %v2071 = vadd.f32 %v1925, %v1997
    %v2072 = vadd.f32 %v1926, %v2066
    %v2073 = vadd.f32 %v1927, %v2068
    %v2074 = vxor.u32 %v2070, 2147483648
    %v2075 = vmul.f32 %v2074, 1.442695
    %v2076 = vpow.pop %v2075
    %v2077 = vadd.f32 %v2076, 1.0
    %v2078 = vrcp.pop %v2077
    %v2079 = vmul.f32 1.0, %v2078
    %v2080 = vxor.u32 %v2071, 2147483648
    %v2081 = vmul.f32 %v2080, 1.442695
    %v2082 = vpow.pop %v2081
    %v2083 = vadd.f32 %v2082, 1.0
    %v2084 = vrcp.pop %v2083
    %v2085 = vmul.f32 1.0, %v2084
    %v2086 = vtanh.pop %v2072
    %v2087 = vxor.u32 %v2073, 2147483648
    %v2088 = vmul.f32 %v2087, 1.442695
    %v2089 = vpow.pop %v2088
    %v2090 = vadd.f32 %v2089, 1.0
    %v2091 = vrcp.pop %v2090
    %v2092 = vmul.f32 1.0, %v2091
    %v2093 = vmul.f32 %v2085, %v1918
    %v2094 = vmul.f32 %v2079, %v2086
    %v2095 = vadd.f32 %v2093, %v2094
    %v2096 = vtanh.pop %v2095
    %v2097 = vmul.f32 %v2092, %v2096
    %s2098 = scalar_lea.vmem [#allocation3], 56
    %2099 = vst [vmem:[%s2098] sm:$0xff] %v2097
    %v2100 = vld [vmem:[#allocation3] sm:$0xff]
    %v2101 = vld [vmem:[#allocation3 + $0x8] sm:$0xff]
    %v2102 = vld [vmem:[#allocation3 + $0x10] sm:$0xff]
    %v2103 = vld [vmem:[#allocation3 + $0x18] sm:$0xff]
    %v2104 = vld [vmem:[#allocation3 + $0x20] sm:$0xff]
    %v2105 = vld [vmem:[#allocation3 + $0x28] sm:$0xff]
    %v2106 = vld [vmem:[#allocation3 + $0x30] sm:$0xff]
    %v2107 = vld [vmem:[#allocation3 + $0x38] sm:$0xff]
    %v2108 = vld [vmem:[#allocation13] sm:$0xff]
    %v2109 = vld [vmem:[#allocation13 + $0x8] sm:$0xff]
    %v2110 = vld [vmem:[#allocation13 + $0x10] sm:$0xff]
    %v2111 = vld [vmem:[#allocation13 + $0x18] sm:$0xff]
    %v2112 = vld [vmem:[#allocation13 + $0x20] sm:$0xff]
    %v2113 = vld [vmem:[#allocation13 + $0x28] sm:$0xff]
    %v2114 = vld [vmem:[#allocation13 + $0x30] sm:$0xff]
    %v2115 = vld [vmem:[#allocation13 + $0x38] sm:$0xff]
    %v2116 = vld [vmem:[#allocation13 + $0x40] sm:$0xff]
    %v2117 = vld [vmem:[#allocation13 + $0x48] sm:$0xff]
    %v2118 = vld [vmem:[#allocation13 + $0x50] sm:$0xff]
    %v2119 = vld [vmem:[#allocation13 + $0x58] sm:$0xff]
    %v2120 = vld [vmem:[#allocation13 + $0x60] sm:$0xff]
    %v2121 = vld [vmem:[#allocation13 + $0x68] sm:$0xff]
    %v2122 = vld [vmem:[#allocation13 + $0x70] sm:$0xff]
    %v2123 = vld [vmem:[#allocation13 + $0x78] sm:$0xff]
    %v2124 = vld [vmem:[#allocation13 + $0x80] sm:$0xff]
    %v2125 = vld [vmem:[#allocation13 + $0x88] sm:$0xff]
    %v2126 = vld [vmem:[#allocation13 + $0x90] sm:$0xff]
    %v2127 = vld [vmem:[#allocation13 + $0x98] sm:$0xff]
    %v2128 = vld [vmem:[#allocation13 + $0xa0] sm:$0xff]
    %v2129 = vld [vmem:[#allocation13 + $0xa8] sm:$0xff]
    %v2130 = vld [vmem:[#allocation13 + $0xb0] sm:$0xff]
    %v2131 = vld [vmem:[#allocation13 + $0xb8] sm:$0xff]
    %v2132 = vld [vmem:[#allocation13 + $0xc0] sm:$0xff]
    %v2133 = vld [vmem:[#allocation13 + $0xc8] sm:$0xff]
    %v2134 = vld [vmem:[#allocation13 + $0xd0] sm:$0xff]
    %v2135 = vld [vmem:[#allocation13 + $0xd8] sm:$0xff]
    %v2136 = vld [vmem:[#allocation13 + $0xe0] sm:$0xff]
    %v2137 = vld [vmem:[#allocation13 + $0xe8] sm:$0xff]
    %v2138 = vld [vmem:[#allocation13 + $0xf0] sm:$0xff]
    %v2139 = vld [vmem:[#allocation13 + $0xf8] sm:$0xff]
    %v2140 = vld [vmem:[#allocation13 + $0x100] sm:$0xff]
    %v2141 = vld [vmem:[#allocation13 + $0x108] sm:$0xff]
    %v2142 = vld [vmem:[#allocation13 + $0x110] sm:$0xff]
    %v2143 = vld [vmem:[#allocation13 + $0x118] sm:$0xff]
    %v2144 = vld [vmem:[#allocation13 + $0x120] sm:$0xff]
    %v2145 = vld [vmem:[#allocation13 + $0x128] sm:$0xff]
    %v2146 = vld [vmem:[#allocation13 + $0x130] sm:$0xff]
    %v2147 = vld [vmem:[#allocation13 + $0x138] sm:$0xff]
    %v2148 = vld [vmem:[#allocation13 + $0x140] sm:$0xff]
    %v2149 = vld [vmem:[#allocation13 + $0x148] sm:$0xff]
    %v2150 = vld [vmem:[#allocation13 + $0x150] sm:$0xff]
    %v2151 = vld [vmem:[#allocation13 + $0x158] sm:$0xff]
    %v2152 = vld [vmem:[#allocation13 + $0x160] sm:$0xff]
    %v2153 = vld [vmem:[#allocation13 + $0x168] sm:$0xff]
    %v2154 = vld [vmem:[#allocation13 + $0x170] sm:$0xff]
    %v2155 = vld [vmem:[#allocation13 + $0x178] sm:$0xff]
    %v2156 = vld [vmem:[#allocation13 + $0x180] sm:$0xff]
    %v2157 = vld [vmem:[#allocation13 + $0x188] sm:$0xff]
    %v2158 = vld [vmem:[#allocation13 + $0x190] sm:$0xff]
    %v2159 = vld [vmem:[#allocation13 + $0x198] sm:$0xff]
    %v2160 = vld [vmem:[#allocation13 + $0x1a0] sm:$0xff]
    %v2161 = vld [vmem:[#allocation13 + $0x1a8] sm:$0xff]
    %v2162 = vld [vmem:[#allocation13 + $0x1b0] sm:$0xff]
    %v2163 = vld [vmem:[#allocation13 + $0x1b8] sm:$0xff]
    %v2164 = vld [vmem:[#allocation13 + $0x1c0] sm:$0xff]
    %v2165 = vld [vmem:[#allocation13 + $0x1c8] sm:$0xff]
    %v2166 = vld [vmem:[#allocation13 + $0x1d0] sm:$0xff]
    %v2167 = vld [vmem:[#allocation13 + $0x1d8] sm:$0xff]
    %v2168 = vld [vmem:[#allocation13 + $0x1e0] sm:$0xff]
    %v2169 = vld [vmem:[#allocation13 + $0x1e8] sm:$0xff]
    %v2170 = vld [vmem:[#allocation13 + $0x1f0] sm:$0xff]
    %v2171 = vld [vmem:[#allocation13 + $0x1f8] sm:$0xff]
    %v2172 = vld [vmem:[%s8] sm:$0xf]
    %v2174 = vlaneseq
    %v2175 = vshrl.u32 %v2174, 7
    %v2176 = vsub.s32 0, %v2175
    %v2177 = vrot.slane %v2172, %v2176
    %v2178 = vlaneseq
    %v2179 = vshrl.u32 %v2178, 7
    %v2180 = vsub.s32 1, %v2179
    %v2181 = vrot.slane %v2172, %v2180
    %v2182 = vlaneseq
    %v2183 = vshrl.u32 %v2182, 7
    %v2184 = vsub.s32 2, %v2183
    %v2185 = vrot.slane %v2172, %v2184
    %v2186 = vlaneseq
    %v2187 = vshrl.u32 %v2186, 7
    %v2188 = vsub.s32 3, %v2187
    %v2189 = vrot.slane %v2172, %v2188
    %2194 = vmatprep.subr.mxu0 %v2109
    %2195 = vmatpush1.msra.mxu0 %v2108
    %2196 = vmatprep.subr.mxu0 %v2113
    %2197 = vmatpush1.msra.mxu0 %v2112
    %2198 = vmatprep.subr.mxu0 %v2117
    %2199 = vmatpush1.msra.mxu0 %v2116
    %2200 = vmatprep.subr.mxu0 %v2121
    %2201 = vmatpush1.msra.mxu0 %v2120
    %2202 = vmatprep.subr.mxu0 %v2125
    %2203 = vmatpush1.msra.mxu0 %v2124
    %2204 = vmatprep.subr.mxu0 %v2129
    %2205 = vmatpush1.msra.mxu0 %v2128
    %2206 = vmatprep.subr.mxu0 %v2133
    %2207 = vmatpush1.msra.mxu0 %v2132
    %2208 = vmatprep.subr.mxu0 %v2137
    %2209 = vmatpush1.msra.mxu0 %v2136
    %2210 = vmatprep.subr.mxu0 %v2141
    %2211 = vmatpush1.msra.mxu0 %v2140
    %2212 = vmatprep.subr.mxu0 %v2145
    %2213 = vmatpush1.msra.mxu0 %v2144
    %2214 = vmatprep.subr.mxu0 %v2149
    %2215 = vmatpush1.msra.mxu0 %v2148
    %2216 = vmatprep.subr.mxu0 %v2153
    %2217 = vmatpush1.msra.mxu0 %v2152
    %2218 = vmatprep.subr.mxu0 %v2157
    %2219 = vmatpush1.msra.mxu0 %v2156
    %2220 = vmatprep.subr.mxu0 %v2161
    %2221 = vmatpush1.msra.mxu0 %v2160
    %2222 = vmatprep.subr.mxu0 %v2165
    %2223 = vmatpush1.msra.mxu0 %v2164
    %2224 = vmatprep.subr.mxu0 %v2169
    %2225 = vmatpush1.msra.mxu0 %v2168
    %2226 = vmatprep.subr.mxu0 0.0
    %2227 = vmatpush1.msra.mxu0 0.0
    %2228 = vmatprep.subr.mxu0 0.0
    %2229 = vmatpush1.msra.mxu0 0.0
    %2230 = vmatprep.subr.mxu0 0.0
    %2231 = vmatpush1.msra.mxu0 0.0
    %2232 = vmatprep.subr.mxu0 0.0
    %2233 = vmatpush1.msra.mxu0 0.0
    %2234 = vmatprep.subr.mxu0 0.0
    %2235 = vmatpush1.msra.mxu0 0.0
    %2236 = vmatprep.subr.mxu0 0.0
    %2237 = vmatpush1.msra.mxu0 0.0
    %2238 = vmatprep.subr.mxu0 0.0
    %2239 = vmatpush1.msra.mxu0 0.0
    %2240 = vmatprep.subr.mxu0 0.0
    %2241 = vmatpush1.msra.mxu0 0.0
    %2242 = vmatprep.subr.mxu0 0.0
    %2243 = vmatpush1.msra.mxu0 0.0
    %2244 = vmatprep.subr.mxu0 0.0
    %2245 = vmatpush1.msra.mxu0 0.0
    %2246 = vmatprep.subr.mxu0 0.0
    %2247 = vmatpush1.msra.mxu0 0.0
    %2248 = vmatprep.subr.mxu0 0.0
    %2249 = vmatpush1.msra.mxu0 0.0
    %2250 = vmatprep.subr.mxu0 0.0
    %2251 = vmatpush1.msra.mxu0 0.0
    %2252 = vmatprep.subr.mxu0 0.0
    %2253 = vmatpush1.msra.mxu0 0.0
    %2254 = vmatprep.subr.mxu0 0.0
    %2255 = vmatpush1.msra.mxu0 0.0
    %2256 = vmatprep.subr.mxu0 0.0
    %2257 = vmatpush1.msra.mxu0 0.0
    %2258 = vmatprep.mubr.f32.mxu0 0.0
    %2259 = vmatmul.mubr.f32.gmra.mrb[0].mxu0 %v2100
    %v2260 = vpop.f32.mrb[0].mxu0
    %v2261 = vadd.f32 %v2177, %v2260
    %v2262 = vpop.f32.mrb[0].mxu0
    %v2263 = vadd.f32 %v2181, %v2262
    %2264 = vmatprep.mubr.f32.mxu0 0.0
    %2265 = vmatmul.mubr.f32.gmra.mrb[0].mxu0 %v2101
    %v2266 = vpop.f32.mrb[0].mxu0
    %v2267 = vadd.f32 %v2177, %v2266
    %v2268 = vpop.f32.mrb[0].mxu0
    %v2269 = vadd.f32 %v2181, %v2268
    %2270 = vmatprep.mubr.f32.mxu0 0.0
    %2271 = vmatmul.mubr.f32.gmra.mrb[0].mxu0 %v2102
    %v2272 = vpop.f32.mrb[0].mxu0
    %v2273 = vadd.f32 %v2177, %v2272
    %v2274 = vpop.f32.mrb[0].mxu0
    %v2275 = vadd.f32 %v2181, %v2274
    %2276 = vmatprep.mubr.f32.mxu0 0.0
    %2277 = vmatmul.mubr.f32.gmra.mrb[0].mxu0 %v2103
    %v2278 = vpop.f32.mrb[0].mxu0
    %v2279 = vadd.f32 %v2177, %v2278
    %v2280 = vpop.f32.mrb[0].mxu0
    %v2281 = vadd.f32 %v2181, %v2280
    %2282 = vmatprep.mubr.f32.mxu0 0.0
    %2283 = vmatmul.mubr.f32.gmra.mrb[0].mxu0 %v2104
    %v2284 = vpop.f32.mrb[0].mxu0
    %v2285 = vadd.f32 %v2177, %v2284
    %v2286 = vpop.f32.mrb[0].mxu0
    %v2287 = vadd.f32 %v2181, %v2286
    %2288 = vmatprep.mubr.f32.mxu0 0.0
    %2289 = vmatmul.mubr.f32.gmra.mrb[0].mxu0 %v2105
    %v2290 = vpop.f32.mrb[0].mxu0
    %v2291 = vadd.f32 %v2177, %v2290
    %v2292 = vpop.f32.mrb[0].mxu0
    %v2293 = vadd.f32 %v2181, %v2292
    %2294 = vmatprep.mubr.f32.mxu0 0.0
    %2295 = vmatmul.mubr.f32.gmra.mrb[0].mxu0 %v2106
    %v2296 = vpop.f32.mrb[0].mxu0
    %v2297 = vadd.f32 %v2177, %v2296
    %v2298 = vpop.f32.mrb[0].mxu0
    %v2299 = vadd.f32 %v2181, %v2298
    %2300 = vmatprep.mubr.f32.mxu0 0.0
    %2301 = vmatmul.mubr.f32.gmra.mrb[0].mxu0 %v2107
    %v2302 = vpop.f32.mrb[0].mxu0
    %v2303 = vadd.f32 %v2177, %v2302
    %v2304 = vpop.f32.mrb[0].mxu0
    %v2305 = vadd.f32 %v2181, %v2304
    %2306 = vdwg.mxu0
    %2307 = vmatprep.subr.mxu0 %v2111
    %2308 = vmatpush1.msra.mxu0 %v2110
    %2309 = vmatprep.subr.mxu0 %v2115
    %2310 = vmatpush1.msra.mxu0 %v2114
    %2311 = vmatprep.subr.mxu0 %v2119
    %2312 = vmatpush1.msra.mxu0 %v2118
    %2313 = vmatprep.subr.mxu0 %v2123
    %2314 = vmatpush1.msra.mxu0 %v2122
    %2315 = vmatprep.subr.mxu0 %v2127
    %2316 = vmatpush1.msra.mxu0 %v2126
    %2317 = vmatprep.subr.mxu0 %v2131
    %2318 = vmatpush1.msra.mxu0 %v2130
    %2319 = vmatprep.subr.mxu0 %v2135
    %2320 = vmatpush1.msra.mxu0 %v2134
    %2321 = vmatprep.subr.mxu0 %v2139
    %2322 = vmatpush1.msra.mxu0 %v2138
    %2323 = vmatprep.subr.mxu0 %v2143
    %2324 = vmatpush1.msra.mxu0 %v2142
    %2325 = vmatprep.subr.mxu0 %v2147
    %2326 = vmatpush1.msra.mxu0 %v2146
    %2327 = vmatprep.subr.mxu0 %v2151
    %2328 = vmatpush1.msra.mxu0 %v2150
    %2329 = vmatprep.subr.mxu0 %v2155
    %2330 = vmatpush1.msra.mxu0 %v2154
    %2331 = vmatprep.subr.mxu0 %v2159
    %2332 = vmatpush1.msra.mxu0 %v2158
    %2333 = vmatprep.subr.mxu0 %v2163
    %2334 = vmatpush1.msra.mxu0 %v2162
    %2335 = vmatprep.subr.mxu0 %v2167
    %2336 = vmatpush1.msra.mxu0 %v2166
    %2337 = vmatprep.subr.mxu0 %v2171
    %2338 = vmatpush1.msra.mxu0 %v2170
    %2339 = vmatprep.subr.mxu0 0.0
    %2340 = vmatpush1.msra.mxu0 0.0
    %2341 = vmatprep.subr.mxu0 0.0
    %2342 = vmatpush1.msra.mxu0 0.0
    %2343 = vmatprep.subr.mxu0 0.0
    %2344 = vmatpush1.msra.mxu0 0.0
    %2345 = vmatprep.subr.mxu0 0.0
    %2346 = vmatpush1.msra.mxu0 0.0
    %2347 = vmatprep.subr.mxu0 0.0
    %2348 = vmatpush1.msra.mxu0 0.0
    %2349 = vmatprep.subr.mxu0 0.0
    %2350 = vmatpush1.msra.mxu0 0.0
    %2351 = vmatprep.subr.mxu0 0.0
    %2352 = vmatpush1.msra.mxu0 0.0
    %2353 = vmatprep.subr.mxu0 0.0
    %2354 = vmatpush1.msra.mxu0 0.0
    %2355 = vmatprep.subr.mxu0 0.0
    %2356 = vmatpush1.msra.mxu0 0.0
    %2357 = vmatprep.subr.mxu0 0.0
    %2358 = vmatpush1.msra.mxu0 0.0
    %2359 = vmatprep.subr.mxu0 0.0
    %2360 = vmatpush1.msra.mxu0 0.0
    %2361 = vmatprep.subr.mxu0 0.0
    %2362 = vmatpush1.msra.mxu0 0.0
    %2363 = vmatprep.subr.mxu0 0.0
    %2364 = vmatpush1.msra.mxu0 0.0
    %2365 = vmatprep.subr.mxu0 0.0
    %2366 = vmatpush1.msra.mxu0 0.0
    %2367 = vmatprep.subr.mxu0 0.0
    %2368 = vmatpush1.msra.mxu0 0.0
    %2369 = vmatprep.subr.mxu0 0.0
    %2370 = vmatpush1.msra.mxu0 0.0
    %2371 = vmatprep.mubr.f32.mxu0 0.0
    %2372 = vmatmul.mubr.f32.gmra.mrb[0].mxu0 %v2100
    %v2373 = vpop.f32.mrb[0].mxu0
    %v2374 = vadd.f32 %v2185, %v2373
    %v2375 = vpop.f32.mrb[0].mxu0
    %v2376 = vadd.f32 %v2189, %v2375
    %2377 = vmatprep.mubr.f32.mxu0 0.0
    %2378 = vmatmul.mubr.f32.gmra.mrb[0].mxu0 %v2101
    %v2379 = vpop.f32.mrb[0].mxu0
    %v2380 = vadd.f32 %v2185, %v2379
    %v2381 = vpop.f32.mrb[0].mxu0
    %v2382 = vadd.f32 %v2189, %v2381
    %2383 = vmatprep.mubr.f32.mxu0 0.0
    %2384 = vmatmul.mubr.f32.gmra.mrb[0].mxu0 %v2102
    %v2385 = vpop.f32.mrb[0].mxu0
    %v2386 = vadd.f32 %v2185, %v2385
    %v2387 = vpop.f32.mrb[0].mxu0
    %v2388 = vadd.f32 %v2189, %v2387
    %2389 = vmatprep.mubr.f32.mxu0 0.0
    %2390 = vmatmul.mubr.f32.gmra.mrb[0].mxu0 %v2103
    %v2391 = vpop.f32.mrb[0].mxu0
    %v2392 = vadd.f32 %v2185, %v2391
    %v2393 = vpop.f32.mrb[0].mxu0
    %v2394 = vadd.f32 %v2189, %v2393
    %2395 = vmatprep.mubr.f32.mxu0 0.0
    %2396 = vmatmul.mubr.f32.gmra.mrb[0].mxu0 %v2104
    %v2397 = vpop.f32.mrb[0].mxu0
    %v2398 = vadd.f32 %v2185, %v2397
    %v2399 = vpop.f32.mrb[0].mxu0
    %v2400 = vadd.f32 %v2189, %v2399
    %2401 = vmatprep.mubr.f32.mxu0 0.0
    %2402 = vmatmul.mubr.f32.gmra.mrb[0].mxu0 %v2105
    %v2403 = vpop.f32.mrb[0].mxu0
    %v2404 = vadd.f32 %v2185, %v2403
    %v2405 = vpop.f32.mrb[0].mxu0
    %v2406 = vadd.f32 %v2189, %v2405
    %2407 = vmatprep.mubr.f32.mxu0 0.0
    %2408 = vmatmul.mubr.f32.gmra.mrb[0].mxu0 %v2106
    %v2409 = vpop.f32.mrb[0].mxu0
    %v2410 = vadd.f32 %v2185, %v2409
    %v2411 = vpop.f32.mrb[0].mxu0
    %v2412 = vadd.f32 %v2189, %v2411
    %2413 = vmatprep.mubr.f32.mxu0 0.0
    %2414 = vmatmul.mubr.f32.gmra.mrb[0].mxu0 %v2107
    %v2415 = vpop.f32.mrb[0].mxu0
    %v2416 = vadd.f32 %v2185, %v2415
    %v2417 = vpop.f32.mrb[0].mxu0
    %v2418 = vadd.f32 %v2189, %v2417
    %2419 = vdwg.mxu0
    %2420 = vst [vmem:[#allocation2] sm:$0xff] %v2261
    %2421 = vst [vmem:[#allocation2 + $0x8] sm:$0xff] %v2263
    %2422 = vst [vmem:[#allocation2 + $0x10] sm:$0xff] %v2374
    %2423 = vst [vmem:[#allocation2 + $0x18] sm:$0xff] %v2376
    %2424 = vst [vmem:[#allocation2 + $0x20] sm:$0xff] %v2267
    %2425 = vst [vmem:[#allocation2 + $0x28] sm:$0xff] %v2269
    %2426 = vst [vmem:[#allocation2 + $0x30] sm:$0xff] %v2380
    %2427 = vst [vmem:[#allocation2 + $0x38] sm:$0xff] %v2382
    %2428 = vst [vmem:[#allocation2 + $0x40] sm:$0xff] %v2273
    %2429 = vst [vmem:[#allocation2 + $0x48] sm:$0xff] %v2275
    %2430 = vst [vmem:[#allocation2 + $0x50] sm:$0xff] %v2386
    %2431 = vst [vmem:[#allocation2 + $0x58] sm:$0xff] %v2388
    %2432 = vst [vmem:[#allocation2 + $0x60] sm:$0xff] %v2279
    %2433 = vst [vmem:[#allocation2 + $0x68] sm:$0xff] %v2281
    %2434 = vst [vmem:[#allocation2 + $0x70] sm:$0xff] %v2392
    %2435 = vst [vmem:[#allocation2 + $0x78] sm:$0xff] %v2394
    %2436 = vst [vmem:[#allocation2 + $0x80] sm:$0xff] %v2285
    %2437 = vst [vmem:[#allocation2 + $0x88] sm:$0xff] %v2287
    %2438 = vst [vmem:[#allocation2 + $0x90] sm:$0xff] %v2398
    %2439 = vst [vmem:[#allocation2 + $0x98] sm:$0xff] %v2400
    %2440 = vst [vmem:[#allocation2 + $0xa0] sm:$0xff] %v2291
    %2441 = vst [vmem:[#allocation2 + $0xa8] sm:$0xff] %v2293
    %2442 = vst [vmem:[#allocation2 + $0xb0] sm:$0xff] %v2404
    %2443 = vst [vmem:[#allocation2 + $0xb8] sm:$0xff] %v2406
    %2444 = vst [vmem:[#allocation2 + $0xc0] sm:$0xff] %v2297
    %2445 = vst [vmem:[#allocation2 + $0xc8] sm:$0xff] %v2299
    %2446 = vst [vmem:[#allocation2 + $0xd0] sm:$0xff] %v2410
    %2447 = vst [vmem:[#allocation2 + $0xd8] sm:$0xff] %v2412
    %2448 = vst [vmem:[#allocation2 + $0xe0] sm:$0xff] %v2303
    %2449 = vst [vmem:[#allocation2 + $0xe8] sm:$0xff] %v2305
    %2450 = vst [vmem:[#allocation2 + $0xf0] sm:$0xff] %v2416
    %2451 = vst [vmem:[#allocation2 + $0xf8] sm:$0xff] %v2418
    %v2452 = vld [vmem:[#allocation14] sm:$0xff]
    %v2453 = vld [vmem:[#allocation14 + $0x8] sm:$0xff]
    %v2454 = vld [vmem:[#allocation14 + $0x10] sm:$0xff]
    %v2455 = vld [vmem:[#allocation14 + $0x18] sm:$0xff]
    %v2456 = vld [vmem:[#allocation14 + $0x20] sm:$0xff]
    %v2457 = vld [vmem:[#allocation14 + $0x28] sm:$0xff]
    %v2458 = vld [vmem:[#allocation14 + $0x30] sm:$0xff]
    %v2459 = vld [vmem:[#allocation14 + $0x38] sm:$0xff]
    %v2460 = vld [vmem:[#allocation14 + $0x40] sm:$0xff]
    %v2461 = vld [vmem:[#allocation14 + $0x48] sm:$0xff]
    %v2462 = vld [vmem:[#allocation14 + $0x50] sm:$0xff]
    %v2463 = vld [vmem:[#allocation14 + $0x58] sm:$0xff]
    %v2464 = vld [vmem:[#allocation14 + $0x60] sm:$0xff]
    %v2465 = vld [vmem:[#allocation14 + $0x68] sm:$0xff]
    %v2466 = vld [vmem:[#allocation14 + $0x70] sm:$0xff]
    %v2467 = vld [vmem:[#allocation14 + $0x78] sm:$0xff]
    %v2468 = vld [vmem:[#allocation14 + $0x80] sm:$0xff]
    %v2469 = vld [vmem:[#allocation14 + $0x88] sm:$0xff]
    %v2470 = vld [vmem:[#allocation14 + $0x90] sm:$0xff]
    %v2471 = vld [vmem:[#allocation14 + $0x98] sm:$0xff]
    %v2472 = vld [vmem:[#allocation14 + $0xa0] sm:$0xff]
    %v2473 = vld [vmem:[#allocation14 + $0xa8] sm:$0xff]
    %v2474 = vld [vmem:[#allocation14 + $0xb0] sm:$0xff]
    %v2475 = vld [vmem:[#allocation14 + $0xb8] sm:$0xff]
    %v2476 = vld [vmem:[#allocation14 + $0xc0] sm:$0xff]
    %v2477 = vld [vmem:[#allocation14 + $0xc8] sm:$0xff]
    %v2478 = vld [vmem:[#allocation14 + $0xd0] sm:$0xff]
    %v2479 = vld [vmem:[#allocation14 + $0xd8] sm:$0xff]
    %v2480 = vld [vmem:[#allocation14 + $0xe0] sm:$0xff]
    %v2481 = vld [vmem:[#allocation14 + $0xe8] sm:$0xff]
    %v2482 = vld [vmem:[#allocation14 + $0xf0] sm:$0xff]
    %v2483 = vld [vmem:[#allocation14 + $0xf8] sm:$0xff]
    %v2484 = vld [vmem:[#allocation14 + $0x100] sm:$0xff]
    %v2485 = vld [vmem:[#allocation14 + $0x108] sm:$0xff]
    %v2486 = vld [vmem:[#allocation14 + $0x110] sm:$0xff]
    %v2487 = vld [vmem:[#allocation14 + $0x118] sm:$0xff]
    %v2488 = vld [vmem:[#allocation14 + $0x120] sm:$0xff]
    %v2489 = vld [vmem:[#allocation14 + $0x128] sm:$0xff]
    %v2490 = vld [vmem:[#allocation14 + $0x130] sm:$0xff]
    %v2491 = vld [vmem:[#allocation14 + $0x138] sm:$0xff]
    %v2492 = vld [vmem:[#allocation14 + $0x140] sm:$0xff]
    %v2493 = vld [vmem:[#allocation14 + $0x148] sm:$0xff]
    %v2494 = vld [vmem:[#allocation14 + $0x150] sm:$0xff]
    %v2495 = vld [vmem:[#allocation14 + $0x158] sm:$0xff]
    %v2496 = vld [vmem:[#allocation14 + $0x160] sm:$0xff]
    %v2497 = vld [vmem:[#allocation14 + $0x168] sm:$0xff]
    %v2498 = vld [vmem:[#allocation14 + $0x170] sm:$0xff]
    %v2499 = vld [vmem:[#allocation14 + $0x178] sm:$0xff]
    %v2500 = vld [vmem:[#allocation14 + $0x180] sm:$0xff]
    %v2501 = vld [vmem:[#allocation14 + $0x188] sm:$0xff]
    %v2502 = vld [vmem:[#allocation14 + $0x190] sm:$0xff]
    %v2503 = vld [vmem:[#allocation14 + $0x198] sm:$0xff]
    %v2504 = vld [vmem:[#allocation14 + $0x1a0] sm:$0xff]
    %v2505 = vld [vmem:[#allocation14 + $0x1a8] sm:$0xff]
    %v2506 = vld [vmem:[#allocation14 + $0x1b0] sm:$0xff]
    %v2507 = vld [vmem:[#allocation14 + $0x1b8] sm:$0xff]
    %v2508 = vld [vmem:[#allocation14 + $0x1c0] sm:$0xff]
    %v2509 = vld [vmem:[#allocation14 + $0x1c8] sm:$0xff]
    %v2510 = vld [vmem:[#allocation14 + $0x1d0] sm:$0xff]
    %v2511 = vld [vmem:[#allocation14 + $0x1d8] sm:$0xff]
    %v2512 = vld [vmem:[#allocation14 + $0x1e0] sm:$0xff]
    %v2513 = vld [vmem:[#allocation14 + $0x1e8] sm:$0xff]
    %v2514 = vld [vmem:[#allocation14 + $0x1f0] sm:$0xff]
    %v2515 = vld [vmem:[#allocation14 + $0x1f8] sm:$0xff]
    %v2516 = vld [vmem:[#allocation2] sm:$0xff]
    %v2517 = vld [vmem:[#allocation2 + $0x8] sm:$0xff]
    %v2518 = vld [vmem:[#allocation2 + $0x10] sm:$0xff]
    %v2519 = vld [vmem:[#allocation2 + $0x18] sm:$0xff]
    %2520 = vmatprep.subr.mxu0 %v2453
    %2521 = vmatpush1.msra.mxu0 %v2452
    %2522 = vmatprep.subr.mxu0 %v2457
    %2523 = vmatpush1.msra.mxu0 %v2456
    %2524 = vmatprep.subr.mxu0 %v2461
    %2525 = vmatpush1.msra.mxu0 %v2460
    %2526 = vmatprep.subr.mxu0 %v2465
    %2527 = vmatpush1.msra.mxu0 %v2464
    %2528 = vmatprep.subr.mxu0 %v2469
    %2529 = vmatpush1.msra.mxu0 %v2468
    %2530 = vmatprep.subr.mxu0 %v2473
    %2531 = vmatpush1.msra.mxu0 %v2472
    %2532 = vmatprep.subr.mxu0 %v2477
    %2533 = vmatpush1.msra.mxu0 %v2476
    %2534 = vmatprep.subr.mxu0 %v2481
    %2535 = vmatpush1.msra.mxu0 %v2480
    %2536 = vmatprep.subr.mxu0 %v2485
    %2537 = vmatpush1.msra.mxu0 %v2484
    %2538 = vmatprep.subr.mxu0 %v2489
    %2539 = vmatpush1.msra.mxu0 %v2488
    %2540 = vmatprep.subr.mxu0 %v2493
    %2541 = vmatpush1.msra.mxu0 %v2492
    %2542 = vmatprep.subr.mxu0 %v2497
    %2543 = vmatpush1.msra.mxu0 %v2496
    %2544 = vmatprep.subr.mxu0 %v2501
    %2545 = vmatpush1.msra.mxu0 %v2500
    %2546 = vmatprep.subr.mxu0 %v2505
    %2547 = vmatpush1.msra.mxu0 %v2504
    %2548 = vmatprep.subr.mxu0 %v2509
    %2549 = vmatpush1.msra.mxu0 %v2508
    %2550 = vmatprep.subr.mxu0 %v2513
    %2551 = vmatpush1.msra.mxu0 %v2512
    %2552 = vmatprep.subr.mxu0 0.0
    %2553 = vmatpush1.msra.mxu0 0.0
    %2554 = vmatprep.subr.mxu0 0.0
    %2555 = vmatpush1.msra.mxu0 0.0
    %2556 = vmatprep.subr.mxu0 0.0
    %2557 = vmatpush1.msra.mxu0 0.0
    %2558 = vmatprep.subr.mxu0 0.0
    %2559 = vmatpush1.msra.mxu0 0.0
    %2560 = vmatprep.subr.mxu0 0.0
    %2561 = vmatpush1.msra.mxu0 0.0
    %2562 = vmatprep.subr.mxu0 0.0
    %2563 = vmatpush1.msra.mxu0 0.0
    %2564 = vmatprep.subr.mxu0 0.0
    %2565 = vmatpush1.msra.mxu0 0.0
    %2566 = vmatprep.subr.mxu0 0.0
    %2567 = vmatpush1.msra.mxu0 0.0
    %2568 = vmatprep.subr.mxu0 0.0
    %2569 = vmatpush1.msra.mxu0 0.0
    %2570 = vmatprep.subr.mxu0 0.0
    %2571 = vmatpush1.msra.mxu0 0.0
    %2572 = vmatprep.subr.mxu0 0.0
    %2573 = vmatpush1.msra.mxu0 0.0
    %2574 = vmatprep.subr.mxu0 0.0
    %2575 = vmatpush1.msra.mxu0 0.0
    %2576 = vmatprep.subr.mxu0 0.0
    %2577 = vmatpush1.msra.mxu0 0.0
    %2578 = vmatprep.subr.mxu0 0.0
    %2579 = vmatpush1.msra.mxu0 0.0
    %2580 = vmatprep.subr.mxu0 0.0
    %2581 = vmatpush1.msra.mxu0 0.0
    %2582 = vmatprep.subr.mxu0 0.0
    %2583 = vmatpush1.msra.mxu0 0.0
    %2584 = vmatprep.mubr.f32.mxu0 0.0
    %2585 = vmatmul.mubr.f32.gmra.mrb[0].mxu0 0.0
    %v2586 = vpop.f32.mrb[0].mxu0
    %v2587 = vadd.f32 0.0, %v2586
    %v2588 = vpop.f32.mrb[0].mxu0
    %v2589 = vadd.f32 0.0, %v2588
    %2590 = vdwg.mxu0
    %2591 = vmatprep.subr.mxu0 %v2455
    %2592 = vmatpush1.msra.mxu0 %v2454
    %2593 = vmatprep.subr.mxu0 %v2459
    %2594 = vmatpush1.msra.mxu0 %v2458
    %2595 = vmatprep.subr.mxu0 %v2463
    %2596 = vmatpush1.msra.mxu0 %v2462
    %2597 = vmatprep.subr.mxu0 %v2467
    %2598 = vmatpush1.msra.mxu0 %v2466
    %2599 = vmatprep.subr.mxu0 %v2471
    %2600 = vmatpush1.msra.mxu0 %v2470
    %2601 = vmatprep.subr.mxu0 %v2475
    %2602 = vmatpush1.msra.mxu0 %v2474
    %2603 = vmatprep.subr.mxu0 %v2479
    %2604 = vmatpush1.msra.mxu0 %v2478
    %2605 = vmatprep.subr.mxu0 %v2483
    %2606 = vmatpush1.msra.mxu0 %v2482
    %2607 = vmatprep.subr.mxu0 %v2487
    %2608 = vmatpush1.msra.mxu0 %v2486
    %2609 = vmatprep.subr.mxu0 %v2491
    %2610 = vmatpush1.msra.mxu0 %v2490
    %2611 = vmatprep.subr.mxu0 %v2495
    %2612 = vmatpush1.msra.mxu0 %v2494
    %2613 = vmatprep.subr.mxu0 %v2499
    %2614 = vmatpush1.msra.mxu0 %v2498
    %2615 = vmatprep.subr.mxu0 %v2503
    %2616 = vmatpush1.msra.mxu0 %v2502
    %2617 = vmatprep.subr.mxu0 %v2507
    %2618 = vmatpush1.msra.mxu0 %v2506
    %2619 = vmatprep.subr.mxu0 %v2511
    %2620 = vmatpush1.msra.mxu0 %v2510
    %2621 = vmatprep.subr.mxu0 %v2515
    %2622 = vmatpush1.msra.mxu0 %v2514
    %2623 = vmatprep.subr.mxu0 0.0
    %2624 = vmatpush1.msra.mxu0 0.0
    %2625 = vmatprep.subr.mxu0 0.0
    %2626 = vmatpush1.msra.mxu0 0.0
    %2627 = vmatprep.subr.mxu0 0.0
    %2628 = vmatpush1.msra.mxu0 0.0
    %2629 = vmatprep.subr.mxu0 0.0
    %2630 = vmatpush1.msra.mxu0 0.0
    %2631 = vmatprep.subr.mxu0 0.0
    %2632 = vmatpush1.msra.mxu0 0.0
    %2633 = vmatprep.subr.mxu0 0.0
    %2634 = vmatpush1.msra.mxu0 0.0
    %2635 = vmatprep.subr.mxu0 0.0
    %2636 = vmatpush1.msra.mxu0 0.0
    %2637 = vmatprep.subr.mxu0 0.0
    %2638 = vmatpush1.msra.mxu0 0.0
    %2639 = vmatprep.subr.mxu0 0.0
    %2640 = vmatpush1.msra.mxu0 0.0
    %2641 = vmatprep.subr.mxu0 0.0
    %2642 = vmatpush1.msra.mxu0 0.0
    %2643 = vmatprep.subr.mxu0 0.0
    %2644 = vmatpush1.msra.mxu0 0.0
    %2645 = vmatprep.subr.mxu0 0.0
    %2646 = vmatpush1.msra.mxu0 0.0
    %2647 = vmatprep.subr.mxu0 0.0
    %2648 = vmatpush1.msra.mxu0 0.0
    %2649 = vmatprep.subr.mxu0 0.0
    %2650 = vmatpush1.msra.mxu0 0.0
    %2651 = vmatprep.subr.mxu0 0.0
    %2652 = vmatpush1.msra.mxu0 0.0
    %2653 = vmatprep.subr.mxu0 0.0
    %2654 = vmatpush1.msra.mxu0 0.0
    %2655 = vmatprep.mubr.f32.mxu0 0.0
    %2656 = vmatmul.mubr.f32.gmra.mrb[0].mxu0 0.0
    %v2657 = vpop.f32.mrb[0].mxu0
    %v2658 = vadd.f32 0.0, %v2657
    %v2659 = vpop.f32.mrb[0].mxu0
    %v2660 = vadd.f32 0.0, %v2659
    %2661 = vdwg.mxu0
    %v2662 = vadd.f32 %v2516, %v2587
    %v2663 = vadd.f32 %v2517, %v2589
    %v2664 = vadd.f32 %v2518, %v2658
    %v2665 = vadd.f32 %v2519, %v2660
    %v2666 = vxor.u32 %v2662, 2147483648
    %v2667 = vmul.f32 %v2666, 1.442695
    %v2668 = vpow.pop %v2667
    %v2669 = vadd.f32 %v2668, 1.0
    %v2670 = vrcp.pop %v2669
    %v2671 = vmul.f32 1.0, %v2670
    %v2672 = vxor.u32 %v2663, 2147483648
    %v2673 = vmul.f32 %v2672, 1.442695
    %v2674 = vpow.pop %v2673
    %v2675 = vadd.f32 %v2674, 1.0
    %v2676 = vrcp.pop %v2675
    %v2677 = vmul.f32 1.0, %v2676
    %v2678 = vtanh.pop %v2664
    %v2679 = vxor.u32 %v2665, 2147483648
    %v2680 = vmul.f32 %v2679, 1.442695
    %v2681 = vpow.pop %v2680
    %v2682 = vadd.f32 %v2681, 1.0
    %v2683 = vrcp.pop %v2682
    %v2684 = vmul.f32 1.0, %v2683
    %v2685 = vmul.f32 %v2677, 0.0
    %v2686 = vmul.f32 %v2671, %v2678
    %v2687 = vadd.f32 %v2685, %v2686
    %v2688 = vtanh.pop %v2687
    %v2689 = vmul.f32 %v2684, %v2688
    %2690 = vst [vmem:[#allocation4] sm:$0xff] %v2689
    %v2691 = vld [vmem:[%s861] sm:$0xff]
    %v2692 = vld [vmem:[%s861 + $0x8] sm:$0xff]
    %v2693 = vld [vmem:[%s861 + $0x10] sm:$0xff]
    %v2694 = vld [vmem:[%s861 + $0x18] sm:$0xff]
    %2695 = vmatprep.subr.mxu0 %v2453
    %2696 = vmatpush1.msra.mxu0 %v2452
    %2697 = vmatprep.subr.mxu0 %v2457
    %2698 = vmatpush1.msra.mxu0 %v2456
    %2699 = vmatprep.subr.mxu0 %v2461
    %2700 = vmatpush1.msra.mxu0 %v2460
    %2701 = vmatprep.subr.mxu0 %v2465
    %2702 = vmatpush1.msra.mxu0 %v2464
    %2703 = vmatprep.subr.mxu0 %v2469
    %2704 = vmatpush1.msra.mxu0 %v2468
    %2705 = vmatprep.subr.mxu0 %v2473
    %2706 = vmatpush1.msra.mxu0 %v2472
    %2707 = vmatprep.subr.mxu0 %v2477
    %2708 = vmatpush1.msra.mxu0 %v2476
    %2709 = vmatprep.subr.mxu0 %v2481
    %2710 = vmatpush1.msra.mxu0 %v2480
    %2711 = vmatprep.subr.mxu0 %v2485
    %2712 = vmatpush1.msra.mxu0 %v2484
    %2713 = vmatprep.subr.mxu0 %v2489
    %2714 = vmatpush1.msra.mxu0 %v2488
    %2715 = vmatprep.subr.mxu0 %v2493
    %2716 = vmatpush1.msra.mxu0 %v2492
    %2717 = vmatprep.subr.mxu0 %v2497
    %2718 = vmatpush1.msra.mxu0 %v2496
    %2719 = vmatprep.subr.mxu0 %v2501
    %2720 = vmatpush1.msra.mxu0 %v2500
    %2721 = vmatprep.subr.mxu0 %v2505
    %2722 = vmatpush1.msra.mxu0 %v2504
    %2723 = vmatprep.subr.mxu0 %v2509
    %2724 = vmatpush1.msra.mxu0 %v2508
    %2725 = vmatprep.subr.mxu0 %v2513
    %2726 = vmatpush1.msra.mxu0 %v2512
    %2727 = vmatprep.subr.mxu0 0.0
    %2728 = vmatpush1.msra.mxu0 0.0
    %2729 = vmatprep.subr.mxu0 0.0
    %2730 = vmatpush1.msra.mxu0 0.0
    %2731 = vmatprep.subr.mxu0 0.0
    %2732 = vmatpush1.msra.mxu0 0.0
    %2733 = vmatprep.subr.mxu0 0.0
    %2734 = vmatpush1.msra.mxu0 0.0
    %2735 = vmatprep.subr.mxu0 0.0
    %2736 = vmatpush1.msra.mxu0 0.0
    %2737 = vmatprep.subr.mxu0 0.0
    %2738 = vmatpush1.msra.mxu0 0.0
    %2739 = vmatprep.subr.mxu0 0.0
    %2740 = vmatpush1.msra.mxu0 0.0
    %2741 = vmatprep.subr.mxu0 0.0
    %2742 = vmatpush1.msra.mxu0 0.0
    %2743 = vmatprep.subr.mxu0 0.0
    %2744 = vmatpush1.msra.mxu0 0.0
    %2745 = vmatprep.subr.mxu0 0.0
    %2746 = vmatpush1.msra.mxu0 0.0
    %2747 = vmatprep.subr.mxu0 0.0
    %2748 = vmatpush1.msra.mxu0 0.0
    %2749 = vmatprep.subr.mxu0 0.0
    %2750 = vmatpush1.msra.mxu0 0.0
    %2751 = vmatprep.subr.mxu0 0.0
    %2752 = vmatpush1.msra.mxu0 0.0
    %2753 = vmatprep.subr.mxu0 0.0
    %2754 = vmatpush1.msra.mxu0 0.0
    %2755 = vmatprep.subr.mxu0 0.0
    %2756 = vmatpush1.msra.mxu0 0.0
    %2757 = vmatprep.subr.mxu0 0.0
    %2758 = vmatpush1.msra.mxu0 0.0
    %2759 = vmatprep.mubr.f32.mxu0 0.0
    %2760 = vmatmul.mubr.f32.gmra.mrb[0].mxu0 %v2689
    %v2761 = vpop.f32.mrb[0].mxu0
    %v2762 = vadd.f32 0.0, %v2761
    %v2763 = vpop.f32.mrb[0].mxu0
    %v2764 = vadd.f32 0.0, %v2763
    %2765 = vdwg.mxu0
    %2766 = vmatprep.subr.mxu0 %v2455
    %2767 = vmatpush1.msra.mxu0 %v2454
    %2768 = vmatprep.subr.mxu0 %v2459
    %2769 = vmatpush1.msra.mxu0 %v2458
    %2770 = vmatprep.subr.mxu0 %v2463
    %2771 = vmatpush1.msra.mxu0 %v2462
    %2772 = vmatprep.subr.mxu0 %v2467
    %2773 = vmatpush1.msra.mxu0 %v2466
    %2774 = vmatprep.subr.mxu0 %v2471
    %2775 = vmatpush1.msra.mxu0 %v2470
    %2776 = vmatprep.subr.mxu0 %v2475
    %2777 = vmatpush1.msra.mxu0 %v2474
    %2778 = vmatprep.subr.mxu0 %v2479
    %2779 = vmatpush1.msra.mxu0 %v2478
    %2780 = vmatprep.subr.mxu0 %v2483
    %2781 = vmatpush1.msra.mxu0 %v2482
    %2782 = vmatprep.subr.mxu0 %v2487
    %2783 = vmatpush1.msra.mxu0 %v2486
    %2784 = vmatprep.subr.mxu0 %v2491
    %2785 = vmatpush1.msra.mxu0 %v2490
    %2786 = vmatprep.subr.mxu0 %v2495
    %2787 = vmatpush1.msra.mxu0 %v2494
    %2788 = vmatprep.subr.mxu0 %v2499
    %2789 = vmatpush1.msra.mxu0 %v2498
    %2790 = vmatprep.subr.mxu0 %v2503
    %2791 = vmatpush1.msra.mxu0 %v2502
    %2792 = vmatprep.subr.mxu0 %v2507
    %2793 = vmatpush1.msra.mxu0 %v2506
    %2794 = vmatprep.subr.mxu0 %v2511
    %2795 = vmatpush1.msra.mxu0 %v2510
    %2796 = vmatprep.subr.mxu0 %v2515
    %2797 = vmatpush1.msra.mxu0 %v2514
    %2798 = vmatprep.subr.mxu0 0.0
    %2799 = vmatpush1.msra.mxu0 0.0
    %2800 = vmatprep.subr.mxu0 0.0
    %2801 = vmatpush1.msra.mxu0 0.0
    %2802 = vmatprep.subr.mxu0 0.0
    %2803 = vmatpush1.msra.mxu0 0.0
    %2804 = vmatprep.subr.mxu0 0.0
    %2805 = vmatpush1.msra.mxu0 0.0
    %2806 = vmatprep.subr.mxu0 0.0
    %2807 = vmatpush1.msra.mxu0 0.0
    %2808 = vmatprep.subr.mxu0 0.0
    %2809 = vmatpush1.msra.mxu0 0.0
    %2810 = vmatprep.subr.mxu0 0.0
    %2811 = vmatpush1.msra.mxu0 0.0
    %2812 = vmatprep.subr.mxu0 0.0
    %2813 = vmatpush1.msra.mxu0 0.0
    %2814 = vmatprep.subr.mxu0 0.0
    %2815 = vmatpush1.msra.mxu0 0.0
    %2816 = vmatprep.subr.mxu0 0.0
    %2817 = vmatpush1.msra.mxu0 0.0
    %2818 = vmatprep.subr.mxu0 0.0
    %2819 = vmatpush1.msra.mxu0 0.0
    %2820 = vmatprep.subr.mxu0 0.0
    %2821 = vmatpush1.msra.mxu0 0.0
    %2822 = vmatprep.subr.mxu0 0.0
    %2823 = vmatpush1.msra.mxu0 0.0
    %2824 = vmatprep.subr.mxu0 0.0
    %2825 = vmatpush1.msra.mxu0 0.0
    %2826 = vmatprep.subr.mxu0 0.0
    %2827 = vmatpush1.msra.mxu0 0.0
    %2828 = vmatprep.subr.mxu0 0.0
    %2829 = vmatpush1.msra.mxu0 0.0
    %2830 = vmatprep.mubr.f32.mxu0 0.0
    %2831 = vmatmul.mubr.f32.gmra.mrb[0].mxu0 %v2689
    %v2832 = vpop.f32.mrb[0].mxu0
    %v2833 = vadd.f32 0.0, %v2832
    %v2834 = vpop.f32.mrb[0].mxu0
    %v2835 = vadd.f32 0.0, %v2834
    %2836 = vdwg.mxu0
    %v2837 = vadd.f32 %v2691, %v2762
    %v2838 = vadd.f32 %v2692, %v2764
    %v2839 = vadd.f32 %v2693, %v2833
    %v2840 = vadd.f32 %v2694, %v2835
    %v2841 = vxor.u32 %v2837, 2147483648
    %v2842 = vmul.f32 %v2841, 1.442695
    %v2843 = vpow.pop %v2842
    %v2844 = vadd.f32 %v2843, 1.0
    %v2845 = vrcp.pop %v2844
    %v2846 = vmul.f32 1.0, %v2845
    %v2847 = vxor.u32 %v2838, 2147483648
    %v2848 = vmul.f32 %v2847, 1.442695
    %v2849 = vpow.pop %v2848
    %v2850 = vadd.f32 %v2849, 1.0
    %v2851 = vrcp.pop %v2850
    %v2852 = vmul.f32 1.0, %v2851
    %v2853 = vtanh.pop %v2839
    %v2854 = vxor.u32 %v2840, 2147483648
    %v2855 = vmul.f32 %v2854, 1.442695
    %v2856 = vpow.pop %v2855
    %v2857 = vadd.f32 %v2856, 1.0
    %v2858 = vrcp.pop %v2857
    %v2859 = vmul.f32 1.0, %v2858
    %v2860 = vmul.f32 %v2852, %v2687
    %v2861 = vmul.f32 %v2846, %v2853
    %v2862 = vadd.f32 %v2860, %v2861
    %v2863 = vtanh.pop %v2862
    %v2864 = vmul.f32 %v2859, %v2863
    %s2865 = scalar_lea.vmem [#allocation4], 8
    %2866 = vst [vmem:[%s2865] sm:$0xff] %v2864
    %v2867 = vld [vmem:[%s1038] sm:$0xff]
    %v2868 = vld [vmem:[%s1038 + $0x8] sm:$0xff]
    %v2869 = vld [vmem:[%s1038 + $0x10] sm:$0xff]
    %v2870 = vld [vmem:[%s1038 + $0x18] sm:$0xff]
    %2871 = vmatprep.subr.mxu0 %v2453
    %2872 = vmatpush1.msra.mxu0 %v2452
    %2873 = vmatprep.subr.mxu0 %v2457
    %2874 = vmatpush1.msra.mxu0 %v2456
    %2875 = vmatprep.subr.mxu0 %v2461
    %2876 = vmatpush1.msra.mxu0 %v2460
    %2877 = vmatprep.subr.mxu0 %v2465
    %2878 = vmatpush1.msra.mxu0 %v2464
    %2879 = vmatprep.subr.mxu0 %v2469
    %2880 = vmatpush1.msra.mxu0 %v2468
    %2881 = vmatprep.subr.mxu0 %v2473
    %2882 = vmatpush1.msra.mxu0 %v2472
    %2883 = vmatprep.subr.mxu0 %v2477
    %2884 = vmatpush1.msra.mxu0 %v2476
    %2885 = vmatprep.subr.mxu0 %v2481
    %2886 = vmatpush1.msra.mxu0 %v2480
    %2887 = vmatprep.subr.mxu0 %v2485
    %2888 = vmatpush1.msra.mxu0 %v2484
    %2889 = vmatprep.subr.mxu0 %v2489
    %2890 = vmatpush1.msra.mxu0 %v2488
    %2891 = vmatprep.subr.mxu0 %v2493
    %2892 = vmatpush1.msra.mxu0 %v2492
    %2893 = vmatprep.subr.mxu0 %v2497
    %2894 = vmatpush1.msra.mxu0 %v2496
    %2895 = vmatprep.subr.mxu0 %v2501
    %2896 = vmatpush1.msra.mxu0 %v2500
    %2897 = vmatprep.subr.mxu0 %v2505
    %2898 = vmatpush1.msra.mxu0 %v2504
    %2899 = vmatprep.subr.mxu0 %v2509
    %2900 = vmatpush1.msra.mxu0 %v2508
    %2901 = vmatprep.subr.mxu0 %v2513
    %2902 = vmatpush1.msra.mxu0 %v2512
    %2903 = vmatprep.subr.mxu0 0.0
    %2904 = vmatpush1.msra.mxu0 0.0
    %2905 = vmatprep.subr.mxu0 0.0
    %2906 = vmatpush1.msra.mxu0 0.0
    %2907 = vmatprep.subr.mxu0 0.0
    %2908 = vmatpush1.msra.mxu0 0.0
    %2909 = vmatprep.subr.mxu0 0.0
    %2910 = vmatpush1.msra.mxu0 0.0
    %2911 = vmatprep.subr.mxu0 0.0
    %2912 = vmatpush1.msra.mxu0 0.0
    %2913 = vmatprep.subr.mxu0 0.0
    %2914 = vmatpush1.msra.mxu0 0.0
    %2915 = vmatprep.subr.mxu0 0.0
    %2916 = vmatpush1.msra.mxu0 0.0
    %2917 = vmatprep.subr.mxu0 0.0
    %2918 = vmatpush1.msra.mxu0 0.0
    %2919 = vmatprep.subr.mxu0 0.0
    %2920 = vmatpush1.msra.mxu0 0.0
    %2921 = vmatprep.subr.mxu0 0.0
    %2922 = vmatpush1.msra.mxu0 0.0
    %2923 = vmatprep.subr.mxu0 0.0
    %2924 = vmatpush1.msra.mxu0 0.0
    %2925 = vmatprep.subr.mxu0 0.0
    %2926 = vmatpush1.msra.mxu0 0.0
    %2927 = vmatprep.subr.mxu0 0.0
    %2928 = vmatpush1.msra.mxu0 0.0
    %2929 = vmatprep.subr.mxu0 0.0
    %2930 = vmatpush1.msra.mxu0 0.0
    %2931 = vmatprep.subr.mxu0 0.0
    %2932 = vmatpush1.msra.mxu0 0.0
    %2933 = vmatprep.subr.mxu0 0.0
    %2934 = vmatpush1.msra.mxu0 0.0
    %2935 = vmatprep.mubr.f32.mxu0 0.0
    %2936 = vmatmul.mubr.f32.gmra.mrb[0].mxu0 %v2864
    %v2937 = vpop.f32.mrb[0].mxu0
    %v2938 = vadd.f32 0.0, %v2937
    %v2939 = vpop.f32.mrb[0].mxu0
    %v2940 = vadd.f32 0.0, %v2939
    %2941 = vdwg.mxu0
    %2942 = vmatprep.subr.mxu0 %v2455
    %2943 = vmatpush1.msra.mxu0 %v2454
    %2944 = vmatprep.subr.mxu0 %v2459
    %2945 = vmatpush1.msra.mxu0 %v2458
    %2946 = vmatprep.subr.mxu0 %v2463
    %2947 = vmatpush1.msra.mxu0 %v2462
    %2948 = vmatprep.subr.mxu0 %v2467
    %2949 = vmatpush1.msra.mxu0 %v2466
    %2950 = vmatprep.subr.mxu0 %v2471
    %2951 = vmatpush1.msra.mxu0 %v2470
    %2952 = vmatprep.subr.mxu0 %v2475
    %2953 = vmatpush1.msra.mxu0 %v2474
    %2954 = vmatprep.subr.mxu0 %v2479
    %2955 = vmatpush1.msra.mxu0 %v2478
    %2956 = vmatprep.subr.mxu0 %v2483
    %2957 = vmatpush1.msra.mxu0 %v2482
    %2958 = vmatprep.subr.mxu0 %v2487
    %2959 = vmatpush1.msra.mxu0 %v2486
    %2960 = vmatprep.subr.mxu0 %v2491
    %2961 = vmatpush1.msra.mxu0 %v2490
    %2962 = vmatprep.subr.mxu0 %v2495
    %2963 = vmatpush1.msra.mxu0 %v2494
    %2964 = vmatprep.subr.mxu0 %v2499
    %2965 = vmatpush1.msra.mxu0 %v2498
    %2966 = vmatprep.subr.mxu0 %v2503
    %2967 = vmatpush1.msra.mxu0 %v2502
    %2968 = vmatprep.subr.mxu0 %v2507
    %2969 = vmatpush1.msra.mxu0 %v2506
    %2970 = vmatprep.subr.mxu0 %v2511
    %2971 = vmatpush1.msra.mxu0 %v2510
    %2972 = vmatprep.subr.mxu0 %v2515
    %2973 = vmatpush1.msra.mxu0 %v2514
    %2974 = vmatprep.subr.mxu0 0.0
    %2975 = vmatpush1.msra.mxu0 0.0
    %2976 = vmatprep.subr.mxu0 0.0
    %2977 = vmatpush1.msra.mxu0 0.0
    %2978 = vmatprep.subr.mxu0 0.0
    %2979 = vmatpush1.msra.mxu0 0.0
    %2980 = vmatprep.subr.mxu0 0.0
    %2981 = vmatpush1.msra.mxu0 0.0
    %2982 = vmatprep.subr.mxu0 0.0
    %2983 = vmatpush1.msra.mxu0 0.0
    %2984 = vmatprep.subr.mxu0 0.0
    %2985 = vmatpush1.msra.mxu0 0.0
    %2986 = vmatprep.subr.mxu0 0.0
    %2987 = vmatpush1.msra.mxu0 0.0
    %2988 = vmatprep.subr.mxu0 0.0
    %2989 = vmatpush1.msra.mxu0 0.0
    %2990 = vmatprep.subr.mxu0 0.0
    %2991 = vmatpush1.msra.mxu0 0.0
    %2992 = vmatprep.subr.mxu0 0.0
    %2993 = vmatpush1.msra.mxu0 0.0
    %2994 = vmatprep.subr.mxu0 0.0
    %2995 = vmatpush1.msra.mxu0 0.0
    %2996 = vmatprep.subr.mxu0 0.0
    %2997 = vmatpush1.msra.mxu0 0.0
    %2998 = vmatprep.subr.mxu0 0.0
    %2999 = vmatpush1.msra.mxu0 0.0
    %3000 = vmatprep.subr.mxu0 0.0
    %3001 = vmatpush1.msra.mxu0 0.0
    %3002 = vmatprep.subr.mxu0 0.0
    %3003 = vmatpush1.msra.mxu0 0.0
    %3004 = vmatprep.subr.mxu0 0.0
    %3005 = vmatpush1.msra.mxu0 0.0
    %3006 = vmatprep.mubr.f32.mxu0 0.0
    %3007 = vmatmul.mubr.f32.gmra.mrb[0].mxu0 %v2864
    %v3008 = vpop.f32.mrb[0].mxu0
    %v3009 = vadd.f32 0.0, %v3008
    %v3010 = vpop.f32.mrb[0].mxu0
    %v3011 = vadd.f32 0.0, %v3010
    %3012 = vdwg.mxu0
    %v3013 = vadd.f32 %v2867, %v2938
    %v3014 = vadd.f32 %v2868, %v2940
    %v3015 = vadd.f32 %v2869, %v3009
    %v3016 = vadd.f32 %v2870, %v3011
    %v3017 = vxor.u32 %v3013, 2147483648
    %v3018 = vmul.f32 %v3017, 1.442695
    %v3019 = vpow.pop %v3018
    %v3020 = vadd.f32 %v3019, 1.0
    %v3021 = vrcp.pop %v3020
    %v3022 = vmul.f32 1.0, %v3021
    %v3023 = vxor.u32 %v3014, 2147483648
    %v3024 = vmul.f32 %v3023, 1.442695
    %v3025 = vpow.pop %v3024
    %v3026 = vadd.f32 %v3025, 1.0
    %v3027 = vrcp.pop %v3026
    %v3028 = vmul.f32 1.0, %v3027
    %v3029 = vtanh.pop %v3015
    %v3030 = vxor.u32 %v3016, 2147483648
    %v3031 = vmul.f32 %v3030, 1.442695
    %v3032 = vpow.pop %v3031
    %v3033 = vadd.f32 %v3032, 1.0
    %v3034 = vrcp.pop %v3033
    %v3035 = vmul.f32 1.0, %v3034
    %v3036 = vmul.f32 %v3028, %v2862
    %v3037 = vmul.f32 %v3022, %v3029
    %v3038 = vadd.f32 %v3036, %v3037
    %v3039 = vtanh.pop %v3038
    %v3040 = vmul.f32 %v3035, %v3039
    %s3041 = scalar_lea.vmem [#allocation4], 16
    %3042 = vst [vmem:[%s3041] sm:$0xff] %v3040
    %v3043 = vld [vmem:[%s1215] sm:$0xff]
    %v3044 = vld [vmem:[%s1215 + $0x8] sm:$0xff]
    %v3045 = vld [vmem:[%s1215 + $0x10] sm:$0xff]
    %v3046 = vld [vmem:[%s1215 + $0x18] sm:$0xff]
    %3047 = vmatprep.subr.mxu0 %v2453
    %3048 = vmatpush1.msra.mxu0 %v2452
    %3049 = vmatprep.subr.mxu0 %v2457
    %3050 = vmatpush1.msra.mxu0 %v2456
    %3051 = vmatprep.subr.mxu0 %v2461
    %3052 = vmatpush1.msra.mxu0 %v2460
    %3053 = vmatprep.subr.mxu0 %v2465
    %3054 = vmatpush1.msra.mxu0 %v2464
    %3055 = vmatprep.subr.mxu0 %v2469
    %3056 = vmatpush1.msra.mxu0 %v2468
    %3057 = vmatprep.subr.mxu0 %v2473
    %3058 = vmatpush1.msra.mxu0 %v2472
    %3059 = vmatprep.subr.mxu0 %v2477
    %3060 = vmatpush1.msra.mxu0 %v2476
    %3061 = vmatprep.subr.mxu0 %v2481
    %3062 = vmatpush1.msra.mxu0 %v2480
    %3063 = vmatprep.subr.mxu0 %v2485
    %3064 = vmatpush1.msra.mxu0 %v2484
    %3065 = vmatprep.subr.mxu0 %v2489
    %3066 = vmatpush1.msra.mxu0 %v2488
    %3067 = vmatprep.subr.mxu0 %v2493
    %3068 = vmatpush1.msra.mxu0 %v2492
    %3069 = vmatprep.subr.mxu0 %v2497
    %3070 = vmatpush1.msra.mxu0 %v2496
    %3071 = vmatprep.subr.mxu0 %v2501
    %3072 = vmatpush1.msra.mxu0 %v2500
    %3073 = vmatprep.subr.mxu0 %v2505
    %3074 = vmatpush1.msra.mxu0 %v2504
    %3075 = vmatprep.subr.mxu0 %v2509
    %3076 = vmatpush1.msra.mxu0 %v2508
    %3077 = vmatprep.subr.mxu0 %v2513
    %3078 = vmatpush1.msra.mxu0 %v2512
    %3079 = vmatprep.subr.mxu0 0.0
    %3080 = vmatpush1.msra.mxu0 0.0
    %3081 = vmatprep.subr.mxu0 0.0
    %3082 = vmatpush1.msra.mxu0 0.0
    %3083 = vmatprep.subr.mxu0 0.0
    %3084 = vmatpush1.msra.mxu0 0.0
    %3085 = vmatprep.subr.mxu0 0.0
    %3086 = vmatpush1.msra.mxu0 0.0
    %3087 = vmatprep.subr.mxu0 0.0
    %3088 = vmatpush1.msra.mxu0 0.0
    %3089 = vmatprep.subr.mxu0 0.0
    %3090 = vmatpush1.msra.mxu0 0.0
    %3091 = vmatprep.subr.mxu0 0.0
    %3092 = vmatpush1.msra.mxu0 0.0
    %3093 = vmatprep.subr.mxu0 0.0
    %3094 = vmatpush1.msra.mxu0 0.0
    %3095 = vmatprep.subr.mxu0 0.0
    %3096 = vmatpush1.msra.mxu0 0.0
    %3097 = vmatprep.subr.mxu0 0.0
    %3098 = vmatpush1.msra.mxu0 0.0
    %3099 = vmatprep.subr.mxu0 0.0
    %3100 = vmatpush1.msra.mxu0 0.0
    %3101 = vmatprep.subr.mxu0 0.0
    %3102 = vmatpush1.msra.mxu0 0.0
    %3103 = vmatprep.subr.mxu0 0.0
    %3104 = vmatpush1.msra.mxu0 0.0
    %3105 = vmatprep.subr.mxu0 0.0
    %3106 = vmatpush1.msra.mxu0 0.0
    %3107 = vmatprep.subr.mxu0 0.0
    %3108 = vmatpush1.msra.mxu0 0.0
    %3109 = vmatprep.subr.mxu0 0.0
    %3110 = vmatpush1.msra.mxu0 0.0
    %3111 = vmatprep.mubr.f32.mxu0 0.0
    %3112 = vmatmul.mubr.f32.gmra.mrb[0].mxu0 %v3040
    %v3113 = vpop.f32.mrb[0].mxu0
    %v3114 = vadd.f32 0.0, %v3113
    %v3115 = vpop.f32.mrb[0].mxu0
    %v3116 = vadd.f32 0.0, %v3115
    %3117 = vdwg.mxu0
    %3118 = vmatprep.subr.mxu0 %v2455
    %3119 = vmatpush1.msra.mxu0 %v2454
    %3120 = vmatprep.subr.mxu0 %v2459
    %3121 = vmatpush1.msra.mxu0 %v2458
    %3122 = vmatprep.subr.mxu0 %v2463
    %3123 = vmatpush1.msra.mxu0 %v2462
    %3124 = vmatprep.subr.mxu0 %v2467
    %3125 = vmatpush1.msra.mxu0 %v2466
    %3126 = vmatprep.subr.mxu0 %v2471
    %3127 = vmatpush1.msra.mxu0 %v2470
    %3128 = vmatprep.subr.mxu0 %v2475
    %3129 = vmatpush1.msra.mxu0 %v2474
    %3130 = vmatprep.subr.mxu0 %v2479
    %3131 = vmatpush1.msra.mxu0 %v2478
    %3132 = vmatprep.subr.mxu0 %v2483
    %3133 = vmatpush1.msra.mxu0 %v2482
    %3134 = vmatprep.subr.mxu0 %v2487
    %3135 = vmatpush1.msra.mxu0 %v2486
    %3136 = vmatprep.subr.mxu0 %v2491
    %3137 = vmatpush1.msra.mxu0 %v2490
    %3138 = vmatprep.subr.mxu0 %v2495
    %3139 = vmatpush1.msra.mxu0 %v2494
    %3140 = vmatprep.subr.mxu0 %v2499
    %3141 = vmatpush1.msra.mxu0 %v2498
    %3142 = vmatprep.subr.mxu0 %v2503
    %3143 = vmatpush1.msra.mxu0 %v2502
    %3144 = vmatprep.subr.mxu0 %v2507
    %3145 = vmatpush1.msra.mxu0 %v2506
    %3146 = vmatprep.subr.mxu0 %v2511
    %3147 = vmatpush1.msra.mxu0 %v2510
    %3148 = vmatprep.subr.mxu0 %v2515
    %3149 = vmatpush1.msra.mxu0 %v2514
    %3150 = vmatprep.subr.mxu0 0.0
    %3151 = vmatpush1.msra.mxu0 0.0
    %3152 = vmatprep.subr.mxu0 0.0
    %3153 = vmatpush1.msra.mxu0 0.0
    %3154 = vmatprep.subr.mxu0 0.0
    %3155 = vmatpush1.msra.mxu0 0.0
    %3156 = vmatprep.subr.mxu0 0.0
    %3157 = vmatpush1.msra.mxu0 0.0
    %3158 = vmatprep.subr.mxu0 0.0
    %3159 = vmatpush1.msra.mxu0 0.0
    %3160 = vmatprep.subr.mxu0 0.0
    %3161 = vmatpush1.msra.mxu0 0.0
    %3162 = vmatprep.subr.mxu0 0.0
    %3163 = vmatpush1.msra.mxu0 0.0
    %3164 = vmatprep.subr.mxu0 0.0
    %3165 = vmatpush1.msra.mxu0 0.0
    %3166 = vmatprep.subr.mxu0 0.0
    %3167 = vmatpush1.msra.mxu0 0.0
    %3168 = vmatprep.subr.mxu0 0.0
    %3169 = vmatpush1.msra.mxu0 0.0
    %3170 = vmatprep.subr.mxu0 0.0
    %3171 = vmatpush1.msra.mxu0 0.0
    %3172 = vmatprep.subr.mxu0 0.0
    %3173 = vmatpush1.msra.mxu0 0.0
    %3174 = vmatprep.subr.mxu0 0.0
    %3175 = vmatpush1.msra.mxu0 0.0
    %3176 = vmatprep.subr.mxu0 0.0
    %3177 = vmatpush1.msra.mxu0 0.0
    %3178 = vmatprep.subr.mxu0 0.0
    %3179 = vmatpush1.msra.mxu0 0.0
    %3180 = vmatprep.subr.mxu0 0.0
    %3181 = vmatpush1.msra.mxu0 0.0
    %3182 = vmatprep.mubr.f32.mxu0 0.0
    %3183 = vmatmul.mubr.f32.gmra.mrb[0].mxu0 %v3040
    %v3184 = vpop.f32.mrb[0].mxu0
    %v3185 = vadd.f32 0.0, %v3184
    %v3186 = vpop.f32.mrb[0].mxu0
    %v3187 = vadd.f32 0.0, %v3186
    %3188 = vdwg.mxu0
    %v3189 = vadd.f32 %v3043, %v3114
    %v3190 = vadd.f32 %v3044, %v3116
    %v3191 = vadd.f32 %v3045, %v3185
    %v3192 = vadd.f32 %v3046, %v3187
    %v3193 = vxor.u32 %v3189, 2147483648
    %v3194 = vmul.f32 %v3193, 1.442695
    %v3195 = vpow.pop %v3194
    %v3196 = vadd.f32 %v3195, 1.0
    %v3197 = vrcp.pop %v3196
    %v3198 = vmul.f32 1.0, %v3197
    %v3199 = vxor.u32 %v3190, 2147483648
    %v3200 = vmul.f32 %v3199, 1.442695
    %v3201 = vpow.pop %v3200
    %v3202 = vadd.f32 %v3201, 1.0
    %v3203 = vrcp.pop %v3202
    %v3204 = vmul.f32 1.0, %v3203
    %v3205 = vtanh.pop %v3191
    %v3206 = vxor.u32 %v3192, 2147483648
    %v3207 = vmul.f32 %v3206, 1.442695
    %v3208 = vpow.pop %v3207
    %v3209 = vadd.f32 %v3208, 1.0
    %v3210 = vrcp.pop %v3209
    %v3211 = vmul.f32 1.0, %v3210
    %v3212 = vmul.f32 %v3204, %v3038
    %v3213 = vmul.f32 %v3198, %v3205
    %v3214 = vadd.f32 %v3212, %v3213
    %v3215 = vtanh.pop %v3214
    %v3216 = vmul.f32 %v3211, %v3215
    %s3217 = scalar_lea.vmem [#allocation4], 24
    %3218 = vst [vmem:[%s3217] sm:$0xff] %v3216
    %v3219 = vld [vmem:[%s1392] sm:$0xff]
    %v3220 = vld [vmem:[%s1392 + $0x8] sm:$0xff]
    %v3221 = vld [vmem:[%s1392 + $0x10] sm:$0xff]
    %v3222 = vld [vmem:[%s1392 + $0x18] sm:$0xff]
    %3223 = vmatprep.subr.mxu0 %v2453
    %3224 = vmatpush1.msra.mxu0 %v2452
    %3225 = vmatprep.subr.mxu0 %v2457
    %3226 = vmatpush1.msra.mxu0 %v2456
    %3227 = vmatprep.subr.mxu0 %v2461
    %3228 = vmatpush1.msra.mxu0 %v2460
    %3229 = vmatprep.subr.mxu0 %v2465
    %3230 = vmatpush1.msra.mxu0 %v2464
    %3231 = vmatprep.subr.mxu0 %v2469
    %3232 = vmatpush1.msra.mxu0 %v2468
    %3233 = vmatprep.subr.mxu0 %v2473
    %3234 = vmatpush1.msra.mxu0 %v2472
    %3235 = vmatprep.subr.mxu0 %v2477
    %3236 = vmatpush1.msra.mxu0 %v2476
    %3237 = vmatprep.subr.mxu0 %v2481
    %3238 = vmatpush1.msra.mxu0 %v2480
    %3239 = vmatprep.subr.mxu0 %v2485
    %3240 = vmatpush1.msra.mxu0 %v2484
    %3241 = vmatprep.subr.mxu0 %v2489
    %3242 = vmatpush1.msra.mxu0 %v2488
    %3243 = vmatprep.subr.mxu0 %v2493
    %3244 = vmatpush1.msra.mxu0 %v2492
    %3245 = vmatprep.subr.mxu0 %v2497
    %3246 = vmatpush1.msra.mxu0 %v2496
    %3247 = vmatprep.subr.mxu0 %v2501
    %3248 = vmatpush1.msra.mxu0 %v2500
    %3249 = vmatprep.subr.mxu0 %v2505
    %3250 = vmatpush1.msra.mxu0 %v2504
    %3251 = vmatprep.subr.mxu0 %v2509
    %3252 = vmatpush1.msra.mxu0 %v2508
    %3253 = vmatprep.subr.mxu0 %v2513
    %3254 = vmatpush1.msra.mxu0 %v2512
    %3255 = vmatprep.subr.mxu0 0.0
    %3256 = vmatpush1.msra.mxu0 0.0
    %3257 = vmatprep.subr.mxu0 0.0
    %3258 = vmatpush1.msra.mxu0 0.0
    %3259 = vmatprep.subr.mxu0 0.0
    %3260 = vmatpush1.msra.mxu0 0.0
    %3261 = vmatprep.subr.mxu0 0.0
    %3262 = vmatpush1.msra.mxu0 0.0
    %3263 = vmatprep.subr.mxu0 0.0
    %3264 = vmatpush1.msra.mxu0 0.0
    %3265 = vmatprep.subr.mxu0 0.0
    %3266 = vmatpush1.msra.mxu0 0.0
    %3267 = vmatprep.subr.mxu0 0.0
    %3268 = vmatpush1.msra.mxu0 0.0
    %3269 = vmatprep.subr.mxu0 0.0
    %3270 = vmatpush1.msra.mxu0 0.0
    %3271 = vmatprep.subr.mxu0 0.0
    %3272 = vmatpush1.msra.mxu0 0.0
    %3273 = vmatprep.subr.mxu0 0.0
    %3274 = vmatpush1.msra.mxu0 0.0
    %3275 = vmatprep.subr.mxu0 0.0
    %3276 = vmatpush1.msra.mxu0 0.0
    %3277 = vmatprep.subr.mxu0 0.0
    %3278 = vmatpush1.msra.mxu0 0.0
    %3279 = vmatprep.subr.mxu0 0.0
    %3280 = vmatpush1.msra.mxu0 0.0
    %3281 = vmatprep.subr.mxu0 0.0
    %3282 = vmatpush1.msra.mxu0 0.0
    %3283 = vmatprep.subr.mxu0 0.0
    %3284 = vmatpush1.msra.mxu0 0.0
    %3285 = vmatprep.subr.mxu0 0.0
    %3286 = vmatpush1.msra.mxu0 0.0
    %3287 = vmatprep.mubr.f32.mxu0 0.0
    %3288 = vmatmul.mubr.f32.gmra.mrb[0].mxu0 %v3216
    %v3289 = vpop.f32.mrb[0].mxu0
    %v3290 = vadd.f32 0.0, %v3289
    %v3291 = vpop.f32.mrb[0].mxu0
    %v3292 = vadd.f32 0.0, %v3291
    %3293 = vdwg.mxu0
    %3294 = vmatprep.subr.mxu0 %v2455
    %3295 = vmatpush1.msra.mxu0 %v2454
    %3296 = vmatprep.subr.mxu0 %v2459
    %3297 = vmatpush1.msra.mxu0 %v2458
    %3298 = vmatprep.subr.mxu0 %v2463
    %3299 = vmatpush1.msra.mxu0 %v2462
    %3300 = vmatprep.subr.mxu0 %v2467
    %3301 = vmatpush1.msra.mxu0 %v2466
    %3302 = vmatprep.subr.mxu0 %v2471
    %3303 = vmatpush1.msra.mxu0 %v2470
    %3304 = vmatprep.subr.mxu0 %v2475
    %3305 = vmatpush1.msra.mxu0 %v2474
    %3306 = vmatprep.subr.mxu0 %v2479
    %3307 = vmatpush1.msra.mxu0 %v2478
    %3308 = vmatprep.subr.mxu0 %v2483
    %3309 = vmatpush1.msra.mxu0 %v2482
    %3310 = vmatprep.subr.mxu0 %v2487
    %3311 = vmatpush1.msra.mxu0 %v2486
    %3312 = vmatprep.subr.mxu0 %v2491
    %3313 = vmatpush1.msra.mxu0 %v2490
    %3314 = vmatprep.subr.mxu0 %v2495
    %3315 = vmatpush1.msra.mxu0 %v2494
    %3316 = vmatprep.subr.mxu0 %v2499
    %3317 = vmatpush1.msra.mxu0 %v2498
    %3318 = vmatprep.subr.mxu0 %v2503
    %3319 = vmatpush1.msra.mxu0 %v2502
    %3320 = vmatprep.subr.mxu0 %v2507
    %3321 = vmatpush1.msra.mxu0 %v2506
    %3322 = vmatprep.subr.mxu0 %v2511
    %3323 = vmatpush1.msra.mxu0 %v2510
    %3324 = vmatprep.subr.mxu0 %v2515
    %3325 = vmatpush1.msra.mxu0 %v2514
    %3326 = vmatprep.subr.mxu0 0.0
    %3327 = vmatpush1.msra.mxu0 0.0
    %3328 = vmatprep.subr.mxu0 0.0
    %3329 = vmatpush1.msra.mxu0 0.0
    %3330 = vmatprep.subr.mxu0 0.0
    %3331 = vmatpush1.msra.mxu0 0.0
    %3332 = vmatprep.subr.mxu0 0.0
    %3333 = vmatpush1.msra.mxu0 0.0
    %3334 = vmatprep.subr.mxu0 0.0
    %3335 = vmatpush1.msra.mxu0 0.0
    %3336 = vmatprep.subr.mxu0 0.0
    %3337 = vmatpush1.msra.mxu0 0.0
    %3338 = vmatprep.subr.mxu0 0.0
    %3339 = vmatpush1.msra.mxu0 0.0
    %3340 = vmatprep.subr.mxu0 0.0
    %3341 = vmatpush1.msra.mxu0 0.0
    %3342 = vmatprep.subr.mxu0 0.0
    %3343 = vmatpush1.msra.mxu0 0.0
    %3344 = vmatprep.subr.mxu0 0.0
    %3345 = vmatpush1.msra.mxu0 0.0
    %3346 = vmatprep.subr.mxu0 0.0
    %3347 = vmatpush1.msra.mxu0 0.0
    %3348 = vmatprep.subr.mxu0 0.0
    %3349 = vmatpush1.msra.mxu0 0.0
    %3350 = vmatprep.subr.mxu0 0.0
    %3351 = vmatpush1.msra.mxu0 0.0
    %3352 = vmatprep.subr.mxu0 0.0
    %3353 = vmatpush1.msra.mxu0 0.0
    %3354 = vmatprep.subr.mxu0 0.0
    %3355 = vmatpush1.msra.mxu0 0.0
    %3356 = vmatprep.subr.mxu0 0.0
    %3357 = vmatpush1.msra.mxu0 0.0
    %3358 = vmatprep.mubr.f32.mxu0 0.0
    %3359 = vmatmul.mubr.f32.gmra.mrb[0].mxu0 %v3216
    %v3360 = vpop.f32.mrb[0].mxu0
    %v3361 = vadd.f32 0.0, %v3360
    %v3362 = vpop.f32.mrb[0].mxu0
    %v3363 = vadd.f32 0.0, %v3362
    %3364 = vdwg.mxu0
    %v3365 = vadd.f32 %v3219, %v3290
    %v3366 = vadd.f32 %v3220, %v3292
    %v3367 = vadd.f32 %v3221, %v3361
    %v3368 = vadd.f32 %v3222, %v3363
    %v3369 = vxor.u32 %v3365, 2147483648
    %v3370 = vmul.f32 %v3369, 1.442695
    %v3371 = vpow.pop %v3370
    %v3372 = vadd.f32 %v3371, 1.0
    %v3373 = vrcp.pop %v3372
    %v3374 = vmul.f32 1.0, %v3373
    %v3375 = vxor.u32 %v3366, 2147483648
    %v3376 = vmul.f32 %v3375, 1.442695
    %v3377 = vpow.pop %v3376
    %v3378 = vadd.f32 %v3377, 1.0
    %v3379 = vrcp.pop %v3378
    %v3380 = vmul.f32 1.0, %v3379
    %v3381 = vtanh.pop %v3367
    %v3382 = vxor.u32 %v3368, 2147483648
    %v3383 = vmul.f32 %v3382, 1.442695
    %v3384 = vpow.pop %v3383
    %v3385 = vadd.f32 %v3384, 1.0
    %v3386 = vrcp.pop %v3385
    %v3387 = vmul.f32 1.0, %v3386
    %v3388 = vmul.f32 %v3380, %v3214
    %v3389 = vmul.f32 %v3374, %v3381
    %v3390 = vadd.f32 %v3388, %v3389
    %v3391 = vtanh.pop %v3390
    %v3392 = vmul.f32 %v3387, %v3391
    %s3393 = scalar_lea.vmem [#allocation4], 32
    %3394 = vst [vmem:[%s3393] sm:$0xff] %v3392
    %v3395 = vld [vmem:[%s1569] sm:$0xff]
    %v3396 = vld [vmem:[%s1569 + $0x8] sm:$0xff]
    %v3397 = vld [vmem:[%s1569 + $0x10] sm:$0xff]
    %v3398 = vld [vmem:[%s1569 + $0x18] sm:$0xff]
    %3399 = vmatprep.subr.mxu0 %v2453
    %3400 = vmatpush1.msra.mxu0 %v2452
    %3401 = vmatprep.subr.mxu0 %v2457
    %3402 = vmatpush1.msra.mxu0 %v2456
    %3403 = vmatprep.subr.mxu0 %v2461
    %3404 = vmatpush1.msra.mxu0 %v2460
    %3405 = vmatprep.subr.mxu0 %v2465
    %3406 = vmatpush1.msra.mxu0 %v2464
    %3407 = vmatprep.subr.mxu0 %v2469
    %3408 = vmatpush1.msra.mxu0 %v2468
    %3409 = vmatprep.subr.mxu0 %v2473
    %3410 = vmatpush1.msra.mxu0 %v2472
    %3411 = vmatprep.subr.mxu0 %v2477
    %3412 = vmatpush1.msra.mxu0 %v2476
    %3413 = vmatprep.subr.mxu0 %v2481
    %3414 = vmatpush1.msra.mxu0 %v2480
    %3415 = vmatprep.subr.mxu0 %v2485
    %3416 = vmatpush1.msra.mxu0 %v2484
    %3417 = vmatprep.subr.mxu0 %v2489
    %3418 = vmatpush1.msra.mxu0 %v2488
    %3419 = vmatprep.subr.mxu0 %v2493
    %3420 = vmatpush1.msra.mxu0 %v2492
    %3421 = vmatprep.subr.mxu0 %v2497
    %3422 = vmatpush1.msra.mxu0 %v2496
    %3423 = vmatprep.subr.mxu0 %v2501
    %3424 = vmatpush1.msra.mxu0 %v2500
    %3425 = vmatprep.subr.mxu0 %v2505
    %3426 = vmatpush1.msra.mxu0 %v2504
    %3427 = vmatprep.subr.mxu0 %v2509
    %3428 = vmatpush1.msra.mxu0 %v2508
    %3429 = vmatprep.subr.mxu0 %v2513
    %3430 = vmatpush1.msra.mxu0 %v2512
    %3431 = vmatprep.subr.mxu0 0.0
    %3432 = vmatpush1.msra.mxu0 0.0
    %3433 = vmatprep.subr.mxu0 0.0
    %3434 = vmatpush1.msra.mxu0 0.0
    %3435 = vmatprep.subr.mxu0 0.0
    %3436 = vmatpush1.msra.mxu0 0.0
    %3437 = vmatprep.subr.mxu0 0.0
    %3438 = vmatpush1.msra.mxu0 0.0
    %3439 = vmatprep.subr.mxu0 0.0
    %3440 = vmatpush1.msra.mxu0 0.0
    %3441 = vmatprep.subr.mxu0 0.0
    %3442 = vmatpush1.msra.mxu0 0.0
    %3443 = vmatprep.subr.mxu0 0.0
    %3444 = vmatpush1.msra.mxu0 0.0
    %3445 = vmatprep.subr.mxu0 0.0
    %3446 = vmatpush1.msra.mxu0 0.0
    %3447 = vmatprep.subr.mxu0 0.0
    %3448 = vmatpush1.msra.mxu0 0.0
    %3449 = vmatprep.subr.mxu0 0.0
    %3450 = vmatpush1.msra.mxu0 0.0
    %3451 = vmatprep.subr.mxu0 0.0
    %3452 = vmatpush1.msra.mxu0 0.0
    %3453 = vmatprep.subr.mxu0 0.0
    %3454 = vmatpush1.msra.mxu0 0.0
    %3455 = vmatprep.subr.mxu0 0.0
    %3456 = vmatpush1.msra.mxu0 0.0
    %3457 = vmatprep.subr.mxu0 0.0
    %3458 = vmatpush1.msra.mxu0 0.0
    %3459 = vmatprep.subr.mxu0 0.0
    %3460 = vmatpush1.msra.mxu0 0.0
    %3461 = vmatprep.subr.mxu0 0.0
    %3462 = vmatpush1.msra.mxu0 0.0
    %3463 = vmatprep.mubr.f32.mxu0 0.0
    %3464 = vmatmul.mubr.f32.gmra.mrb[0].mxu0 %v3392
    %v3465 = vpop.f32.mrb[0].mxu0
    %v3466 = vadd.f32 0.0, %v3465
    %v3467 = vpop.f32.mrb[0].mxu0
    %v3468 = vadd.f32 0.0, %v3467
    %3469 = vdwg.mxu0
    %3470 = vmatprep.subr.mxu0 %v2455
    %3471 = vmatpush1.msra.mxu0 %v2454
    %3472 = vmatprep.subr.mxu0 %v2459
    %3473 = vmatpush1.msra.mxu0 %v2458
    %3474 = vmatprep.subr.mxu0 %v2463
    %3475 = vmatpush1.msra.mxu0 %v2462
    %3476 = vmatprep.subr.mxu0 %v2467
    %3477 = vmatpush1.msra.mxu0 %v2466
    %3478 = vmatprep.subr.mxu0 %v2471
    %3479 = vmatpush1.msra.mxu0 %v2470
    %3480 = vmatprep.subr.mxu0 %v2475
    %3481 = vmatpush1.msra.mxu0 %v2474
    %3482 = vmatprep.subr.mxu0 %v2479
    %3483 = vmatpush1.msra.mxu0 %v2478
    %3484 = vmatprep.subr.mxu0 %v2483
    %3485 = vmatpush1.msra.mxu0 %v2482
    %3486 = vmatprep.subr.mxu0 %v2487
    %3487 = vmatpush1.msra.mxu0 %v2486
    %3488 = vmatprep.subr.mxu0 %v2491
    %3489 = vmatpush1.msra.mxu0 %v2490
    %3490 = vmatprep.subr.mxu0 %v2495
    %3491 = vmatpush1.msra.mxu0 %v2494
    %3492 = vmatprep.subr.mxu0 %v2499
    %3493 = vmatpush1.msra.mxu0 %v2498
    %3494 = vmatprep.subr.mxu0 %v2503
    %3495 = vmatpush1.msra.mxu0 %v2502
    %3496 = vmatprep.subr.mxu0 %v2507
    %3497 = vmatpush1.msra.mxu0 %v2506
    %3498 = vmatprep.subr.mxu0 %v2511
    %3499 = vmatpush1.msra.mxu0 %v2510
    %3500 = vmatprep.subr.mxu0 %v2515
    %3501 = vmatpush1.msra.mxu0 %v2514
    %3502 = vmatprep.subr.mxu0 0.0
    %3503 = vmatpush1.msra.mxu0 0.0
    %3504 = vmatprep.subr.mxu0 0.0
    %3505 = vmatpush1.msra.mxu0 0.0
    %3506 = vmatprep.subr.mxu0 0.0
    %3507 = vmatpush1.msra.mxu0 0.0
    %3508 = vmatprep.subr.mxu0 0.0
    %3509 = vmatpush1.msra.mxu0 0.0
    %3510 = vmatprep.subr.mxu0 0.0
    %3511 = vmatpush1.msra.mxu0 0.0
    %3512 = vmatprep.subr.mxu0 0.0
    %3513 = vmatpush1.msra.mxu0 0.0
    %3514 = vmatprep.subr.mxu0 0.0
    %3515 = vmatpush1.msra.mxu0 0.0
    %3516 = vmatprep.subr.mxu0 0.0
    %3517 = vmatpush1.msra.mxu0 0.0
    %3518 = vmatprep.subr.mxu0 0.0
    %3519 = vmatpush1.msra.mxu0 0.0
    %3520 = vmatprep.subr.mxu0 0.0
    %3521 = vmatpush1.msra.mxu0 0.0
    %3522 = vmatprep.subr.mxu0 0.0
    %3523 = vmatpush1.msra.mxu0 0.0
    %3524 = vmatprep.subr.mxu0 0.0
    %3525 = vmatpush1.msra.mxu0 0.0
    %3526 = vmatprep.subr.mxu0 0.0
    %3527 = vmatpush1.msra.mxu0 0.0
    %3528 = vmatprep.subr.mxu0 0.0
    %3529 = vmatpush1.msra.mxu0 0.0
    %3530 = vmatprep.subr.mxu0 0.0
    %3531 = vmatpush1.msra.mxu0 0.0
    %3532 = vmatprep.subr.mxu0 0.0
    %3533 = vmatpush1.msra.mxu0 0.0
    %3534 = vmatprep.mubr.f32.mxu0 0.0
    %3535 = vmatmul.mubr.f32.gmra.mrb[0].mxu0 %v3392
    %v3536 = vpop.f32.mrb[0].mxu0
    %v3537 = vadd.f32 0.0, %v3536
    %v3538 = vpop.f32.mrb[0].mxu0
    %v3539 = vadd.f32 0.0, %v3538
    %3540 = vdwg.mxu0
    %v3541 = vadd.f32 %v3395, %v3466
    %v3542 = vadd.f32 %v3396, %v3468
    %v3543 = vadd.f32 %v3397, %v3537
    %v3544 = vadd.f32 %v3398, %v3539
    %v3545 = vxor.u32 %v3541, 2147483648
    %v3546 = vmul.f32 %v3545, 1.442695
    %v3547 = vpow.pop %v3546
    %v3548 = vadd.f32 %v3547, 1.0
    %v3549 = vrcp.pop %v3548
    %v3550 = vmul.f32 1.0, %v3549
    %v3551 = vxor.u32 %v3542, 2147483648
    %v3552 = vmul.f32 %v3551, 1.442695
    %v3553 = vpow.pop %v3552
    %v3554 = vadd.f32 %v3553, 1.0
    %v3555 = vrcp.pop %v3554
    %v3556 = vmul.f32 1.0, %v3555
    %v3557 = vtanh.pop %v3543
    %v3558 = vxor.u32 %v3544, 2147483648
    %v3559 = vmul.f32 %v3558, 1.442695
    %v3560 = vpow.pop %v3559
    %v3561 = vadd.f32 %v3560, 1.0
    %v3562 = vrcp.pop %v3561
    %v3563 = vmul.f32 1.0, %v3562
    %v3564 = vmul.f32 %v3556, %v3390
    %v3565 = vmul.f32 %v3550, %v3557
    %v3566 = vadd.f32 %v3564, %v3565
    %v3567 = vtanh.pop %v3566
    %v3568 = vmul.f32 %v3563, %v3567
    %s3569 = scalar_lea.vmem [#allocation4], 40
    %3570 = vst [vmem:[%s3569] sm:$0xff] %v3568
    %v3571 = vld [vmem:[%s1746] sm:$0xff]
    %v3572 = vld [vmem:[%s1746 + $0x8] sm:$0xff]
    %v3573 = vld [vmem:[%s1746 + $0x10] sm:$0xff]
    %v3574 = vld [vmem:[%s1746 + $0x18] sm:$0xff]
    %3575 = vmatprep.subr.mxu0 %v2453
    %3576 = vmatpush1.msra.mxu0 %v2452
    %3577 = vmatprep.subr.mxu0 %v2457
    %3578 = vmatpush1.msra.mxu0 %v2456
    %3579 = vmatprep.subr.mxu0 %v2461
    %3580 = vmatpush1.msra.mxu0 %v2460
    %3581 = vmatprep.subr.mxu0 %v2465
    %3582 = vmatpush1.msra.mxu0 %v2464
    %3583 = vmatprep.subr.mxu0 %v2469
    %3584 = vmatpush1.msra.mxu0 %v2468
    %3585 = vmatprep.subr.mxu0 %v2473
    %3586 = vmatpush1.msra.mxu0 %v2472
    %3587 = vmatprep.subr.mxu0 %v2477
    %3588 = vmatpush1.msra.mxu0 %v2476
    %3589 = vmatprep.subr.mxu0 %v2481
    %3590 = vmatpush1.msra.mxu0 %v2480
    %3591 = vmatprep.subr.mxu0 %v2485
    %3592 = vmatpush1.msra.mxu0 %v2484
    %3593 = vmatprep.subr.mxu0 %v2489
    %3594 = vmatpush1.msra.mxu0 %v2488
    %3595 = vmatprep.subr.mxu0 %v2493
    %3596 = vmatpush1.msra.mxu0 %v2492
    %3597 = vmatprep.subr.mxu0 %v2497
    %3598 = vmatpush1.msra.mxu0 %v2496
    %3599 = vmatprep.subr.mxu0 %v2501
    %3600 = vmatpush1.msra.mxu0 %v2500
    %3601 = vmatprep.subr.mxu0 %v2505
    %3602 = vmatpush1.msra.mxu0 %v2504
    %3603 = vmatprep.subr.mxu0 %v2509
    %3604 = vmatpush1.msra.mxu0 %v2508
    %3605 = vmatprep.subr.mxu0 %v2513
    %3606 = vmatpush1.msra.mxu0 %v2512
    %3607 = vmatprep.subr.mxu0 0.0
    %3608 = vmatpush1.msra.mxu0 0.0
    %3609 = vmatprep.subr.mxu0 0.0
    %3610 = vmatpush1.msra.mxu0 0.0
    %3611 = vmatprep.subr.mxu0 0.0
    %3612 = vmatpush1.msra.mxu0 0.0
    %3613 = vmatprep.subr.mxu0 0.0
    %3614 = vmatpush1.msra.mxu0 0.0
    %3615 = vmatprep.subr.mxu0 0.0
    %3616 = vmatpush1.msra.mxu0 0.0
    %3617 = vmatprep.subr.mxu0 0.0
    %3618 = vmatpush1.msra.mxu0 0.0
    %3619 = vmatprep.subr.mxu0 0.0
    %3620 = vmatpush1.msra.mxu0 0.0
    %3621 = vmatprep.subr.mxu0 0.0
    %3622 = vmatpush1.msra.mxu0 0.0
    %3623 = vmatprep.subr.mxu0 0.0
    %3624 = vmatpush1.msra.mxu0 0.0
    %3625 = vmatprep.subr.mxu0 0.0
    %3626 = vmatpush1.msra.mxu0 0.0
    %3627 = vmatprep.subr.mxu0 0.0
    %3628 = vmatpush1.msra.mxu0 0.0
    %3629 = vmatprep.subr.mxu0 0.0
    %3630 = vmatpush1.msra.mxu0 0.0
    %3631 = vmatprep.subr.mxu0 0.0
    %3632 = vmatpush1.msra.mxu0 0.0
    %3633 = vmatprep.subr.mxu0 0.0
    %3634 = vmatpush1.msra.mxu0 0.0
    %3635 = vmatprep.subr.mxu0 0.0
    %3636 = vmatpush1.msra.mxu0 0.0
    %3637 = vmatprep.subr.mxu0 0.0
    %3638 = vmatpush1.msra.mxu0 0.0
    %3639 = vmatprep.mubr.f32.mxu0 0.0
    %3640 = vmatmul.mubr.f32.gmra.mrb[0].mxu0 %v3568
    %v3641 = vpop.f32.mrb[0].mxu0
    %v3642 = vadd.f32 0.0, %v3641
    %v3643 = vpop.f32.mrb[0].mxu0
    %v3644 = vadd.f32 0.0, %v3643
    %3645 = vdwg.mxu0
    %3646 = vmatprep.subr.mxu0 %v2455
    %3647 = vmatpush1.msra.mxu0 %v2454
    %3648 = vmatprep.subr.mxu0 %v2459
    %3649 = vmatpush1.msra.mxu0 %v2458
    %3650 = vmatprep.subr.mxu0 %v2463
    %3651 = vmatpush1.msra.mxu0 %v2462
    %3652 = vmatprep.subr.mxu0 %v2467
    %3653 = vmatpush1.msra.mxu0 %v2466
    %3654 = vmatprep.subr.mxu0 %v2471
    %3655 = vmatpush1.msra.mxu0 %v2470
    %3656 = vmatprep.subr.mxu0 %v2475
    %3657 = vmatpush1.msra.mxu0 %v2474
    %3658 = vmatprep.subr.mxu0 %v2479
    %3659 = vmatpush1.msra.mxu0 %v2478
    %3660 = vmatprep.subr.mxu0 %v2483
    %3661 = vmatpush1.msra.mxu0 %v2482
    %3662 = vmatprep.subr.mxu0 %v2487
    %3663 = vmatpush1.msra.mxu0 %v2486
    %3664 = vmatprep.subr.mxu0 %v2491
    %3665 = vmatpush1.msra.mxu0 %v2490
    %3666 = vmatprep.subr.mxu0 %v2495
    %3667 = vmatpush1.msra.mxu0 %v2494
    %3668 = vmatprep.subr.mxu0 %v2499
    %3669 = vmatpush1.msra.mxu0 %v2498
    %3670 = vmatprep.subr.mxu0 %v2503
    %3671 = vmatpush1.msra.mxu0 %v2502
    %3672 = vmatprep.subr.mxu0 %v2507
    %3673 = vmatpush1.msra.mxu0 %v2506
    %3674 = vmatprep.subr.mxu0 %v2511
    %3675 = vmatpush1.msra.mxu0 %v2510
    %3676 = vmatprep.subr.mxu0 %v2515
    %3677 = vmatpush1.msra.mxu0 %v2514
    %3678 = vmatprep.subr.mxu0 0.0
    %3679 = vmatpush1.msra.mxu0 0.0
    %3680 = vmatprep.subr.mxu0 0.0
    %3681 = vmatpush1.msra.mxu0 0.0
    %3682 = vmatprep.subr.mxu0 0.0
    %3683 = vmatpush1.msra.mxu0 0.0
    %3684 = vmatprep.subr.mxu0 0.0
    %3685 = vmatpush1.msra.mxu0 0.0
    %3686 = vmatprep.subr.mxu0 0.0
    %3687 = vmatpush1.msra.mxu0 0.0
    %3688 = vmatprep.subr.mxu0 0.0
    %3689 = vmatpush1.msra.mxu0 0.0
    %3690 = vmatprep.subr.mxu0 0.0
    %3691 = vmatpush1.msra.mxu0 0.0
    %3692 = vmatprep.subr.mxu0 0.0
    %3693 = vmatpush1.msra.mxu0 0.0
    %3694 = vmatprep.subr.mxu0 0.0
    %3695 = vmatpush1.msra.mxu0 0.0
    %3696 = vmatprep.subr.mxu0 0.0
    %3697 = vmatpush1.msra.mxu0 0.0
    %3698 = vmatprep.subr.mxu0 0.0
    %3699 = vmatpush1.msra.mxu0 0.0
    %3700 = vmatprep.subr.mxu0 0.0
    %3701 = vmatpush1.msra.mxu0 0.0
    %3702 = vmatprep.subr.mxu0 0.0
    %3703 = vmatpush1.msra.mxu0 0.0
    %3704 = vmatprep.subr.mxu0 0.0
    %3705 = vmatpush1.msra.mxu0 0.0
    %3706 = vmatprep.subr.mxu0 0.0
    %3707 = vmatpush1.msra.mxu0 0.0
    %3708 = vmatprep.subr.mxu0 0.0
    %3709 = vmatpush1.msra.mxu0 0.0
    %3710 = vmatprep.mubr.f32.mxu0 0.0
    %3711 = vmatmul.mubr.f32.gmra.mrb[0].mxu0 %v3568
    %v3712 = vpop.f32.mrb[0].mxu0
    %v3713 = vadd.f32 0.0, %v3712
    %v3714 = vpop.f32.mrb[0].mxu0
    %v3715 = vadd.f32 0.0, %v3714
    %3716 = vdwg.mxu0
    %v3717 = vadd.f32 %v3571, %v3642
    %v3718 = vadd.f32 %v3572, %v3644
    %v3719 = vadd.f32 %v3573, %v3713
    %v3720 = vadd.f32 %v3574, %v3715
    %v3721 = vxor.u32 %v3717, 2147483648
    %v3722 = vmul.f32 %v3721, 1.442695
    %v3723 = vpow.pop %v3722
    %v3724 = vadd.f32 %v3723, 1.0
    %v3725 = vrcp.pop %v3724
    %v3726 = vmul.f32 1.0, %v3725
    %v3727 = vxor.u32 %v3718, 2147483648
    %v3728 = vmul.f32 %v3727, 1.442695
    %v3729 = vpow.pop %v3728
    %v3730 = vadd.f32 %v3729, 1.0
    %v3731 = vrcp.pop %v3730
    %v3732 = vmul.f32 1.0, %v3731
    %v3733 = vtanh.pop %v3719
    %v3734 = vxor.u32 %v3720, 2147483648
    %v3735 = vmul.f32 %v3734, 1.442695
    %v3736 = vpow.pop %v3735
    %v3737 = vadd.f32 %v3736, 1.0
    %v3738 = vrcp.pop %v3737
    %v3739 = vmul.f32 1.0, %v3738
    %v3740 = vmul.f32 %v3732, %v3566
    %v3741 = vmul.f32 %v3726, %v3733
    %v3742 = vadd.f32 %v3740, %v3741
    %v3743 = vtanh.pop %v3742
    %v3744 = vmul.f32 %v3739, %v3743
    %s3745 = scalar_lea.vmem [#allocation4], 48
    %3746 = vst [vmem:[%s3745] sm:$0xff] %v3744
    %v3747 = vld [vmem:[%s1923] sm:$0xff]
    %v3748 = vld [vmem:[%s1923 + $0x8] sm:$0xff]
    %v3749 = vld [vmem:[%s1923 + $0x10] sm:$0xff]
    %v3750 = vld [vmem:[%s1923 + $0x18] sm:$0xff]
    %3751 = vmatprep.subr.mxu0 %v2453
    %3752 = vmatpush1.msra.mxu0 %v2452
    %3753 = vmatprep.subr.mxu0 %v2457
    %3754 = vmatpush1.msra.mxu0 %v2456
    %3755 = vmatprep.subr.mxu0 %v2461
    %3756 = vmatpush1.msra.mxu0 %v2460
    %3757 = vmatprep.subr.mxu0 %v2465
    %3758 = vmatpush1.msra.mxu0 %v2464
    %3759 = vmatprep.subr.mxu0 %v2469
    %3760 = vmatpush1.msra.mxu0 %v2468
    %3761 = vmatprep.subr.mxu0 %v2473
    %3762 = vmatpush1.msra.mxu0 %v2472
    %3763 = vmatprep.subr.mxu0 %v2477
    %3764 = vmatpush1.msra.mxu0 %v2476
    %3765 = vmatprep.subr.mxu0 %v2481
    %3766 = vmatpush1.msra.mxu0 %v2480
    %3767 = vmatprep.subr.mxu0 %v2485
    %3768 = vmatpush1.msra.mxu0 %v2484
    %3769 = vmatprep.subr.mxu0 %v2489
    %3770 = vmatpush1.msra.mxu0 %v2488
    %3771 = vmatprep.subr.mxu0 %v2493
    %3772 = vmatpush1.msra.mxu0 %v2492
    %3773 = vmatprep.subr.mxu0 %v2497
    %3774 = vmatpush1.msra.mxu0 %v2496
    %3775 = vmatprep.subr.mxu0 %v2501
    %3776 = vmatpush1.msra.mxu0 %v2500
    %3777 = vmatprep.subr.mxu0 %v2505
    %3778 = vmatpush1.msra.mxu0 %v2504
    %3779 = vmatprep.subr.mxu0 %v2509
    %3780 = vmatpush1.msra.mxu0 %v2508
    %3781 = vmatprep.subr.mxu0 %v2513
    %3782 = vmatpush1.msra.mxu0 %v2512
    %3783 = vmatprep.subr.mxu0 0.0
    %3784 = vmatpush1.msra.mxu0 0.0
    %3785 = vmatprep.subr.mxu0 0.0
    %3786 = vmatpush1.msra.mxu0 0.0
    %3787 = vmatprep.subr.mxu0 0.0
    %3788 = vmatpush1.msra.mxu0 0.0
    %3789 = vmatprep.subr.mxu0 0.0
    %3790 = vmatpush1.msra.mxu0 0.0
    %3791 = vmatprep.subr.mxu0 0.0
    %3792 = vmatpush1.msra.mxu0 0.0
    %3793 = vmatprep.subr.mxu0 0.0
    %3794 = vmatpush1.msra.mxu0 0.0
    %3795 = vmatprep.subr.mxu0 0.0
    %3796 = vmatpush1.msra.mxu0 0.0
    %3797 = vmatprep.subr.mxu0 0.0
    %3798 = vmatpush1.msra.mxu0 0.0
    %3799 = vmatprep.subr.mxu0 0.0
    %3800 = vmatpush1.msra.mxu0 0.0
    %3801 = vmatprep.subr.mxu0 0.0
    %3802 = vmatpush1.msra.mxu0 0.0
    %3803 = vmatprep.subr.mxu0 0.0
    %3804 = vmatpush1.msra.mxu0 0.0
    %3805 = vmatprep.subr.mxu0 0.0
    %3806 = vmatpush1.msra.mxu0 0.0
    %3807 = vmatprep.subr.mxu0 0.0
    %3808 = vmatpush1.msra.mxu0 0.0
    %3809 = vmatprep.subr.mxu0 0.0
    %3810 = vmatpush1.msra.mxu0 0.0
    %3811 = vmatprep.subr.mxu0 0.0
    %3812 = vmatpush1.msra.mxu0 0.0
    %3813 = vmatprep.subr.mxu0 0.0
    %3814 = vmatpush1.msra.mxu0 0.0
    %3815 = vmatprep.mubr.f32.mxu0 0.0
    %3816 = vmatmul.mubr.f32.gmra.mrb[0].mxu0 %v3744
    %v3817 = vpop.f32.mrb[0].mxu0
    %v3818 = vadd.f32 0.0, %v3817
    %v3819 = vpop.f32.mrb[0].mxu0
    %v3820 = vadd.f32 0.0, %v3819
    %3821 = vdwg.mxu0
    %3822 = vmatprep.subr.mxu0 %v2455
    %3823 = vmatpush1.msra.mxu0 %v2454
    %3824 = vmatprep.subr.mxu0 %v2459
    %3825 = vmatpush1.msra.mxu0 %v2458
    %3826 = vmatprep.subr.mxu0 %v2463
    %3827 = vmatpush1.msra.mxu0 %v2462
    %3828 = vmatprep.subr.mxu0 %v2467
    %3829 = vmatpush1.msra.mxu0 %v2466
    %3830 = vmatprep.subr.mxu0 %v2471
    %3831 = vmatpush1.msra.mxu0 %v2470
    %3832 = vmatprep.subr.mxu0 %v2475
    %3833 = vmatpush1.msra.mxu0 %v2474
    %3834 = vmatprep.subr.mxu0 %v2479
    %3835 = vmatpush1.msra.mxu0 %v2478
    %3836 = vmatprep.subr.mxu0 %v2483
    %3837 = vmatpush1.msra.mxu0 %v2482
    %3838 = vmatprep.subr.mxu0 %v2487
    %3839 = vmatpush1.msra.mxu0 %v2486
    %3840 = vmatprep.subr.mxu0 %v2491
    %3841 = vmatpush1.msra.mxu0 %v2490
    %3842 = vmatprep.subr.mxu0 %v2495
    %3843 = vmatpush1.msra.mxu0 %v2494
    %3844 = vmatprep.subr.mxu0 %v2499
    %3845 = vmatpush1.msra.mxu0 %v2498
    %3846 = vmatprep.subr.mxu0 %v2503
    %3847 = vmatpush1.msra.mxu0 %v2502
    %3848 = vmatprep.subr.mxu0 %v2507
    %3849 = vmatpush1.msra.mxu0 %v2506
    %3850 = vmatprep.subr.mxu0 %v2511
    %3851 = vmatpush1.msra.mxu0 %v2510
    %3852 = vmatprep.subr.mxu0 %v2515
    %3853 = vmatpush1.msra.mxu0 %v2514
    %3854 = vmatprep.subr.mxu0 0.0
    %3855 = vmatpush1.msra.mxu0 0.0
    %3856 = vmatprep.subr.mxu0 0.0
    %3857 = vmatpush1.msra.mxu0 0.0
    %3858 = vmatprep.subr.mxu0 0.0
    %3859 = vmatpush1.msra.mxu0 0.0
    %3860 = vmatprep.subr.mxu0 0.0
    %3861 = vmatpush1.msra.mxu0 0.0
    %3862 = vmatprep.subr.mxu0 0.0
    %3863 = vmatpush1.msra.mxu0 0.0
    %3864 = vmatprep.subr.mxu0 0.0
    %3865 = vmatpush1.msra.mxu0 0.0
    %3866 = vmatprep.subr.mxu0 0.0
    %3867 = vmatpush1.msra.mxu0 0.0
    %3868 = vmatprep.subr.mxu0 0.0
    %3869 = vmatpush1.msra.mxu0 0.0
    %3870 = vmatprep.subr.mxu0 0.0
    %3871 = vmatpush1.msra.mxu0 0.0
    %3872 = vmatprep.subr.mxu0 0.0
    %3873 = vmatpush1.msra.mxu0 0.0
    %3874 = vmatprep.subr.mxu0 0.0
    %3875 = vmatpush1.msra.mxu0 0.0
    %3876 = vmatprep.subr.mxu0 0.0
    %3877 = vmatpush1.msra.mxu0 0.0
    %3878 = vmatprep.subr.mxu0 0.0
    %3879 = vmatpush1.msra.mxu0 0.0
    %3880 = vmatprep.subr.mxu0 0.0
    %3881 = vmatpush1.msra.mxu0 0.0
    %3882 = vmatprep.subr.mxu0 0.0
    %3883 = vmatpush1.msra.mxu0 0.0
    %3884 = vmatprep.subr.mxu0 0.0
    %3885 = vmatpush1.msra.mxu0 0.0
    %3886 = vmatprep.mubr.f32.mxu0 0.0
    %3887 = vmatmul.mubr.f32.gmra.mrb[0].mxu0 %v3744
    %v3888 = vpop.f32.mrb[0].mxu0
    %v3889 = vadd.f32 0.0, %v3888
    %v3890 = vpop.f32.mrb[0].mxu0
    %v3891 = vadd.f32 0.0, %v3890
    %3892 = vdwg.mxu0
    %v3893 = vadd.f32 %v3747, %v3818
    %v3894 = vadd.f32 %v3748, %v3820
    %v3895 = vadd.f32 %v3749, %v3889
    %v3896 = vadd.f32 %v3750, %v3891
    %v3897 = vxor.u32 %v3893, 2147483648
    %v3898 = vmul.f32 %v3897, 1.442695
    %v3899 = vpow.pop %v3898
    %v3900 = vadd.f32 %v3899, 1.0
    %v3901 = vrcp.pop %v3900
    %v3902 = vmul.f32 1.0, %v3901
    %v3903 = vxor.u32 %v3894, 2147483648
    %v3904 = vmul.f32 %v3903, 1.442695
    %v3905 = vpow.pop %v3904
    %v3906 = vadd.f32 %v3905, 1.0
    %v3907 = vrcp.pop %v3906
    %v3908 = vmul.f32 1.0, %v3907
    %v3909 = vtanh.pop %v3895
    %v3910 = vxor.u32 %v3896, 2147483648
    %v3911 = vmul.f32 %v3910, 1.442695
    %v3912 = vpow.pop %v3911
    %v3913 = vadd.f32 %v3912, 1.0
    %v3914 = vrcp.pop %v3913
    %v3915 = vmul.f32 1.0, %v3914
    %v3916 = vmul.f32 %v3908, %v3742
    %v3917 = vmul.f32 %v3902, %v3909
    %v3918 = vadd.f32 %v3916, %v3917
    %v3919 = vtanh.pop %v3918
    %v3920 = vmul.f32 %v3915, %v3919
    %s3921 = scalar_lea.vmem [#allocation4], 56
    %3922 = vst [vmem:[%s3921] sm:$0xff] %v3920
    %v3923 = vld [vmem:[#allocation4] sm:$0xff]
    %v3924 = vld [vmem:[#allocation4 + $0x8] sm:$0xff]
    %v3925 = vld [vmem:[#allocation4 + $0x10] sm:$0xff]
    %v3926 = vld [vmem:[#allocation4 + $0x18] sm:$0xff]
    %v3927 = vld [vmem:[#allocation4 + $0x20] sm:$0xff]
    %v3928 = vld [vmem:[#allocation4 + $0x28] sm:$0xff]
    %v3929 = vld [vmem:[#allocation4 + $0x30] sm:$0xff]
    %v3930 = vld [vmem:[#allocation4 + $0x38] sm:$0xff]
    %v3931 = vld [vmem:[#allocation16] sm:$0xff]
    %v3932 = vld [vmem:[#allocation16 + $0x8] sm:$0xff]
    %v3933 = vld [vmem:[#allocation16 + $0x10] sm:$0xff]
    %v3934 = vld [vmem:[#allocation16 + $0x18] sm:$0xff]
    %v3935 = vld [vmem:[#allocation16 + $0x20] sm:$0xff]
    %v3936 = vld [vmem:[#allocation16 + $0x28] sm:$0xff]
    %v3937 = vld [vmem:[#allocation16 + $0x30] sm:$0xff]
    %v3938 = vld [vmem:[#allocation16 + $0x38] sm:$0xff]
    %v3939 = vld [vmem:[#allocation16 + $0x40] sm:$0xff]
    %v3940 = vld [vmem:[#allocation16 + $0x48] sm:$0xff]
    %v3941 = vld [vmem:[#allocation16 + $0x50] sm:$0xff]
    %v3942 = vld [vmem:[#allocation16 + $0x58] sm:$0xff]
    %v3943 = vld [vmem:[#allocation16 + $0x60] sm:$0xff]
    %v3944 = vld [vmem:[#allocation16 + $0x68] sm:$0xff]
    %v3945 = vld [vmem:[#allocation16 + $0x70] sm:$0xff]
    %v3946 = vld [vmem:[#allocation16 + $0x78] sm:$0xff]
    %v3947 = vld [vmem:[%s10] sm:$0x1]
    %v3949 = vlaneseq
    %v3950 = vshrl.u32 %v3949, 7
    %v3951 = vsub.s32 0, %v3950
    %v3952 = vrot.slane %v3947, %v3951
    %3954 = vmatprep.subr.mxu0 0.0
    %3955 = vmatpush1.msra.mxu0 %v3931
    %3956 = vmatprep.subr.mxu0 0.0
    %3957 = vmatpush1.msra.mxu0 %v3932
    %3958 = vmatprep.subr.mxu0 0.0
    %3959 = vmatpush1.msra.mxu0 %v3933
    %3960 = vmatprep.subr.mxu0 0.0
    %3961 = vmatpush1.msra.mxu0 %v3934
    %3962 = vmatprep.subr.mxu0 0.0
    %3963 = vmatpush1.msra.mxu0 %v3935
    %3964 = vmatprep.subr.mxu0 0.0
    %3965 = vmatpush1.msra.mxu0 %v3936
    %3966 = vmatprep.subr.mxu0 0.0
    %3967 = vmatpush1.msra.mxu0 %v3937
    %3968 = vmatprep.subr.mxu0 0.0
    %3969 = vmatpush1.msra.mxu0 %v3938
    %3970 = vmatprep.subr.mxu0 0.0
    %3971 = vmatpush1.msra.mxu0 %v3939
    %3972 = vmatprep.subr.mxu0 0.0
    %3973 = vmatpush1.msra.mxu0 %v3940
    %3974 = vmatprep.subr.mxu0 0.0
    %3975 = vmatpush1.msra.mxu0 %v3941
    %3976 = vmatprep.subr.mxu0 0.0
    %3977 = vmatpush1.msra.mxu0 %v3942
    %3978 = vmatprep.subr.mxu0 0.0
    %3979 = vmatpush1.msra.mxu0 %v3943
    %3980 = vmatprep.subr.mxu0 0.0
    %3981 = vmatpush1.msra.mxu0 %v3944
    %3982 = vmatprep.subr.mxu0 0.0
    %3983 = vmatpush1.msra.mxu0 %v3945
    %3984 = vmatprep.subr.mxu0 0.0
    %3985 = vmatpush1.msra.mxu0 %v3946
    %3986 = vmatprep.subr.mxu0 0.0
    %3987 = vmatpush1.msra.mxu0 0.0
    %3988 = vmatprep.subr.mxu0 0.0
    %3989 = vmatpush1.msra.mxu0 0.0
    %3990 = vmatprep.subr.mxu0 0.0
    %3991 = vmatpush1.msra.mxu0 0.0
    %3992 = vmatprep.subr.mxu0 0.0
    %3993 = vmatpush1.msra.mxu0 0.0
    %3994 = vmatprep.subr.mxu0 0.0
    %3995 = vmatpush1.msra.mxu0 0.0
    %3996 = vmatprep.subr.mxu0 0.0
    %3997 = vmatpush1.msra.mxu0 0.0
    %3998 = vmatprep.subr.mxu0 0.0
    %3999 = vmatpush1.msra.mxu0 0.0
    %4000 = vmatprep.subr.mxu0 0.0
    %4001 = vmatpush1.msra.mxu0 0.0
    %4002 = vmatprep.subr.mxu0 0.0
    %4003 = vmatpush1.msra.mxu0 0.0
    %4004 = vmatprep.subr.mxu0 0.0
    %4005 = vmatpush1.msra.mxu0 0.0
    %4006 = vmatprep.subr.mxu0 0.0
    %4007 = vmatpush1.msra.mxu0 0.0
    %4008 = vmatprep.subr.mxu0 0.0
    %4009 = vmatpush1.msra.mxu0 0.0
    %4010 = vmatprep.subr.mxu0 0.0
    %4011 = vmatpush1.msra.mxu0 0.0
    %4012 = vmatprep.subr.mxu0 0.0
    %4013 = vmatpush1.msra.mxu0 0.0
    %4014 = vmatprep.subr.mxu0 0.0
    %4015 = vmatpush1.msra.mxu0 0.0
    %4016 = vmatprep.subr.mxu0 0.0
    %4017 = vmatpush1.msra.mxu0 0.0
    %4018 = vmatprep.mubr.f32.mxu0 0.0
    %4019 = vmatmul.mubr.f32.gmra.mrb[0].mxu0 %v3923
    %v4020 = vpop.f32.mrb[0].mxu0
    %v4021 = vadd.f32 %v3952, %v4020
    %v4022 = vpop.f32.mrb[0].mxu0
    %4023 = vmatprep.mubr.f32.mxu0 0.0
    %4024 = vmatmul.mubr.f32.gmra.mrb[0].mxu0 %v3924
    %v4025 = vpop.f32.mrb[0].mxu0
    %v4026 = vadd.f32 %v3952, %v4025
    %v4027 = vpop.f32.mrb[0].mxu0
    %4028 = vmatprep.mubr.f32.mxu0 0.0
    %4029 = vmatmul.mubr.f32.gmra.mrb[0].mxu0 %v3925
    %v4030 = vpop.f32.mrb[0].mxu0
    %v4031 = vadd.f32 %v3952, %v4030
    %v4032 = vpop.f32.mrb[0].mxu0
    %4033 = vmatprep.mubr.f32.mxu0 0.0
    %4034 = vmatmul.mubr.f32.gmra.mrb[0].mxu0 %v3926
    %v4035 = vpop.f32.mrb[0].mxu0
    %v4036 = vadd.f32 %v3952, %v4035
    %v4037 = vpop.f32.mrb[0].mxu0
    %4038 = vmatprep.mubr.f32.mxu0 0.0
    %4039 = vmatmul.mubr.f32.gmra.mrb[0].mxu0 %v3927
    %v4040 = vpop.f32.mrb[0].mxu0
    %v4041 = vadd.f32 %v3952, %v4040
    %v4042 = vpop.f32.mrb[0].mxu0
    %4043 = vmatprep.mubr.f32.mxu0 0.0
    %4044 = vmatmul.mubr.f32.gmra.mrb[0].mxu0 %v3928
    %v4045 = vpop.f32.mrb[0].mxu0
    %v4046 = vadd.f32 %v3952, %v4045
    %v4047 = vpop.f32.mrb[0].mxu0
    %4048 = vmatprep.mubr.f32.mxu0 0.0
    %4049 = vmatmul.mubr.f32.gmra.mrb[0].mxu0 %v3929
    %v4050 = vpop.f32.mrb[0].mxu0
    %v4051 = vadd.f32 %v3952, %v4050
    %v4052 = vpop.f32.mrb[0].mxu0
    %4053 = vmatprep.mubr.f32.mxu0 0.0
    %4054 = vmatmul.mubr.f32.gmra.mrb[0].mxu0 %v3930
    %v4055 = vpop.f32.mrb[0].mxu0
    %v4056 = vadd.f32 %v3952, %v4055
    %v4057 = vpop.f32.mrb[0].mxu0
    %4058 = vdwg.mxu0
    %4059 = vst [vmem:[#allocation17] sm:$0xff] %v4021
    %4060 = vst [vmem:[#allocation17 + $0x8] sm:$0xff] %v4026
    %4061 = vst [vmem:[#allocation17 + $0x10] sm:$0xff] %v4031
    %4062 = vst [vmem:[#allocation17 + $0x18] sm:$0xff] %v4036
    %4063 = vst [vmem:[#allocation17 + $0x20] sm:$0xff] %v4041
    %4064 = vst [vmem:[#allocation17 + $0x28] sm:$0xff] %v4046
    %4065 = vst [vmem:[#allocation17 + $0x30] sm:$0xff] %v4051
    %4066 = vst [vmem:[#allocation17 + $0x38] sm:$0xff] %v4056
    // Predicated region
    $region74: #{tpu_custom_call.1} parent=1 // pred_check
      _
    $region75: #{tpu_custom_call.1} parent=1 // pred_check_branch
      %4068 = sbr.rel (0) target = $region77
    $region76: #{tpu_custom_call.1} parent=1 // pred_region
      %s4070 = ssub.s32 1024, 1024
      %4071 = vsyncadd [#allocation7], %s4070
      %s4072 = sshll.u32 [#allocation17], 4
      %s4073 = int_to_ptr.vmem [resolvable:$true] %s4072
      %4078 = dma.vmem_to_hbm [thread:$0]  %s4073, 1024, %s11, [#allocation7], 128, 128, 8
    $region77: #{tpu_custom_call.1} parent=1 // pred_fallthru
      _
    // Predicated region
    $region78: #{tpu_custom_call.1} parent=1 // pred_check
      _
    $region79: #{tpu_custom_call.1} parent=1 // pred_check_branch
      %4080 = sbr.rel (0) target = $region81
    $region80: #{tpu_custom_call.1} parent=1 // pred_region
      %4081 = dma.done [#allocation7], 1024
    $region81: #{tpu_custom_call.1} parent=1 // pred_fallthru
      _
    %4082 = vsyncpa [#allocation6], 1
    %4083 = vsyncpa [#allocation9], 1
    %4084 = vsyncpa [#allocation12], 1
    %4085 = vsyncpa [#allocation15], 1
    %4086 = vsyncpa [#allocation7], 1

</llo_original>
